<compile_context>
chip_gen: v7x
topology: tpu7x:2x2x1
jax: 0.10.0
libtpu: 0.0.40
codegen_flags: <defaults>
</compile_context>

<pallas_src>
import jax
import jax.numpy as jnp
from jax.experimental import pallas as pl
from jax.experimental.pallas import tpu as pltpu


def _lstm_kernel(x_ref, w_ih_ref, w_hh_ref, b_ref, w_out_ref, b_out_ref,
                 out_ref, h_ref, c_ref):
    """One grid step processes one time-block of the sequence.

    x_ref    : (Bp, T_blk, I)   current time-block of the batch-first input
    w_ih_ref : (I,  4*Hp)       input->gates weights (gate-aligned columns)
    w_hh_ref : (Hp, 4*Hp)       hidden->gates weights (gate-aligned columns)
    b_ref    : (1,  4*Hp)       combined bias (b_ih + b_hh), gate-aligned
    w_out_ref: (Hp, Op)         final linear weights (zero-padded)
    b_out_ref: (1,  Op)         final linear bias (zero-padded)
    out_ref  : (Bp, Op)         classifier output (written on last block only)
    h_ref/c_ref : (Bp, Hp) f32  recurrent state, persistent VMEM scratch
    """
    blk = pl.program_id(0)

    @pl.when(blk == 0)
    def _init():
        h_ref[...] = jnp.zeros_like(h_ref)
        c_ref[...] = jnp.zeros_like(c_ref)

    Bp, T_blk, I = x_ref.shape
    Gp = w_ih_ref.shape[1]
    Hp = Gp // 4

    # Hoisted input projection: one big MXU matmul for the whole block.
    xg = jnp.dot(
        x_ref[...].reshape(Bp * T_blk, I), w_ih_ref[...],
        preferred_element_type=jnp.float32,
    ).reshape(Bp, T_blk, Gp)

    w_hh = w_hh_ref[...]
    bias = jnp.broadcast_to(b_ref[...], (Bp, Gp))  # hoisted out of the loop

    h = h_ref[...]
    c = c_ref[...]

    # Fully unrolled recurrence over the block (static indices -> free slices,
    # scheduler can interleave across iterations).  Only h @ W_hh is serial.
    for t in range(T_blk):
        gates = xg[:, t, :] + jnp.dot(h, w_hh,
                                      preferred_element_type=jnp.float32) + bias
        i_g = jax.nn.sigmoid(gates[:, 0 * Hp:1 * Hp])   # 128-lane aligned slices
        f_g = jax.nn.sigmoid(gates[:, 1 * Hp:2 * Hp])
        g_g = jnp.tanh(gates[:, 2 * Hp:3 * Hp])
        o_g = jax.nn.sigmoid(gates[:, 3 * Hp:4 * Hp])
        c = f_g * c + i_g * g_g
        h = o_g * jnp.tanh(c)

    h_ref[...] = h
    c_ref[...] = c

    @pl.when(blk == pl.num_programs(0) - 1)
    def _final():
        out_ref[...] = (
            jnp.dot(h, w_out_ref[...], preferred_element_type=jnp.float32)
            + b_out_ref[...]
        ).astype(out_ref.dtype)


def _round_up(n, m):
    return ((n + m - 1) // m) * m


def _choose_t_block(T, max_blk=16):
    """Largest time block <= max_blk that tiles T and satisfies the (8,128) rule."""
    if T <= max_blk:
        return T
    for blk in range(max_blk, 0, -1):
        if blk % 8 == 0 and T % blk == 0:
            return blk
    # TODO(synk): masked tail step for very long T with no multiple-of-8 divisor;
    # for now fall back to keeping the whole sequence resident (grid of 1).
    return T


def _pad_gate_params(w_ih, w_hh, b, H, Hp):
    """Zero-pad H->Hp and place each PyTorch gate [i,f,g,o] on a 128-lane boundary."""
    Gp = 4 * Hp

    def scatter_gates(w):
        rows = w.shape[0]
        out = jnp.zeros((rows, Gp), w.dtype)
        for g in range(4):
            out = out.at[:, g * Hp:g * Hp + H].set(w[:, g * H:(g + 1) * H])
        return out

    w_ih_p = scatter_gates(w_ih)
    w_hh_p = jnp.zeros((Hp, Gp), w_hh.dtype).at[:H].set(scatter_gates(w_hh))
    b_p = scatter_gates(b.reshape(1, 4 * H))
    return w_ih_p, w_hh_p, b_p


def lstm_forward(x, params, *, t_block_max=16):
    """x: (B, T, I) float32, batch_first like the PyTorch module."""
    w_ih, w_hh, b, w_out, b_out = params
    B, T, I = x.shape
    H = w_hh.shape[0]
    O = w_out.shape[1]

    Bp = _round_up(B, 8)       # f32 sublane tile
    Hp = _round_up(H, 128)     # lane-aligned gates
    Gp = 4 * Hp
    Op = _round_up(O, 128)     # lane-dense output store

    t_blk = _choose_t_block(T, t_block_max)
    n_blk = T // t_blk

    # Zero-padding is semantics-preserving: padded hidden units have zero
    # weights/bias, so their cell/hidden state stays exactly 0 for all t, and
    # padded batch rows / output columns are sliced off below.
    x_p = jnp.zeros((Bp, T, I), x.dtype).at[:B].set(x)
    w_ih_p, w_hh_p, b_p = _pad_gate_params(w_ih, w_hh, b, H, Hp)
    w_out_p = jnp.zeros((Hp, Op), w_out.dtype).at[:H, :O].set(w_out)
    b_out_p = jnp.zeros((1, Op), b_out.dtype).at[:, :O].set(b_out.reshape(1, O))

    out = pl.pallas_call(
        _lstm_kernel,
        out_shape=jax.ShapeDtypeStruct((Bp, Op), jnp.float32),
        grid_spec=pltpu.PrefetchScalarGridSpec(
            num_scalar_prefetch=0,
            grid=(n_blk,),
            in_specs=[
                pl.BlockSpec((Bp, t_blk, I), lambda t: (0, t, 0)),  # stream x over T
                pl.BlockSpec((I, Gp), lambda t: (0, 0)),            # weights stay resident
                pl.BlockSpec((Hp, Gp), lambda t: (0, 0)),
                pl.BlockSpec((1, Gp), lambda t: (0, 0)),
                pl.BlockSpec((Hp, Op), lambda t: (0, 0)),
                pl.BlockSpec((1, Op), lambda t: (0, 0)),
            ],
            out_specs=pl.BlockSpec((Bp, Op), lambda t: (0, 0)),
            scratch_shapes=[
                pltpu.VMEM((Bp, Hp), jnp.float32),   # h carry
                pltpu.VMEM((Bp, Hp), jnp.float32),   # c carry
            ],
        ),
        compiler_params=pltpu.CompilerParams(
            dimension_semantics=("arbitrary",),      # sequential recurrence over T
        ),
    )(x_p, w_ih_p, w_hh_p, b_p, w_out_p, b_out_p)

    return out[:B, :O]


def init_params(key, input_size, hidden_size, output_size):
    """PyTorch-style uniform(-1/sqrt(H), 1/sqrt(H)) init, gate order [i, f, g, o]."""
    ks = jax.random.split(key, 7)
    bound = 1.0 / jnp.sqrt(hidden_size)
    w_ih = jax.random.uniform(ks[0], (input_size, 4 * hidden_size), jnp.float32,
                              -bound, bound)
    w_hh = jax.random.uniform(ks[1], (hidden_size, 4 * hidden_size), jnp.float32,
                              -bound, bound)
    b_ih = jax.random.uniform(ks[2], (4 * hidden_size,), jnp.float32, -bound, bound)
    b_hh = jax.random.uniform(ks[3], (4 * hidden_size,), jnp.float32, -bound, bound)
    b = (b_ih + b_hh).reshape(1, 4 * hidden_size)
    w_out = jax.random.uniform(ks[4], (hidden_size, output_size), jnp.float32,
                               -bound, bound)
    b_out = jax.random.uniform(ks[5], (1, output_size), jnp.float32, -bound, bound)
    return (w_ih, w_hh, b, w_out, b_out)


def lstm_reference(x, params):
    """Pure-JAX reference for correctness checking (unpadded math)."""
    w_ih, w_hh, b, w_out, b_out = params
    B, T, I = x.shape
    H = w_hh.shape[0]
    h = jnp.zeros((B, H), jnp.float32)
    c = jnp.zeros((B, H), jnp.float32)
    for t in range(T):
        gates = x[:, t, :] @ w_ih + h @ w_hh + b
        i_g = jax.nn.sigmoid(gates[:, 0 * H:1 * H])
        f_g = jax.nn.sigmoid(gates[:, 1 * H:2 * H])
        g_g = jnp.tanh(gates[:, 2 * H:3 * H])
        o_g = jax.nn.sigmoid(gates[:, 3 * H:4 * H])
        c = f_g * c + i_g * g_g
        h = o_g * jnp.tanh(c)
    return h @ w_out + b_out


if __name__ == "__main__":
    # Small shapes consistent with the module: batch=2, seq=8, input=16,
    # hidden=32, output=1.
    B, T, I, H, O = 2, 8, 16, 32, 1

    key = jax.random.PRNGKey(0)
    k_x, k_p = jax.random.split(key)
    x = jax.random.normal(k_x, (B, T, I), jnp.float32)
    params = init_params(k_p, I, H, O)

    out = jax.block_until_ready(lstm_forward(x, params))
    ref = lstm_reference(x, params)

    assert out.shape == (B, O)
    assert jnp.allclose(out, ref, atol=1e-5, rtol=1e-5), (out, ref)

    print("KERNEL_OK")
</pallas_src>

<mosaic_0001>
module attributes {stable_mosaic.version = 11 : i64} {
  func.func @_lstm_kernel(%arg0: i32, %arg1: memref<8x8x16xf32, #tpu.memory_space<vmem>>, %arg2: memref<16x512xf32, #tpu.memory_space<vmem>>, %arg3: memref<128x512xf32, #tpu.memory_space<vmem>>, %arg4: memref<1x512xf32, #tpu.memory_space<vmem>>, %arg5: memref<128x128xf32, #tpu.memory_space<vmem>>, %arg6: memref<1x128xf32, #tpu.memory_space<vmem>>, %arg7: memref<8x128xf32, #tpu.memory_space<vmem>>, %arg8: memref<8x128xf32, #tpu.memory_space<vmem>>, %arg9: memref<8x128xf32, #tpu.memory_space<vmem>>) attributes {dimension_semantics = [#tpu.dimension_semantics<arbitrary>], iteration_bounds = array<i64: 1>, scalar_prefetch = 0 : i64, scratch_operands = 2 : i64, tpu.core_type = #tpu.core_type<tc>, window_params = [{transform_indices = @transform_0, window_bounds = array<i64: 8, 8, 16>}, {pipeline_mode = #tpu.pipeline_mode<synchronous>, transform_indices = @transform_1, window_bounds = array<i64: 16, 512>}, {pipeline_mode = #tpu.pipeline_mode<synchronous>, transform_indices = @transform_2, window_bounds = array<i64: 128, 512>}, {pipeline_mode = #tpu.pipeline_mode<synchronous>, transform_indices = @transform_3, window_bounds = array<i64: 1, 512>}, {pipeline_mode = #tpu.pipeline_mode<synchronous>, transform_indices = @transform_4, window_bounds = array<i64: 128, 128>}, {pipeline_mode = #tpu.pipeline_mode<synchronous>, transform_indices = @transform_5, window_bounds = array<i64: 1, 128>}, {pipeline_mode = #tpu.pipeline_mode<synchronous>, transform_indices = @transform_6, window_bounds = array<i64: 8, 128>}]} {
    %c0_i32 = arith.constant 0 : i32
    %0 = arith.cmpi eq, %arg0, %c0_i32 : i32
    %1 = arith.extui %0 : i1 to i32
    %c0_i32_0 = arith.constant 0 : i32
    %2 = arith.cmpi ne, %1, %c0_i32_0 : i32
    scf.if %2 {
      %cst_51 = arith.constant 0.000000e+00 : f32
      %259 = vector.broadcast %cst_51 : f32 to vector<8x128xf32>
      %c0_52 = arith.constant 0 : index
      %c0_53 = arith.constant 0 : index
      %260 = vector.load %arg8[%c0_52, %c0_53] : memref<8x128xf32, #tpu.memory_space<vmem>>, vector<8x128xf32>
      tpu.vector_store %arg8[%c0_52, %c0_53], %259 {strides = array<i32>} : memref<8x128xf32, #tpu.memory_space<vmem>>, vector<8x128xf32>,
      %cst_54 = arith.constant 0.000000e+00 : f32
      %261 = vector.broadcast %cst_54 : f32 to vector<8x128xf32>
      %c0_55 = arith.constant 0 : index
      %c0_56 = arith.constant 0 : index
      %262 = vector.load %arg9[%c0_55, %c0_56] : memref<8x128xf32, #tpu.memory_space<vmem>>, vector<8x128xf32>
      tpu.vector_store %arg9[%c0_55, %c0_56], %261 {strides = array<i32>} : memref<8x128xf32, #tpu.memory_space<vmem>>, vector<8x128xf32>,
    } else {
    }
    %c0 = arith.constant 0 : index
    %c0_1 = arith.constant 0 : index
    %c0_2 = arith.constant 0 : index
    %3 = vector.load %arg1[%c0, %c0_1, %c0_2] : memref<8x8x16xf32, #tpu.memory_space<vmem>>, vector<8x8x16xf32>
    %4 = vector.shape_cast %3 : vector<8x8x16xf32> to vector<64x16xf32>
    %c0_3 = arith.constant 0 : index
    %c0_4 = arith.constant 0 : index
    %5 = vector.load %arg2[%c0_3, %c0_4] : memref<16x512xf32, #tpu.memory_space<vmem>>, vector<16x512xf32>
    %cst = arith.constant dense<0.000000e+00> : vector<64x512xf32>
    %6 = tpu.matmul %4, %5, %cst {dimension_numbers = #tpu.dot_dimension_numbers<[1], [0], [0], [1], [0, 0, 1, 1], [], []>} : vector<64x16xf32>, vector<16x512xf32>, vector<64x512xf32> -> vector<64x512xf32>
    %7 = vector.shape_cast %6 : vector<64x512xf32> to vector<8x8x512xf32>
    %c0_5 = arith.constant 0 : index
    %c0_6 = arith.constant 0 : index
    %8 = vector.load %arg3[%c0_5, %c0_6] : memref<128x512xf32, #tpu.memory_space<vmem>>, vector<128x512xf32>
    %c0_7 = arith.constant 0 : index
    %c0_8 = arith.constant 0 : index
    %9 = vector.load %arg4[%c0_7, %c0_8] : memref<1x512xf32, #tpu.memory_space<vmem>>, vector<1x512xf32>
    %10 = vector.shape_cast %9 : vector<1x512xf32> to vector<1x512xf32>
    %11 = vector.broadcast %10 : vector<1x512xf32> to vector<8x512xf32>
    %c0_9 = arith.constant 0 : index
    %c0_10 = arith.constant 0 : index
    %12 = vector.load %arg8[%c0_9, %c0_10] : memref<8x128xf32, #tpu.memory_space<vmem>>, vector<8x128xf32>
    %c0_11 = arith.constant 0 : index
    %c0_12 = arith.constant 0 : index
    %13 = vector.load %arg9[%c0_11, %c0_12] : memref<8x128xf32, #tpu.memory_space<vmem>>, vector<8x128xf32>
    %14 = vector.extract_strided_slice %7 {offsets = [0, 0, 0], sizes = [8, 1, 512], strides = [1, 1, 1]} : vector<8x8x512xf32> to vector<8x1x512xf32>
    %15 = vector.shape_cast %14 : vector<8x1x512xf32> to vector<8x512xf32>
    %cst_13 = arith.constant dense<0.000000e+00> : vector<8x512xf32>
    %16 = tpu.matmul %12, %8, %cst_13 {dimension_numbers = #tpu.dot_dimension_numbers<[1], [0], [0], [1], [0, 0, 1, 1], [], []>} : vector<8x128xf32>, vector<128x512xf32>, vector<8x512xf32> -> vector<8x512xf32>
    %17 = arith.addf %15, %16 : vector<8x512xf32>
    %18 = arith.addf %17, %11 : vector<8x512xf32>
    %19 = vector.extract_strided_slice %18 {offsets = [0, 0], sizes = [8, 128], strides = [1, 1]} : vector<8x512xf32> to vector<8x128xf32>
    %20 = arith.negf %19 : vector<8x128xf32>
    %21 = math.exp %20 : vector<8x128xf32>
    %cst_14 = arith.constant 1.000000e+00 : f32
    %22 = vector.broadcast %cst_14 : f32 to vector<8x128xf32>
    %23 = arith.addf %22, %21 : vector<8x128xf32>
    %24 = arith.divf %22, %23 : vector<8x128xf32>
    %25 = vector.extract_strided_slice %18 {offsets = [0, 128], sizes = [8, 128], strides = [1, 1]} : vector<8x512xf32> to vector<8x128xf32>
    %26 = arith.negf %25 : vector<8x128xf32>
    %27 = math.exp %26 : vector<8x128xf32>
    %cst_15 = arith.constant 1.000000e+00 : f32
    %28 = vector.broadcast %cst_15 : f32 to vector<8x128xf32>
    %29 = arith.addf %28, %27 : vector<8x128xf32>
    %30 = arith.divf %28, %29 : vector<8x128xf32>
    %31 = vector.extract_strided_slice %18 {offsets = [0, 256], sizes = [8, 128], strides = [1, 1]} : vector<8x512xf32> to vector<8x128xf32>
    %32 = math.tanh %31 : vector<8x128xf32>
    %33 = vector.extract_strided_slice %18 {offsets = [0, 384], sizes = [8, 128], strides = [1, 1]} : vector<8x512xf32> to vector<8x128xf32>
    %34 = arith.negf %33 : vector<8x128xf32>
    %35 = math.exp %34 : vector<8x128xf32>
    %cst_16 = arith.constant 1.000000e+00 : f32
    %36 = vector.broadcast %cst_16 : f32 to vector<8x128xf32>
    %37 = arith.addf %36, %35 : vector<8x128xf32>
    %38 = arith.divf %36, %37 : vector<8x128xf32>
    %39 = arith.mulf %30, %13 : vector<8x128xf32>
    %40 = arith.mulf %24, %32 : vector<8x128xf32>
    %41 = arith.addf %39, %40 : vector<8x128xf32>
    %42 = math.tanh %41 : vector<8x128xf32>
    %43 = arith.mulf %38, %42 : vector<8x128xf32>
    %44 = vector.extract_strided_slice %7 {offsets = [0, 1, 0], sizes = [8, 1, 512], strides = [1, 1, 1]} : vector<8x8x512xf32> to vector<8x1x512xf32>
    %45 = vector.shape_cast %44 : vector<8x1x512xf32> to vector<8x512xf32>
    %cst_17 = arith.constant dense<0.000000e+00> : vector<8x512xf32>
    %46 = tpu.matmul %43, %8, %cst_17 {dimension_numbers = #tpu.dot_dimension_numbers<[1], [0], [0], [1], [0, 0, 1, 1], [], []>} : vector<8x128xf32>, vector<128x512xf32>, vector<8x512xf32> -> vector<8x512xf32>
    %47 = arith.addf %45, %46 : vector<8x512xf32>
    %48 = arith.addf %47, %11 : vector<8x512xf32>
    %49 = vector.extract_strided_slice %48 {offsets = [0, 0], sizes = [8, 128], strides = [1, 1]} : vector<8x512xf32> to vector<8x128xf32>
    %50 = arith.negf %49 : vector<8x128xf32>
    %51 = math.exp %50 : vector<8x128xf32>
    %cst_18 = arith.constant 1.000000e+00 : f32
    %52 = vector.broadcast %cst_18 : f32 to vector<8x128xf32>
    %53 = arith.addf %52, %51 : vector<8x128xf32>
    %54 = arith.divf %52, %53 : vector<8x128xf32>
    %55 = vector.extract_strided_slice %48 {offsets = [0, 128], sizes = [8, 128], strides = [1, 1]} : vector<8x512xf32> to vector<8x128xf32>
    %56 = arith.negf %55 : vector<8x128xf32>
    %57 = math.exp %56 : vector<8x128xf32>
    %cst_19 = arith.constant 1.000000e+00 : f32
    %58 = vector.broadcast %cst_19 : f32 to vector<8x128xf32>
    %59 = arith.addf %58, %57 : vector<8x128xf32>
    %60 = arith.divf %58, %59 : vector<8x128xf32>
    %61 = vector.extract_strided_slice %48 {offsets = [0, 256], sizes = [8, 128], strides = [1, 1]} : vector<8x512xf32> to vector<8x128xf32>
    %62 = math.tanh %61 : vector<8x128xf32>
    %63 = vector.extract_strided_slice %48 {offsets = [0, 384], sizes = [8, 128], strides = [1, 1]} : vector<8x512xf32> to vector<8x128xf32>
    %64 = arith.negf %63 : vector<8x128xf32>
    %65 = math.exp %64 : vector<8x128xf32>
    %cst_20 = arith.constant 1.000000e+00 : f32
    %66 = vector.broadcast %cst_20 : f32 to vector<8x128xf32>
    %67 = arith.addf %66, %65 : vector<8x128xf32>
    %68 = arith.divf %66, %67 : vector<8x128xf32>
    %69 = arith.mulf %60, %41 : vector<8x128xf32>
    %70 = arith.mulf %54, %62 : vector<8x128xf32>
    %71 = arith.addf %69, %70 : vector<8x128xf32>
    %72 = math.tanh %71 : vector<8x128xf32>
    %73 = arith.mulf %68, %72 : vector<8x128xf32>
    %74 = vector.extract_strided_slice %7 {offsets = [0, 2, 0], sizes = [8, 1, 512], strides = [1, 1, 1]} : vector<8x8x512xf32> to vector<8x1x512xf32>
    %75 = vector.shape_cast %74 : vector<8x1x512xf32> to vector<8x512xf32>
    %cst_21 = arith.constant dense<0.000000e+00> : vector<8x512xf32>
    %76 = tpu.matmul %73, %8, %cst_21 {dimension_numbers = #tpu.dot_dimension_numbers<[1], [0], [0], [1], [0, 0, 1, 1], [], []>} : vector<8x128xf32>, vector<128x512xf32>, vector<8x512xf32> -> vector<8x512xf32>
    %77 = arith.addf %75, %76 : vector<8x512xf32>
    %78 = arith.addf %77, %11 : vector<8x512xf32>
    %79 = vector.extract_strided_slice %78 {offsets = [0, 0], sizes = [8, 128], strides = [1, 1]} : vector<8x512xf32> to vector<8x128xf32>
    %80 = arith.negf %79 : vector<8x128xf32>
    %81 = math.exp %80 : vector<8x128xf32>
    %cst_22 = arith.constant 1.000000e+00 : f32
    %82 = vector.broadcast %cst_22 : f32 to vector<8x128xf32>
    %83 = arith.addf %82, %81 : vector<8x128xf32>
    %84 = arith.divf %82, %83 : vector<8x128xf32>
    %85 = vector.extract_strided_slice %78 {offsets = [0, 128], sizes = [8, 128], strides = [1, 1]} : vector<8x512xf32> to vector<8x128xf32>
    %86 = arith.negf %85 : vector<8x128xf32>
    %87 = math.exp %86 : vector<8x128xf32>
    %cst_23 = arith.constant 1.000000e+00 : f32
    %88 = vector.broadcast %cst_23 : f32 to vector<8x128xf32>
    %89 = arith.addf %88, %87 : vector<8x128xf32>
    %90 = arith.divf %88, %89 : vector<8x128xf32>
    %91 = vector.extract_strided_slice %78 {offsets = [0, 256], sizes = [8, 128], strides = [1, 1]} : vector<8x512xf32> to vector<8x128xf32>
    %92 = math.tanh %91 : vector<8x128xf32>
    %93 = vector.extract_strided_slice %78 {offsets = [0, 384], sizes = [8, 128], strides = [1, 1]} : vector<8x512xf32> to vector<8x128xf32>
    %94 = arith.negf %93 : vector<8x128xf32>
    %95 = math.exp %94 : vector<8x128xf32>
    %cst_24 = arith.constant 1.000000e+00 : f32
    %96 = vector.broadcast %cst_24 : f32 to vector<8x128xf32>
    %97 = arith.addf %96, %95 : vector<8x128xf32>
    %98 = arith.divf %96, %97 : vector<8x128xf32>
    %99 = arith.mulf %90, %71 : vector<8x128xf32>
    %100 = arith.mulf %84, %92 : vector<8x128xf32>
    %101 = arith.addf %99, %100 : vector<8x128xf32>
    %102 = math.tanh %101 : vector<8x128xf32>
    %103 = arith.mulf %98, %102 : vector<8x128xf32>
    %104 = vector.extract_strided_slice %7 {offsets = [0, 3, 0], sizes = [8, 1, 512], strides = [1, 1, 1]} : vector<8x8x512xf32> to vector<8x1x512xf32>
    %105 = vector.shape_cast %104 : vector<8x1x512xf32> to vector<8x512xf32>
    %cst_25 = arith.constant dense<0.000000e+00> : vector<8x512xf32>
    %106 = tpu.matmul %103, %8, %cst_25 {dimension_numbers = #tpu.dot_dimension_numbers<[1], [0], [0], [1], [0, 0, 1, 1], [], []>} : vector<8x128xf32>, vector<128x512xf32>, vector<8x512xf32> -> vector<8x512xf32>
    %107 = arith.addf %105, %106 : vector<8x512xf32>
    %108 = arith.addf %107, %11 : vector<8x512xf32>
    %109 = vector.extract_strided_slice %108 {offsets = [0, 0], sizes = [8, 128], strides = [1, 1]} : vector<8x512xf32> to vector<8x128xf32>
    %110 = arith.negf %109 : vector<8x128xf32>
    %111 = math.exp %110 : vector<8x128xf32>
    %cst_26 = arith.constant 1.000000e+00 : f32
    %112 = vector.broadcast %cst_26 : f32 to vector<8x128xf32>
    %113 = arith.addf %112, %111 : vector<8x128xf32>
    %114 = arith.divf %112, %113 : vector<8x128xf32>
    %115 = vector.extract_strided_slice %108 {offsets = [0, 128], sizes = [8, 128], strides = [1, 1]} : vector<8x512xf32> to vector<8x128xf32>
    %116 = arith.negf %115 : vector<8x128xf32>
    %117 = math.exp %116 : vector<8x128xf32>
    %cst_27 = arith.constant 1.000000e+00 : f32
    %118 = vector.broadcast %cst_27 : f32 to vector<8x128xf32>
    %119 = arith.addf %118, %117 : vector<8x128xf32>
    %120 = arith.divf %118, %119 : vector<8x128xf32>
    %121 = vector.extract_strided_slice %108 {offsets = [0, 256], sizes = [8, 128], strides = [1, 1]} : vector<8x512xf32> to vector<8x128xf32>
    %122 = math.tanh %121 : vector<8x128xf32>
    %123 = vector.extract_strided_slice %108 {offsets = [0, 384], sizes = [8, 128], strides = [1, 1]} : vector<8x512xf32> to vector<8x128xf32>
    %124 = arith.negf %123 : vector<8x128xf32>
    %125 = math.exp %124 : vector<8x128xf32>
    %cst_28 = arith.constant 1.000000e+00 : f32
    %126 = vector.broadcast %cst_28 : f32 to vector<8x128xf32>
    %127 = arith.addf %126, %125 : vector<8x128xf32>
    %128 = arith.divf %126, %127 : vector<8x128xf32>
    %129 = arith.mulf %120, %101 : vector<8x128xf32>
    %130 = arith.mulf %114, %122 : vector<8x128xf32>
    %131 = arith.addf %129, %130 : vector<8x128xf32>
    %132 = math.tanh %131 : vector<8x128xf32>
    %133 = arith.mulf %128, %132 : vector<8x128xf32>
    %134 = vector.extract_strided_slice %7 {offsets = [0, 4, 0], sizes = [8, 1, 512], strides = [1, 1, 1]} : vector<8x8x512xf32> to vector<8x1x512xf32>
    %135 = vector.shape_cast %134 : vector<8x1x512xf32> to vector<8x512xf32>
    %cst_29 = arith.constant dense<0.000000e+00> : vector<8x512xf32>
    %136 = tpu.matmul %133, %8, %cst_29 {dimension_numbers = #tpu.dot_dimension_numbers<[1], [0], [0], [1], [0, 0, 1, 1], [], []>} : vector<8x128xf32>, vector<128x512xf32>, vector<8x512xf32> -> vector<8x512xf32>
    %137 = arith.addf %135, %136 : vector<8x512xf32>
    %138 = arith.addf %137, %11 : vector<8x512xf32>
    %139 = vector.extract_strided_slice %138 {offsets = [0, 0], sizes = [8, 128], strides = [1, 1]} : vector<8x512xf32> to vector<8x128xf32>
    %140 = arith.negf %139 : vector<8x128xf32>
    %141 = math.exp %140 : vector<8x128xf32>
    %cst_30 = arith.constant 1.000000e+00 : f32
    %142 = vector.broadcast %cst_30 : f32 to vector<8x128xf32>
    %143 = arith.addf %142, %141 : vector<8x128xf32>
    %144 = arith.divf %142, %143 : vector<8x128xf32>
    %145 = vector.extract_strided_slice %138 {offsets = [0, 128], sizes = [8, 128], strides = [1, 1]} : vector<8x512xf32> to vector<8x128xf32>
    %146 = arith.negf %145 : vector<8x128xf32>
    %147 = math.exp %146 : vector<8x128xf32>
    %cst_31 = arith.constant 1.000000e+00 : f32
    %148 = vector.broadcast %cst_31 : f32 to vector<8x128xf32>
    %149 = arith.addf %148, %147 : vector<8x128xf32>
    %150 = arith.divf %148, %149 : vector<8x128xf32>
    %151 = vector.extract_strided_slice %138 {offsets = [0, 256], sizes = [8, 128], strides = [1, 1]} : vector<8x512xf32> to vector<8x128xf32>
    %152 = math.tanh %151 : vector<8x128xf32>
    %153 = vector.extract_strided_slice %138 {offsets = [0, 384], sizes = [8, 128], strides = [1, 1]} : vector<8x512xf32> to vector<8x128xf32>
    %154 = arith.negf %153 : vector<8x128xf32>
    %155 = math.exp %154 : vector<8x128xf32>
    %cst_32 = arith.constant 1.000000e+00 : f32
    %156 = vector.broadcast %cst_32 : f32 to vector<8x128xf32>
    %157 = arith.addf %156, %155 : vector<8x128xf32>
    %158 = arith.divf %156, %157 : vector<8x128xf32>
    %159 = arith.mulf %150, %131 : vector<8x128xf32>
    %160 = arith.mulf %144, %152 : vector<8x128xf32>
    %161 = arith.addf %159, %160 : vector<8x128xf32>
    %162 = math.tanh %161 : vector<8x128xf32>
    %163 = arith.mulf %158, %162 : vector<8x128xf32>
    %164 = vector.extract_strided_slice %7 {offsets = [0, 5, 0], sizes = [8, 1, 512], strides = [1, 1, 1]} : vector<8x8x512xf32> to vector<8x1x512xf32>
    %165 = vector.shape_cast %164 : vector<8x1x512xf32> to vector<8x512xf32>
    %cst_33 = arith.constant dense<0.000000e+00> : vector<8x512xf32>
    %166 = tpu.matmul %163, %8, %cst_33 {dimension_numbers = #tpu.dot_dimension_numbers<[1], [0], [0], [1], [0, 0, 1, 1], [], []>} : vector<8x128xf32>, vector<128x512xf32>, vector<8x512xf32> -> vector<8x512xf32>
    %167 = arith.addf %165, %166 : vector<8x512xf32>
    %168 = arith.addf %167, %11 : vector<8x512xf32>
    %169 = vector.extract_strided_slice %168 {offsets = [0, 0], sizes = [8, 128], strides = [1, 1]} : vector<8x512xf32> to vector<8x128xf32>
    %170 = arith.negf %169 : vector<8x128xf32>
    %171 = math.exp %170 : vector<8x128xf32>
    %cst_34 = arith.constant 1.000000e+00 : f32
    %172 = vector.broadcast %cst_34 : f32 to vector<8x128xf32>
    %173 = arith.addf %172, %171 : vector<8x128xf32>
    %174 = arith.divf %172, %173 : vector<8x128xf32>
    %175 = vector.extract_strided_slice %168 {offsets = [0, 128], sizes = [8, 128], strides = [1, 1]} : vector<8x512xf32> to vector<8x128xf32>
    %176 = arith.negf %175 : vector<8x128xf32>
    %177 = math.exp %176 : vector<8x128xf32>
    %cst_35 = arith.constant 1.000000e+00 : f32
    %178 = vector.broadcast %cst_35 : f32 to vector<8x128xf32>
    %179 = arith.addf %178, %177 : vector<8x128xf32>
    %180 = arith.divf %178, %179 : vector<8x128xf32>
    %181 = vector.extract_strided_slice %168 {offsets = [0, 256], sizes = [8, 128], strides = [1, 1]} : vector<8x512xf32> to vector<8x128xf32>
    %182 = math.tanh %181 : vector<8x128xf32>
    %183 = vector.extract_strided_slice %168 {offsets = [0, 384], sizes = [8, 128], strides = [1, 1]} : vector<8x512xf32> to vector<8x128xf32>
    %184 = arith.negf %183 : vector<8x128xf32>
    %185 = math.exp %184 : vector<8x128xf32>
    %cst_36 = arith.constant 1.000000e+00 : f32
    %186 = vector.broadcast %cst_36 : f32 to vector<8x128xf32>
    %187 = arith.addf %186, %185 : vector<8x128xf32>
    %188 = arith.divf %186, %187 : vector<8x128xf32>
    %189 = arith.mulf %180, %161 : vector<8x128xf32>
    %190 = arith.mulf %174, %182 : vector<8x128xf32>
    %191 = arith.addf %189, %190 : vector<8x128xf32>
    %192 = math.tanh %191 : vector<8x128xf32>
    %193 = arith.mulf %188, %192 : vector<8x128xf32>
    %194 = vector.extract_strided_slice %7 {offsets = [0, 6, 0], sizes = [8, 1, 512], strides = [1, 1, 1]} : vector<8x8x512xf32> to vector<8x1x512xf32>
    %195 = vector.shape_cast %194 : vector<8x1x512xf32> to vector<8x512xf32>
    %cst_37 = arith.constant dense<0.000000e+00> : vector<8x512xf32>
    %196 = tpu.matmul %193, %8, %cst_37 {dimension_numbers = #tpu.dot_dimension_numbers<[1], [0], [0], [1], [0, 0, 1, 1], [], []>} : vector<8x128xf32>, vector<128x512xf32>, vector<8x512xf32> -> vector<8x512xf32>
    %197 = arith.addf %195, %196 : vector<8x512xf32>
    %198 = arith.addf %197, %11 : vector<8x512xf32>
    %199 = vector.extract_strided_slice %198 {offsets = [0, 0], sizes = [8, 128], strides = [1, 1]} : vector<8x512xf32> to vector<8x128xf32>
    %200 = arith.negf %199 : vector<8x128xf32>
    %201 = math.exp %200 : vector<8x128xf32>
    %cst_38 = arith.constant 1.000000e+00 : f32
    %202 = vector.broadcast %cst_38 : f32 to vector<8x128xf32>
    %203 = arith.addf %202, %201 : vector<8x128xf32>
    %204 = arith.divf %202, %203 : vector<8x128xf32>
    %205 = vector.extract_strided_slice %198 {offsets = [0, 128], sizes = [8, 128], strides = [1, 1]} : vector<8x512xf32> to vector<8x128xf32>
    %206 = arith.negf %205 : vector<8x128xf32>
    %207 = math.exp %206 : vector<8x128xf32>
    %cst_39 = arith.constant 1.000000e+00 : f32
    %208 = vector.broadcast %cst_39 : f32 to vector<8x128xf32>
    %209 = arith.addf %208, %207 : vector<8x128xf32>
    %210 = arith.divf %208, %209 : vector<8x128xf32>
    %211 = vector.extract_strided_slice %198 {offsets = [0, 256], sizes = [8, 128], strides = [1, 1]} : vector<8x512xf32> to vector<8x128xf32>
    %212 = math.tanh %211 : vector<8x128xf32>
    %213 = vector.extract_strided_slice %198 {offsets = [0, 384], sizes = [8, 128], strides = [1, 1]} : vector<8x512xf32> to vector<8x128xf32>
    %214 = arith.negf %213 : vector<8x128xf32>
    %215 = math.exp %214 : vector<8x128xf32>
    %cst_40 = arith.constant 1.000000e+00 : f32
    %216 = vector.broadcast %cst_40 : f32 to vector<8x128xf32>
    %217 = arith.addf %216, %215 : vector<8x128xf32>
    %218 = arith.divf %216, %217 : vector<8x128xf32>
    %219 = arith.mulf %210, %191 : vector<8x128xf32>
    %220 = arith.mulf %204, %212 : vector<8x128xf32>
    %221 = arith.addf %219, %220 : vector<8x128xf32>
    %222 = math.tanh %221 : vector<8x128xf32>
    %223 = arith.mulf %218, %222 : vector<8x128xf32>
    %224 = vector.extract_strided_slice %7 {offsets = [0, 7, 0], sizes = [8, 1, 512], strides = [1, 1, 1]} : vector<8x8x512xf32> to vector<8x1x512xf32>
    %225 = vector.shape_cast %224 : vector<8x1x512xf32> to vector<8x512xf32>
    %cst_41 = arith.constant dense<0.000000e+00> : vector<8x512xf32>
    %226 = tpu.matmul %223, %8, %cst_41 {dimension_numbers = #tpu.dot_dimension_numbers<[1], [0], [0], [1], [0, 0, 1, 1], [], []>} : vector<8x128xf32>, vector<128x512xf32>, vector<8x512xf32> -> vector<8x512xf32>
    %227 = arith.addf %225, %226 : vector<8x512xf32>
    %228 = arith.addf %227, %11 : vector<8x512xf32>
    %229 = vector.extract_strided_slice %228 {offsets = [0, 0], sizes = [8, 128], strides = [1, 1]} : vector<8x512xf32> to vector<8x128xf32>
    %230 = arith.negf %229 : vector<8x128xf32>
    %231 = math.exp %230 : vector<8x128xf32>
    %cst_42 = arith.constant 1.000000e+00 : f32
    %232 = vector.broadcast %cst_42 : f32 to vector<8x128xf32>
    %233 = arith.addf %232, %231 : vector<8x128xf32>
    %234 = arith.divf %232, %233 : vector<8x128xf32>
    %235 = vector.extract_strided_slice %228 {offsets = [0, 128], sizes = [8, 128], strides = [1, 1]} : vector<8x512xf32> to vector<8x128xf32>
    %236 = arith.negf %235 : vector<8x128xf32>
    %237 = math.exp %236 : vector<8x128xf32>
    %cst_43 = arith.constant 1.000000e+00 : f32
    %238 = vector.broadcast %cst_43 : f32 to vector<8x128xf32>
    %239 = arith.addf %238, %237 : vector<8x128xf32>
    %240 = arith.divf %238, %239 : vector<8x128xf32>
    %241 = vector.extract_strided_slice %228 {offsets = [0, 256], sizes = [8, 128], strides = [1, 1]} : vector<8x512xf32> to vector<8x128xf32>
    %242 = math.tanh %241 : vector<8x128xf32>
    %243 = vector.extract_strided_slice %228 {offsets = [0, 384], sizes = [8, 128], strides = [1, 1]} : vector<8x512xf32> to vector<8x128xf32>
    %244 = arith.negf %243 : vector<8x128xf32>
    %245 = math.exp %244 : vector<8x128xf32>
    %cst_44 = arith.constant 1.000000e+00 : f32
    %246 = vector.broadcast %cst_44 : f32 to vector<8x128xf32>
    %247 = arith.addf %246, %245 : vector<8x128xf32>
    %248 = arith.divf %246, %247 : vector<8x128xf32>
    %249 = arith.mulf %240, %221 : vector<8x128xf32>
    %250 = arith.mulf %234, %242 : vector<8x128xf32>
    %251 = arith.addf %249, %250 : vector<8x128xf32>
    %252 = math.tanh %251 : vector<8x128xf32>
    %253 = arith.mulf %248, %252 : vector<8x128xf32>
    %c0_45 = arith.constant 0 : index
    %c0_46 = arith.constant 0 : index
    %254 = vector.load %arg8[%c0_45, %c0_46] : memref<8x128xf32, #tpu.memory_space<vmem>>, vector<8x128xf32>
    tpu.vector_store %arg8[%c0_45, %c0_46], %253 {strides = array<i32>} : memref<8x128xf32, #tpu.memory_space<vmem>>, vector<8x128xf32>,
    %c0_47 = arith.constant 0 : index
    %c0_48 = arith.constant 0 : index
    %255 = vector.load %arg9[%c0_47, %c0_48] : memref<8x128xf32, #tpu.memory_space<vmem>>, vector<8x128xf32>
    tpu.vector_store %arg9[%c0_47, %c0_48], %251 {strides = array<i32>} : memref<8x128xf32, #tpu.memory_space<vmem>>, vector<8x128xf32>,
    %c0_i32_49 = arith.constant 0 : i32
    %256 = arith.cmpi eq, %arg0, %c0_i32_49 : i32
    %257 = arith.extui %256 : i1 to i32
    %c0_i32_50 = arith.constant 0 : i32
    %258 = arith.cmpi ne, %257, %c0_i32_50 : i32
    scf.if %258 {
      %c0_51 = arith.constant 0 : index
      %c0_52 = arith.constant 0 : index
      %259 = vector.load %arg5[%c0_51, %c0_52] : memref<128x128xf32, #tpu.memory_space<vmem>>, vector<128x128xf32>
      %cst_53 = arith.constant dense<0.000000e+00> : vector<8x128xf32>
      %260 = tpu.matmul %253, %259, %cst_53 {dimension_numbers = #tpu.dot_dimension_numbers<[1], [0], [0], [1], [0, 0, 1, 1], [], []>} : vector<8x128xf32>, vector<128x128xf32>, vector<8x128xf32> -> vector<8x128xf32>
      %c0_54 = arith.constant 0 : index
      %c0_55 = arith.constant 0 : index
      %261 = vector.load %arg6[%c0_54, %c0_55] : memref<1x128xf32, #tpu.memory_space<vmem>>, vector<1x128xf32>
      %262 = vector.broadcast %261 : vector<1x128xf32> to vector<8x128xf32>
      %263 = arith.addf %260, %262 : vector<8x128xf32>
      %c0_56 = arith.constant 0 : index
      %c0_57 = arith.constant 0 : index
      %264 = vector.load %arg7[%c0_56, %c0_57] : memref<8x128xf32, #tpu.memory_space<vmem>>, vector<8x128xf32>
      tpu.vector_store %arg7[%c0_56, %c0_57], %263 {strides = array<i32>} : memref<8x128xf32, #tpu.memory_space<vmem>>, vector<8x128xf32>,
    } else {
    }
    return
  }
  func.func @transform_0(%arg0: i32) -> (i32, i32, i32) {
    %c0_i32 = arith.constant 0 : i32
    %c0_i32_0 = arith.constant 0 : i32
    %c0_i32_1 = arith.constant 0 : i32
    return %c0_i32, %arg0, %c0_i32_0 : i32, i32, i32
  }
  func.func @transform_1(%arg0: i32) -> (i32, i32) {
    %c0_i32 = arith.constant 0 : i32
    %c0_i32_0 = arith.constant 0 : i32
    %c0_i32_1 = arith.constant 0 : i32
    return %c0_i32, %c0_i32_0 : i32, i32
  }
  func.func @transform_2(%arg0: i32) -> (i32, i32) {
    %c0_i32 = arith.constant 0 : i32
    %c0_i32_0 = arith.constant 0 : i32
    %c0_i32_1 = arith.constant 0 : i32
    return %c0_i32, %c0_i32_0 : i32, i32
  }
  func.func @transform_3(%arg0: i32) -> (i32, i32) {
    %c0_i32 = arith.constant 0 : i32
    %c0_i32_0 = arith.constant 0 : i32
    %c0_i32_1 = arith.constant 0 : i32
    return %c0_i32, %c0_i32_0 : i32, i32
  }
  func.func @transform_4(%arg0: i32) -> (i32, i32) {
    %c0_i32 = arith.constant 0 : i32
    %c0_i32_0 = arith.constant 0 : i32
    %c0_i32_1 = arith.constant 0 : i32
    return %c0_i32, %c0_i32_0 : i32, i32
  }
  func.func @transform_5(%arg0: i32) -> (i32, i32) {
    %c0_i32 = arith.constant 0 : i32
    %c0_i32_0 = arith.constant 0 : i32
    %c0_i32_1 = arith.constant 0 : i32
    return %c0_i32, %c0_i32_0 : i32, i32
  }
  func.func @transform_6(%arg0: i32) -> (i32, i32) {
    %c0_i32 = arith.constant 0 : i32
    %c0_i32_0 = arith.constant 0 : i32
    %c0_i32_1 = arith.constant 0 : i32
    return %c0_i32, %c0_i32_0 : i32, i32
  }
}

</mosaic_0001>

<llo_original>
// kernel: tpu_custom_call.1
$region0: #{tpu_custom_call.1}
  #allocation0 [shape = 'u32[]', space=smem, size = 0x4, offset = 0x4, fixed_abs, tag = 'smem constant byte address 0x4 - core index']
  #allocation1 [shape = 'u32[144,128]{1,0:T(1,128)}', space=vmem, size = 0x12000, scoped, tag = 'internal scratch']
  #allocation2 [shape = 'f32[8,128]{1,0:T(8,128)}', space=vmem, size = 0x1000, scoped, tag = 'scratch operand']
  #allocation3 [shape = 'f32[8,128]{1,0:T(8,128)}', space=vmem, size = 0x1000, scoped, tag = 'scratch operand']
  %s0 = inlined_call_operand.hbm [shape: f32[8,8,16], index: 0, kind: input, shape index: {}]
  %s1 = inlined_call_operand.hbm [shape: f32[16,512], index: 1, kind: input, shape index: {}]
  %s2 = inlined_call_operand.hbm [shape: f32[128,512], index: 2, kind: input, shape index: {}]
  %s3 = inlined_call_operand.vmem [shape: f32[1,512], index: 3, kind: input, shape index: {}]
  %s4 = inlined_call_operand.hbm [shape: f32[128,128], index: 4, kind: input, shape index: {}]
  %s5 = inlined_call_operand.vmem [shape: f32[1,128], index: 5, kind: input, shape index: {}]
  %s6 = inlined_call_operand.hbm [shape: f32[8,128], index: 6, kind: output, shape index: {}]
  %s7 = sld [smem:[#allocation0]]
  $region58: #{tpu_custom_call.1} parent=0
    _
  %s9 = ssub.s32 1, %s7
  %s10 = scalar_select 0, %s9, %s7
  $region1: #{tpu_custom_call.1} parent=0
    #allocation4 [shape = 'u8[32768]{0}', space=vmem, size = 0x8000, scoped, tag = 'input window, operand 0, single buffered']
    #allocation5 [shape = 's32[1]{0}', space=sflag, size = 0x4, scoped, tag = 'scoped memory for tpu_custom_call.1']
    #allocation6 [shape = 's32[1]{0}', space=sflag, size = 0x4, scoped, tag = 'scoped memory for tpu_custom_call.1']
    #allocation7 [shape = 'u8[32768]{0}', space=vmem, size = 0x8000, scoped, tag = 'input window, operand 1, single buffered']
    #allocation8 [shape = 's32[1]{0}', space=sflag, size = 0x4, scoped, tag = 'scoped memory for tpu_custom_call.1']
    #allocation9 [shape = 'u8[262144]{0}', space=vmem, size = 0x40000, scoped, tag = 'input window, operand 2, single buffered']
    #allocation10 [shape = 'u8[65536]{0}', space=vmem, size = 0x10000, scoped, tag = 'input window, operand 4, single buffered']
    #allocation11 [shape = 's32[1]{0}', space=sflag, size = 0x4, scoped, tag = 'scoped memory for tpu_custom_call.1']
    #allocation12 [shape = 'u8[4096]{0}', space=vmem, size = 0x1000, scoped, tag = 'output window, operand 0, single buffered']
    %11 = vsyncpa [#allocation5], 0
    %12 = vsyncpa [#allocation8], 0
    %13 = vsyncpa [#allocation11], 0
    %14 = vsyncpa [#allocation6], 0
    // Predicated region
    $region2: #{tpu_custom_call.1} parent=1 // pred_check
      _
    $region3: #{tpu_custom_call.1} parent=1 // pred_check_branch
      %16 = sbr.rel (0) target = $region5
    $region4: #{tpu_custom_call.1} parent=1 // pred_region
      %s18 = ssub.s32 1024, 1024
      %19 = vsyncadd [#allocation5], %s18
      %s20 = sshll.u32 [#allocation4], 4
      %s21 = int_to_ptr.vmem [resolvable:$true] %s20
      %26 = dma.hbm_to_vmem [thread:$0]  %s0, 1024, %s21, [#allocation5], 128, 128, 8
    $region5: #{tpu_custom_call.1} parent=1 // pred_fallthru
      _
    // Predicated region
    $region6: #{tpu_custom_call.1} parent=1 // pred_check
      _
    $region7: #{tpu_custom_call.1} parent=1 // pred_check_branch
      %28 = sbr.rel (0) target = $region9
    $region8: #{tpu_custom_call.1} parent=1 // pred_region
      %s30 = ssub.s32 1024, 1024
      %31 = vsyncadd [#allocation8], %s30
      %s32 = sshll.u32 [#allocation7], 4
      %s33 = int_to_ptr.vmem [resolvable:$true] %s32
      %38 = dma.hbm_to_vmem [thread:$0]  %s1, 1024, %s33, [#allocation8], 512, 512, 32
    $region9: #{tpu_custom_call.1} parent=1 // pred_fallthru
      _
    // Predicated region
    $region10: #{tpu_custom_call.1} parent=1 // pred_check
      _
    $region11: #{tpu_custom_call.1} parent=1 // pred_check_branch
      %40 = sbr.rel (0) target = $region13
    $region12: #{tpu_custom_call.1} parent=1 // pred_region
      %s42 = ssub.s32 8192, 8192
      %43 = vsyncadd [#allocation8], %s42
      %s44 = sshll.u32 [#allocation9], 4
      %s45 = int_to_ptr.vmem [resolvable:$true] %s44
      %50 = dma.hbm_to_vmem [thread:$0]  %s2, 8192, %s45, [#allocation8], 512, 512, 32
    $region13: #{tpu_custom_call.1} parent=1 // pred_fallthru
      _
    // Predicated region
    $region14: #{tpu_custom_call.1} parent=1 // pred_check
      _
    $region15: #{tpu_custom_call.1} parent=1 // pred_check_branch
      %52 = sbr.rel (0) target = $region17
    $region16: #{tpu_custom_call.1} parent=1 // pred_region
      _
    $region17: #{tpu_custom_call.1} parent=1 // pred_fallthru
      _
    // Predicated region
    $region18: #{tpu_custom_call.1} parent=1 // pred_check
      _
    $region19: #{tpu_custom_call.1} parent=1 // pred_check_branch
      %54 = sbr.rel (0) target = $region21
    $region20: #{tpu_custom_call.1} parent=1 // pred_region
      %s56 = ssub.s32 2048, 2048
      %57 = vsyncadd [#allocation11], %s56
      %s58 = sshll.u32 [#allocation10], 4
      %s59 = int_to_ptr.vmem [resolvable:$true] %s58
      %64 = dma.hbm_to_vmem [thread:$0]  %s4, 2048, %s59, [#allocation11], 128, 128, 8
    $region21: #{tpu_custom_call.1} parent=1 // pred_fallthru
      _
    // Predicated region
    $region22: #{tpu_custom_call.1} parent=1 // pred_check
      _
    $region23: #{tpu_custom_call.1} parent=1 // pred_check_branch
      %66 = sbr.rel (0) target = $region25
    $region24: #{tpu_custom_call.1} parent=1 // pred_region
      _
    $region25: #{tpu_custom_call.1} parent=1 // pred_fallthru
      _
    // Predicated region
    $region26: #{tpu_custom_call.1} parent=1 // pred_check
      _
    $region27: #{tpu_custom_call.1} parent=1 // pred_check_branch
      %68 = sbr.rel (0) target = $region29
    $region28: #{tpu_custom_call.1} parent=1 // pred_region
      %69 = dma.done [#allocation5], 1024
    $region29: #{tpu_custom_call.1} parent=1 // pred_fallthru
      _
    // Predicated region
    $region30: #{tpu_custom_call.1} parent=1 // pred_check
      _
    $region31: #{tpu_custom_call.1} parent=1 // pred_check_branch
      %71 = sbr.rel (0) target = $region33
    $region32: #{tpu_custom_call.1} parent=1 // pred_region
      %72 = dma.done [#allocation8], 1024
    $region33: #{tpu_custom_call.1} parent=1 // pred_fallthru
      _
    // Predicated region
    $region34: #{tpu_custom_call.1} parent=1 // pred_check
      _
    $region35: #{tpu_custom_call.1} parent=1 // pred_check_branch
      %74 = sbr.rel (0) target = $region37
    $region36: #{tpu_custom_call.1} parent=1 // pred_region
      %75 = dma.done [#allocation8], 8192
    $region37: #{tpu_custom_call.1} parent=1 // pred_fallthru
      _
    // Predicated region
    $region38: #{tpu_custom_call.1} parent=1 // pred_check
      _
    $region39: #{tpu_custom_call.1} parent=1 // pred_check_branch
      %77 = sbr.rel (0) target = $region41
    $region40: #{tpu_custom_call.1} parent=1 // pred_region
      %78 = dma.done [#allocation11], 2048
    $region41: #{tpu_custom_call.1} parent=1 // pred_fallthru
      _
    %p79 = scmp.eq.s32.totalorder 0, 0
    // Predicated region
    $region42: #{tpu_custom_call.1} parent=1 // pred_check
      %p80 = pneg %p79
    $region43: #{tpu_custom_call.1} parent=1 // pred_check_branch
      %82 = sbr.rel (%p80) target = $region45
    $region44: #{tpu_custom_call.1} parent=1 // pred_region
      %83 = vst [vmem:[#allocation2] sm:$0xff] 0.0
      %84 = vst [vmem:[#allocation3] sm:$0xff] 0.0
    $region45: #{tpu_custom_call.1} parent=1 // pred_fallthru
      _
    %v85 = vld [vmem:[#allocation4] sm:$0xff]
    %v86 = vld [vmem:[#allocation4 + $0x8] sm:$0xff]
    %v87 = vld [vmem:[#allocation4 + $0x10] sm:$0xff]
    %v88 = vld [vmem:[#allocation4 + $0x18] sm:$0xff]
    %v89 = vld [vmem:[#allocation4 + $0x20] sm:$0xff]
    %v90 = vld [vmem:[#allocation4 + $0x28] sm:$0xff]
    %v91 = vld [vmem:[#allocation4 + $0x30] sm:$0xff]
    %v92 = vld [vmem:[#allocation4 + $0x38] sm:$0xff]
    %v93 = vld [vmem:[#allocation7] sm:$0xff]
    %v94 = vld [vmem:[#allocation7 + $0x8] sm:$0xff]
    %v95 = vld [vmem:[#allocation7 + $0x10] sm:$0xff]
    %v96 = vld [vmem:[#allocation7 + $0x18] sm:$0xff]
    %v97 = vld [vmem:[#allocation7 + $0x20] sm:$0xff]
    %v98 = vld [vmem:[#allocation7 + $0x28] sm:$0xff]
    %v99 = vld [vmem:[#allocation7 + $0x30] sm:$0xff]
    %v100 = vld [vmem:[#allocation7 + $0x38] sm:$0xff]
    %vm101 = vcmask 130048
    %v103 = vsel %vm101, %v85, 0
    %v106 = vsel %vm101, %v86, 0
    %v109 = vsel %vm101, %v87, 0
    %v112 = vsel %vm101, %v88, 0
    %v115 = vsel %vm101, %v89, 0
    %v118 = vsel %vm101, %v90, 0
    %v121 = vsel %vm101, %v91, 0
    %v124 = vsel %vm101, %v92, 0
    %126 = vmatprep.subr.mxu0 %v94
    %127 = vmatpush1.msra.mxu0 %v93
    %128 = vmatprep.subr.mxu0 %v98
    %129 = vmatpush1.msra.mxu0 %v97
    %130 = vmatprep.subr.mxu0 0.0
    %131 = vmatpush1.msra.mxu0 0.0
    %132 = vmatprep.subr.mxu0 0.0
    %133 = vmatpush1.msra.mxu0 0.0
    %134 = vmatprep.subr.mxu0 0.0
    %135 = vmatpush1.msra.mxu0 0.0
    %136 = vmatprep.subr.mxu0 0.0
    %137 = vmatpush1.msra.mxu0 0.0
    %138 = vmatprep.subr.mxu0 0.0
    %139 = vmatpush1.msra.mxu0 0.0
    %140 = vmatprep.subr.mxu0 0.0
    %141 = vmatpush1.msra.mxu0 0.0
    %142 = vmatprep.subr.mxu0 0.0
    %143 = vmatpush1.msra.mxu0 0.0
    %144 = vmatprep.subr.mxu0 0.0
    %145 = vmatpush1.msra.mxu0 0.0
    %146 = vmatprep.subr.mxu0 0.0
    %147 = vmatpush1.msra.mxu0 0.0
    %148 = vmatprep.subr.mxu0 0.0
    %149 = vmatpush1.msra.mxu0 0.0
    %150 = vmatprep.subr.mxu0 0.0
    %151 = vmatpush1.msra.mxu0 0.0
    %152 = vmatprep.subr.mxu0 0.0
    %153 = vmatpush1.msra.mxu0 0.0
    %154 = vmatprep.subr.mxu0 0.0
    %155 = vmatpush1.msra.mxu0 0.0
    %156 = vmatprep.subr.mxu0 0.0
    %157 = vmatpush1.msra.mxu0 0.0
    %158 = vmatprep.subr.mxu0 0.0
    %159 = vmatpush1.msra.mxu0 0.0
    %160 = vmatprep.subr.mxu0 0.0
    %161 = vmatpush1.msra.mxu0 0.0
    %162 = vmatprep.subr.mxu0 0.0
    %163 = vmatpush1.msra.mxu0 0.0
    %164 = vmatprep.subr.mxu0 0.0
    %165 = vmatpush1.msra.mxu0 0.0
    %166 = vmatprep.subr.mxu0 0.0
    %167 = vmatpush1.msra.mxu0 0.0
    %168 = vmatprep.subr.mxu0 0.0
    %169 = vmatpush1.msra.mxu0 0.0
    %170 = vmatprep.subr.mxu0 0.0
    %171 = vmatpush1.msra.mxu0 0.0
    %172 = vmatprep.subr.mxu0 0.0
    %173 = vmatpush1.msra.mxu0 0.0
    %174 = vmatprep.subr.mxu0 0.0
    %175 = vmatpush1.msra.mxu0 0.0
    %176 = vmatprep.subr.mxu0 0.0
    %177 = vmatpush1.msra.mxu0 0.0
    %178 = vmatprep.subr.mxu0 0.0
    %179 = vmatpush1.msra.mxu0 0.0
    %180 = vmatprep.subr.mxu0 0.0
    %181 = vmatpush1.msra.mxu0 0.0
    %182 = vmatprep.subr.mxu0 0.0
    %183 = vmatpush1.msra.mxu0 0.0
    %184 = vmatprep.subr.mxu0 0.0
    %185 = vmatpush1.msra.mxu0 0.0
    %186 = vmatprep.subr.mxu0 0.0
    %187 = vmatpush1.msra.mxu0 0.0
    %188 = vmatprep.subr.mxu0 0.0
    %189 = vmatpush1.msra.mxu0 0.0
    %190 = vmatprep.mubr.f32.mxu0 0.0
    %191 = vmatmul.mubr.f32.gmra.mrb[0].mxu0 %v103
    %v192 = vpop.f32.mrb[0].mxu0
    %v193 = vadd.f32 0.0, %v192
    %v194 = vpop.f32.mrb[0].mxu0
    %v195 = vadd.f32 0.0, %v194
    %196 = vmatprep.mubr.f32.mxu0 0.0
    %197 = vmatmul.mubr.f32.gmra.mrb[0].mxu0 %v106
    %v198 = vpop.f32.mrb[0].mxu0
    %v199 = vadd.f32 0.0, %v198
    %v200 = vpop.f32.mrb[0].mxu0
    %v201 = vadd.f32 0.0, %v200
    %202 = vmatprep.mubr.f32.mxu0 0.0
    %203 = vmatmul.mubr.f32.gmra.mrb[0].mxu0 %v109
    %v204 = vpop.f32.mrb[0].mxu0
    %v205 = vadd.f32 0.0, %v204
    %v206 = vpop.f32.mrb[0].mxu0
    %v207 = vadd.f32 0.0, %v206
    %208 = vmatprep.mubr.f32.mxu0 0.0
    %209 = vmatmul.mubr.f32.gmra.mrb[0].mxu0 %v112
    %v210 = vpop.f32.mrb[0].mxu0
    %v211 = vadd.f32 0.0, %v210
    %v212 = vpop.f32.mrb[0].mxu0
    %v213 = vadd.f32 0.0, %v212
    %214 = vmatprep.mubr.f32.mxu0 0.0
    %215 = vmatmul.mubr.f32.gmra.mrb[0].mxu0 %v115
    %v216 = vpop.f32.mrb[0].mxu0
    %v217 = vadd.f32 0.0, %v216
    %v218 = vpop.f32.mrb[0].mxu0
    %v219 = vadd.f32 0.0, %v218
    %220 = vmatprep.mubr.f32.mxu0 0.0
    %221 = vmatmul.mubr.f32.gmra.mrb[0].mxu0 %v118
    %v222 = vpop.f32.mrb[0].mxu0
    %v223 = vadd.f32 0.0, %v222
    %v224 = vpop.f32.mrb[0].mxu0
    %v225 = vadd.f32 0.0, %v224
    %226 = vmatprep.mubr.f32.mxu0 0.0
    %227 = vmatmul.mubr.f32.gmra.mrb[0].mxu0 %v121
    %v228 = vpop.f32.mrb[0].mxu0
    %v229 = vadd.f32 0.0, %v228
    %v230 = vpop.f32.mrb[0].mxu0
    %v231 = vadd.f32 0.0, %v230
    %232 = vmatprep.mubr.f32.mxu0 0.0
    %233 = vmatmul.mubr.f32.gmra.mrb[0].mxu0 %v124
    %v234 = vpop.f32.mrb[0].mxu0
    %v235 = vadd.f32 0.0, %v234
    %v236 = vpop.f32.mrb[0].mxu0
    %v237 = vadd.f32 0.0, %v236
    %238 = vdwg.mxu0
    %239 = vmatprep.subr.mxu0 %v96
    %240 = vmatpush1.msra.mxu0 %v95
    %241 = vmatprep.subr.mxu0 %v100
    %242 = vmatpush1.msra.mxu0 %v99
    %243 = vmatprep.subr.mxu0 0.0
    %244 = vmatpush1.msra.mxu0 0.0
    %245 = vmatprep.subr.mxu0 0.0
    %246 = vmatpush1.msra.mxu0 0.0
    %247 = vmatprep.subr.mxu0 0.0
    %248 = vmatpush1.msra.mxu0 0.0
    %249 = vmatprep.subr.mxu0 0.0
    %250 = vmatpush1.msra.mxu0 0.0
    %251 = vmatprep.subr.mxu0 0.0
    %252 = vmatpush1.msra.mxu0 0.0
    %253 = vmatprep.subr.mxu0 0.0
    %254 = vmatpush1.msra.mxu0 0.0
    %255 = vmatprep.subr.mxu0 0.0
    %256 = vmatpush1.msra.mxu0 0.0
    %257 = vmatprep.subr.mxu0 0.0
    %258 = vmatpush1.msra.mxu0 0.0
    %259 = vmatprep.subr.mxu0 0.0
    %260 = vmatpush1.msra.mxu0 0.0
    %261 = vmatprep.subr.mxu0 0.0
    %262 = vmatpush1.msra.mxu0 0.0
    %263 = vmatprep.subr.mxu0 0.0
    %264 = vmatpush1.msra.mxu0 0.0
    %265 = vmatprep.subr.mxu0 0.0
    %266 = vmatpush1.msra.mxu0 0.0
    %267 = vmatprep.subr.mxu0 0.0
    %268 = vmatpush1.msra.mxu0 0.0
    %269 = vmatprep.subr.mxu0 0.0
    %270 = vmatpush1.msra.mxu0 0.0
    %271 = vmatprep.subr.mxu0 0.0
    %272 = vmatpush1.msra.mxu0 0.0
    %273 = vmatprep.subr.mxu0 0.0
    %274 = vmatpush1.msra.mxu0 0.0
    %275 = vmatprep.subr.mxu0 0.0
    %276 = vmatpush1.msra.mxu0 0.0
    %277 = vmatprep.subr.mxu0 0.0
    %278 = vmatpush1.msra.mxu0 0.0
    %279 = vmatprep.subr.mxu0 0.0
    %280 = vmatpush1.msra.mxu0 0.0
    %281 = vmatprep.subr.mxu0 0.0
    %282 = vmatpush1.msra.mxu0 0.0
    %283 = vmatprep.subr.mxu0 0.0
    %284 = vmatpush1.msra.mxu0 0.0
    %285 = vmatprep.subr.mxu0 0.0
    %286 = vmatpush1.msra.mxu0 0.0
    %287 = vmatprep.subr.mxu0 0.0
    %288 = vmatpush1.msra.mxu0 0.0
    %289 = vmatprep.subr.mxu0 0.0
    %290 = vmatpush1.msra.mxu0 0.0
    %291 = vmatprep.subr.mxu0 0.0
    %292 = vmatpush1.msra.mxu0 0.0
    %293 = vmatprep.subr.mxu0 0.0
    %294 = vmatpush1.msra.mxu0 0.0
    %295 = vmatprep.subr.mxu0 0.0
    %296 = vmatpush1.msra.mxu0 0.0
    %297 = vmatprep.subr.mxu0 0.0
    %298 = vmatpush1.msra.mxu0 0.0
    %299 = vmatprep.subr.mxu0 0.0
    %300 = vmatpush1.msra.mxu0 0.0
    %301 = vmatprep.subr.mxu0 0.0
    %302 = vmatpush1.msra.mxu0 0.0
    %303 = vmatprep.mubr.f32.mxu0 0.0
    %304 = vmatmul.mubr.f32.gmra.mrb[0].mxu0 %v103
    %v305 = vpop.f32.mrb[0].mxu0
    %v306 = vadd.f32 0.0, %v305
    %v307 = vpop.f32.mrb[0].mxu0
    %v308 = vadd.f32 0.0, %v307
    %309 = vmatprep.mubr.f32.mxu0 0.0
    %310 = vmatmul.mubr.f32.gmra.mrb[0].mxu0 %v106
    %v311 = vpop.f32.mrb[0].mxu0
    %v312 = vadd.f32 0.0, %v311
    %v313 = vpop.f32.mrb[0].mxu0
    %v314 = vadd.f32 0.0, %v313
    %315 = vmatprep.mubr.f32.mxu0 0.0
    %316 = vmatmul.mubr.f32.gmra.mrb[0].mxu0 %v109
    %v317 = vpop.f32.mrb[0].mxu0
    %v318 = vadd.f32 0.0, %v317
    %v319 = vpop.f32.mrb[0].mxu0
    %v320 = vadd.f32 0.0, %v319
    %321 = vmatprep.mubr.f32.mxu0 0.0
    %322 = vmatmul.mubr.f32.gmra.mrb[0].mxu0 %v112
    %v323 = vpop.f32.mrb[0].mxu0
    %v324 = vadd.f32 0.0, %v323
    %v325 = vpop.f32.mrb[0].mxu0
    %v326 = vadd.f32 0.0, %v325
    %327 = vmatprep.mubr.f32.mxu0 0.0
    %328 = vmatmul.mubr.f32.gmra.mrb[0].mxu0 %v115
    %v329 = vpop.f32.mrb[0].mxu0
    %v330 = vadd.f32 0.0, %v329
    %v331 = vpop.f32.mrb[0].mxu0
    %v332 = vadd.f32 0.0, %v331
    %333 = vmatprep.mubr.f32.mxu0 0.0
    %334 = vmatmul.mubr.f32.gmra.mrb[0].mxu0 %v118
    %v335 = vpop.f32.mrb[0].mxu0
    %v336 = vadd.f32 0.0, %v335
    %v337 = vpop.f32.mrb[0].mxu0
    %v338 = vadd.f32 0.0, %v337
    %339 = vmatprep.mubr.f32.mxu0 0.0
    %340 = vmatmul.mubr.f32.gmra.mrb[0].mxu0 %v121
    %v341 = vpop.f32.mrb[0].mxu0
    %v342 = vadd.f32 0.0, %v341
    %v343 = vpop.f32.mrb[0].mxu0
    %v344 = vadd.f32 0.0, %v343
    %345 = vmatprep.mubr.f32.mxu0 0.0
    %346 = vmatmul.mubr.f32.gmra.mrb[0].mxu0 %v124
    %v347 = vpop.f32.mrb[0].mxu0
    %v348 = vadd.f32 0.0, %v347
    %v349 = vpop.f32.mrb[0].mxu0
    %v350 = vadd.f32 0.0, %v349
    %351 = vdwg.mxu0
    %v352 = vld [vmem:[#allocation9] sm:$0xff]
    %v353 = vld [vmem:[#allocation9 + $0x8] sm:$0xff]
    %v354 = vld [vmem:[#allocation9 + $0x10] sm:$0xff]
    %v355 = vld [vmem:[#allocation9 + $0x18] sm:$0xff]
    %v356 = vld [vmem:[#allocation9 + $0x20] sm:$0xff]
    %v357 = vld [vmem:[#allocation9 + $0x28] sm:$0xff]
    %v358 = vld [vmem:[#allocation9 + $0x30] sm:$0xff]
    %v359 = vld [vmem:[#allocation9 + $0x38] sm:$0xff]
    %v360 = vld [vmem:[#allocation9 + $0x40] sm:$0xff]
    %v361 = vld [vmem:[#allocation9 + $0x48] sm:$0xff]
    %v362 = vld [vmem:[#allocation9 + $0x50] sm:$0xff]
    %v363 = vld [vmem:[#allocation9 + $0x58] sm:$0xff]
    %v364 = vld [vmem:[#allocation9 + $0x60] sm:$0xff]
    %v365 = vld [vmem:[#allocation9 + $0x68] sm:$0xff]
    %v366 = vld [vmem:[#allocation9 + $0x70] sm:$0xff]
    %v367 = vld [vmem:[#allocation9 + $0x78] sm:$0xff]
    %v368 = vld [vmem:[#allocation9 + $0x80] sm:$0xff]
    %v369 = vld [vmem:[#allocation9 + $0x88] sm:$0xff]
    %v370 = vld [vmem:[#allocation9 + $0x90] sm:$0xff]
    %v371 = vld [vmem:[#allocation9 + $0x98] sm:$0xff]
    %v372 = vld [vmem:[#allocation9 + $0xa0] sm:$0xff]
    %v373 = vld [vmem:[#allocation9 + $0xa8] sm:$0xff]
    %v374 = vld [vmem:[#allocation9 + $0xb0] sm:$0xff]
    %v375 = vld [vmem:[#allocation9 + $0xb8] sm:$0xff]
    %v376 = vld [vmem:[#allocation9 + $0xc0] sm:$0xff]
    %v377 = vld [vmem:[#allocation9 + $0xc8] sm:$0xff]
    %v378 = vld [vmem:[#allocation9 + $0xd0] sm:$0xff]
    %v379 = vld [vmem:[#allocation9 + $0xd8] sm:$0xff]
    %v380 = vld [vmem:[#allocation9 + $0xe0] sm:$0xff]
    %v381 = vld [vmem:[#allocation9 + $0xe8] sm:$0xff]
    %v382 = vld [vmem:[#allocation9 + $0xf0] sm:$0xff]
    %v383 = vld [vmem:[#allocation9 + $0xf8] sm:$0xff]
    %v384 = vld [vmem:[#allocation9 + $0x100] sm:$0xff]
    %v385 = vld [vmem:[#allocation9 + $0x108] sm:$0xff]
    %v386 = vld [vmem:[#allocation9 + $0x110] sm:$0xff]
    %v387 = vld [vmem:[#allocation9 + $0x118] sm:$0xff]
    %v388 = vld [vmem:[#allocation9 + $0x120] sm:$0xff]
    %v389 = vld [vmem:[#allocation9 + $0x128] sm:$0xff]
    %v390 = vld [vmem:[#allocation9 + $0x130] sm:$0xff]
    %v391 = vld [vmem:[#allocation9 + $0x138] sm:$0xff]
    %v392 = vld [vmem:[#allocation9 + $0x140] sm:$0xff]
    %v393 = vld [vmem:[#allocation9 + $0x148] sm:$0xff]
    %v394 = vld [vmem:[#allocation9 + $0x150] sm:$0xff]
    %v395 = vld [vmem:[#allocation9 + $0x158] sm:$0xff]
    %v396 = vld [vmem:[#allocation9 + $0x160] sm:$0xff]
    %v397 = vld [vmem:[#allocation9 + $0x168] sm:$0xff]
    %v398 = vld [vmem:[#allocation9 + $0x170] sm:$0xff]
    %v399 = vld [vmem:[#allocation9 + $0x178] sm:$0xff]
    %v400 = vld [vmem:[#allocation9 + $0x180] sm:$0xff]
    %v401 = vld [vmem:[#allocation9 + $0x188] sm:$0xff]
    %v402 = vld [vmem:[#allocation9 + $0x190] sm:$0xff]
    %v403 = vld [vmem:[#allocation9 + $0x198] sm:$0xff]
    %v404 = vld [vmem:[#allocation9 + $0x1a0] sm:$0xff]
    %v405 = vld [vmem:[#allocation9 + $0x1a8] sm:$0xff]
    %v406 = vld [vmem:[#allocation9 + $0x1b0] sm:$0xff]
    %v407 = vld [vmem:[#allocation9 + $0x1b8] sm:$0xff]
    %v408 = vld [vmem:[#allocation9 + $0x1c0] sm:$0xff]
    %v409 = vld [vmem:[#allocation9 + $0x1c8] sm:$0xff]
    %v410 = vld [vmem:[#allocation9 + $0x1d0] sm:$0xff]
    %v411 = vld [vmem:[#allocation9 + $0x1d8] sm:$0xff]
    %v412 = vld [vmem:[#allocation9 + $0x1e0] sm:$0xff]
    %v413 = vld [vmem:[#allocation9 + $0x1e8] sm:$0xff]
    %v414 = vld [vmem:[#allocation9 + $0x1f0] sm:$0xff]
    %v415 = vld [vmem:[#allocation9 + $0x1f8] sm:$0xff]
    %v416 = vld [vmem:[%s3] sm:$0xf]
    %v418 = vlaneseq
    %v419 = vshrl.u32 %v418, 7
    %v420 = vsub.s32 0, %v419
    %v421 = vrot.slane %v416, %v420
    %v422 = vlaneseq
    %v423 = vshrl.u32 %v422, 7
    %v424 = vsub.s32 1, %v423
    %v425 = vrot.slane %v416, %v424
    %v426 = vlaneseq
    %v427 = vshrl.u32 %v426, 7
    %v428 = vsub.s32 2, %v427
    %v429 = vrot.slane %v416, %v428
    %v430 = vlaneseq
    %v431 = vshrl.u32 %v430, 7
    %v432 = vsub.s32 3, %v431
    %v433 = vrot.slane %v416, %v432
    %v438 = vld [vmem:[#allocation2] sm:$0xff]
    %v439 = vld [vmem:[#allocation3] sm:$0xff]
    %440 = vmatprep.subr.mxu0 %v353
    %441 = vmatpush1.msra.mxu0 %v352
    %442 = vmatprep.subr.mxu0 %v357
    %443 = vmatpush1.msra.mxu0 %v356
    %444 = vmatprep.subr.mxu0 %v361
    %445 = vmatpush1.msra.mxu0 %v360
    %446 = vmatprep.subr.mxu0 %v365
    %447 = vmatpush1.msra.mxu0 %v364
    %448 = vmatprep.subr.mxu0 %v369
    %449 = vmatpush1.msra.mxu0 %v368
    %450 = vmatprep.subr.mxu0 %v373
    %451 = vmatpush1.msra.mxu0 %v372
    %452 = vmatprep.subr.mxu0 %v377
    %453 = vmatpush1.msra.mxu0 %v376
    %454 = vmatprep.subr.mxu0 %v381
    %455 = vmatpush1.msra.mxu0 %v380
    %456 = vmatprep.subr.mxu0 %v385
    %457 = vmatpush1.msra.mxu0 %v384
    %458 = vmatprep.subr.mxu0 %v389
    %459 = vmatpush1.msra.mxu0 %v388
    %460 = vmatprep.subr.mxu0 %v393
    %461 = vmatpush1.msra.mxu0 %v392
    %462 = vmatprep.subr.mxu0 %v397
    %463 = vmatpush1.msra.mxu0 %v396
    %464 = vmatprep.subr.mxu0 %v401
    %465 = vmatpush1.msra.mxu0 %v400
    %466 = vmatprep.subr.mxu0 %v405
    %467 = vmatpush1.msra.mxu0 %v404
    %468 = vmatprep.subr.mxu0 %v409
    %469 = vmatpush1.msra.mxu0 %v408
    %470 = vmatprep.subr.mxu0 %v413
    %471 = vmatpush1.msra.mxu0 %v412
    %472 = vmatprep.subr.mxu0 0.0
    %473 = vmatpush1.msra.mxu0 0.0
    %474 = vmatprep.subr.mxu0 0.0
    %475 = vmatpush1.msra.mxu0 0.0
    %476 = vmatprep.subr.mxu0 0.0
    %477 = vmatpush1.msra.mxu0 0.0
    %478 = vmatprep.subr.mxu0 0.0
    %479 = vmatpush1.msra.mxu0 0.0
    %480 = vmatprep.subr.mxu0 0.0
    %481 = vmatpush1.msra.mxu0 0.0
    %482 = vmatprep.subr.mxu0 0.0
    %483 = vmatpush1.msra.mxu0 0.0
    %484 = vmatprep.subr.mxu0 0.0
    %485 = vmatpush1.msra.mxu0 0.0
    %486 = vmatprep.subr.mxu0 0.0
    %487 = vmatpush1.msra.mxu0 0.0
    %488 = vmatprep.subr.mxu0 0.0
    %489 = vmatpush1.msra.mxu0 0.0
    %490 = vmatprep.subr.mxu0 0.0
    %491 = vmatpush1.msra.mxu0 0.0
    %492 = vmatprep.subr.mxu0 0.0
    %493 = vmatpush1.msra.mxu0 0.0
    %494 = vmatprep.subr.mxu0 0.0
    %495 = vmatpush1.msra.mxu0 0.0
    %496 = vmatprep.subr.mxu0 0.0
    %497 = vmatpush1.msra.mxu0 0.0
    %498 = vmatprep.subr.mxu0 0.0
    %499 = vmatpush1.msra.mxu0 0.0
    %500 = vmatprep.subr.mxu0 0.0
    %501 = vmatpush1.msra.mxu0 0.0
    %502 = vmatprep.subr.mxu0 0.0
    %503 = vmatpush1.msra.mxu0 0.0
    %504 = vmatprep.mubr.f32.mxu0 0.0
    %505 = vmatmul.mubr.f32.gmra.mrb[0].mxu0 %v438
    %v506 = vpop.f32.mrb[0].mxu0
    %v507 = vadd.f32 0.0, %v506
    %v508 = vpop.f32.mrb[0].mxu0
    %v509 = vadd.f32 0.0, %v508
    %510 = vdwg.mxu0
    %511 = vmatprep.subr.mxu0 %v355
    %512 = vmatpush1.msra.mxu0 %v354
    %513 = vmatprep.subr.mxu0 %v359
    %514 = vmatpush1.msra.mxu0 %v358
    %515 = vmatprep.subr.mxu0 %v363
    %516 = vmatpush1.msra.mxu0 %v362
    %517 = vmatprep.subr.mxu0 %v367
    %518 = vmatpush1.msra.mxu0 %v366
    %519 = vmatprep.subr.mxu0 %v371
    %520 = vmatpush1.msra.mxu0 %v370
    %521 = vmatprep.subr.mxu0 %v375
    %522 = vmatpush1.msra.mxu0 %v374
    %523 = vmatprep.subr.mxu0 %v379
    %524 = vmatpush1.msra.mxu0 %v378
    %525 = vmatprep.subr.mxu0 %v383
    %526 = vmatpush1.msra.mxu0 %v382
    %527 = vmatprep.subr.mxu0 %v387
    %528 = vmatpush1.msra.mxu0 %v386
    %529 = vmatprep.subr.mxu0 %v391
    %530 = vmatpush1.msra.mxu0 %v390
    %531 = vmatprep.subr.mxu0 %v395
    %532 = vmatpush1.msra.mxu0 %v394
    %533 = vmatprep.subr.mxu0 %v399
    %534 = vmatpush1.msra.mxu0 %v398
    %535 = vmatprep.subr.mxu0 %v403
    %536 = vmatpush1.msra.mxu0 %v402
    %537 = vmatprep.subr.mxu0 %v407
    %538 = vmatpush1.msra.mxu0 %v406
    %539 = vmatprep.subr.mxu0 %v411
    %540 = vmatpush1.msra.mxu0 %v410
    %541 = vmatprep.subr.mxu0 %v415
    %542 = vmatpush1.msra.mxu0 %v414
    %543 = vmatprep.subr.mxu0 0.0
    %544 = vmatpush1.msra.mxu0 0.0
    %545 = vmatprep.subr.mxu0 0.0
    %546 = vmatpush1.msra.mxu0 0.0
    %547 = vmatprep.subr.mxu0 0.0
    %548 = vmatpush1.msra.mxu0 0.0
    %549 = vmatprep.subr.mxu0 0.0
    %550 = vmatpush1.msra.mxu0 0.0
    %551 = vmatprep.subr.mxu0 0.0
    %552 = vmatpush1.msra.mxu0 0.0
    %553 = vmatprep.subr.mxu0 0.0
    %554 = vmatpush1.msra.mxu0 0.0
    %555 = vmatprep.subr.mxu0 0.0
    %556 = vmatpush1.msra.mxu0 0.0
    %557 = vmatprep.subr.mxu0 0.0
    %558 = vmatpush1.msra.mxu0 0.0
    %559 = vmatprep.subr.mxu0 0.0
    %560 = vmatpush1.msra.mxu0 0.0
    %561 = vmatprep.subr.mxu0 0.0
    %562 = vmatpush1.msra.mxu0 0.0
    %563 = vmatprep.subr.mxu0 0.0
    %564 = vmatpush1.msra.mxu0 0.0
    %565 = vmatprep.subr.mxu0 0.0
    %566 = vmatpush1.msra.mxu0 0.0
    %567 = vmatprep.subr.mxu0 0.0
    %568 = vmatpush1.msra.mxu0 0.0
    %569 = vmatprep.subr.mxu0 0.0
    %570 = vmatpush1.msra.mxu0 0.0
    %571 = vmatprep.subr.mxu0 0.0
    %572 = vmatpush1.msra.mxu0 0.0
    %573 = vmatprep.subr.mxu0 0.0
    %574 = vmatpush1.msra.mxu0 0.0
    %575 = vmatprep.mubr.f32.mxu0 0.0
    %576 = vmatmul.mubr.f32.gmra.mrb[0].mxu0 %v438
    %v577 = vpop.f32.mrb[0].mxu0
    %v578 = vadd.f32 0.0, %v577
    %v579 = vpop.f32.mrb[0].mxu0
    %v580 = vadd.f32 0.0, %v579
    %581 = vdwg.mxu0
    %v586 = vrot.slane %v507, 1
    %v587 = vrot.slane %v509, 1
    %v588 = vrot.slane %v578, 1
    %v589 = vrot.slane %v580, 1
    %v590 = vrot.slane %v507, 2
    %v591 = vrot.slane %v509, 2
    %v592 = vrot.slane %v578, 2
    %v593 = vrot.slane %v580, 2
    %v594 = vrot.slane %v507, 3
    %v595 = vrot.slane %v509, 3
    %v596 = vrot.slane %v578, 3
    %v597 = vrot.slane %v580, 3
    %v598 = vrot.slane %v507, 4
    %v599 = vrot.slane %v509, 4
    %v600 = vrot.slane %v578, 4
    %v601 = vrot.slane %v580, 4
    %v602 = vrot.slane %v507, 5
    %v603 = vrot.slane %v509, 5
    %v604 = vrot.slane %v578, 5
    %v605 = vrot.slane %v580, 5
    %v606 = vrot.slane %v507, 6
    %v607 = vrot.slane %v509, 6
    %v608 = vrot.slane %v578, 6
    %v609 = vrot.slane %v580, 6
    %v610 = vrot.slane %v507, 7
    %v611 = vrot.slane %v509, 7
    %v612 = vrot.slane %v578, 7
    %v613 = vrot.slane %v580, 7
    %v646 = vadd.f32 %v193, %v507
    %v647 = vadd.f32 %v195, %v509
    %v648 = vadd.f32 %v306, %v578
    %v649 = vadd.f32 %v308, %v580
    %v650 = vadd.f32 %v199, %v586
    %v651 = vadd.f32 %v201, %v587
    %v652 = vadd.f32 %v312, %v588
    %v653 = vadd.f32 %v314, %v589
    %v654 = vadd.f32 %v205, %v590
    %v655 = vadd.f32 %v207, %v591
    %v656 = vadd.f32 %v318, %v592
    %v657 = vadd.f32 %v320, %v593
    %v658 = vadd.f32 %v211, %v594
    %v659 = vadd.f32 %v213, %v595
    %v660 = vadd.f32 %v324, %v596
    %v661 = vadd.f32 %v326, %v597
    %v662 = vadd.f32 %v217, %v598
    %v663 = vadd.f32 %v219, %v599
    %v664 = vadd.f32 %v330, %v600
    %v665 = vadd.f32 %v332, %v601
    %v666 = vadd.f32 %v223, %v602
    %v667 = vadd.f32 %v225, %v603
    %v668 = vadd.f32 %v336, %v604
    %v669 = vadd.f32 %v338, %v605
    %v670 = vadd.f32 %v229, %v606
    %v671 = vadd.f32 %v231, %v607
    %v672 = vadd.f32 %v342, %v608
    %v673 = vadd.f32 %v344, %v609
    %v674 = vadd.f32 %v235, %v610
    %v675 = vadd.f32 %v237, %v611
    %v676 = vadd.f32 %v348, %v612
    %v677 = vadd.f32 %v350, %v613
    %v678 = vadd.f32 %v646, %v421
    %v679 = vadd.f32 %v647, %v425
    %v680 = vadd.f32 %v648, %v429
    %v681 = vadd.f32 %v649, %v433
    %v682 = vadd.f32 %v650, %v421
    %v683 = vadd.f32 %v651, %v425
    %v684 = vadd.f32 %v652, %v429
    %v685 = vadd.f32 %v653, %v433
    %v686 = vadd.f32 %v654, %v421
    %v687 = vadd.f32 %v655, %v425
    %v688 = vadd.f32 %v656, %v429
    %v689 = vadd.f32 %v657, %v433
    %v690 = vadd.f32 %v658, %v421
    %v691 = vadd.f32 %v659, %v425
    %v692 = vadd.f32 %v660, %v429
    %v693 = vadd.f32 %v661, %v433
    %v694 = vadd.f32 %v662, %v421
    %v695 = vadd.f32 %v663, %v425
    %v696 = vadd.f32 %v664, %v429
    %v697 = vadd.f32 %v665, %v433
    %v698 = vadd.f32 %v666, %v421
    %v699 = vadd.f32 %v667, %v425
    %v700 = vadd.f32 %v668, %v429
    %v701 = vadd.f32 %v669, %v433
    %v702 = vadd.f32 %v670, %v421
    %v703 = vadd.f32 %v671, %v425
    %v704 = vadd.f32 %v672, %v429
    %v705 = vadd.f32 %v673, %v433
    %v706 = vadd.f32 %v674, %v421
    %v707 = vadd.f32 %v675, %v425
    %v708 = vadd.f32 %v676, %v429
    %v709 = vadd.f32 %v677, %v433
    %v710 = vxor.u32 %v678, 2147483648
    %v711 = vxor.u32 %v682, 2147483648
    %v712 = vxor.u32 %v686, 2147483648
    %v713 = vxor.u32 %v690, 2147483648
    %v714 = vxor.u32 %v694, 2147483648
    %v715 = vxor.u32 %v698, 2147483648
    %v716 = vxor.u32 %v702, 2147483648
    %v717 = vxor.u32 %v706, 2147483648
    %v718 = vmul.f32 %v710, 1.442695
    %v719 = vpow.pop %v718
    %v720 = vmul.f32 %v711, 1.442695
    %v721 = vpow.pop %v720
    %v722 = vmul.f32 %v712, 1.442695
    %v723 = vpow.pop %v722
    %v724 = vmul.f32 %v713, 1.442695
    %v725 = vpow.pop %v724
    %v726 = vmul.f32 %v714, 1.442695
    %v727 = vpow.pop %v726
    %v728 = vmul.f32 %v715, 1.442695
    %v729 = vpow.pop %v728
    %v730 = vmul.f32 %v716, 1.442695
    %v731 = vpow.pop %v730
    %v732 = vmul.f32 %v717, 1.442695
    %v733 = vpow.pop %v732
    %v734 = vadd.f32 %v719, 1.0
    %v735 = vadd.f32 %v721, 1.0
    %v736 = vadd.f32 %v723, 1.0
    %v737 = vadd.f32 %v725, 1.0
    %v738 = vadd.f32 %v727, 1.0
    %v739 = vadd.f32 %v729, 1.0
    %v740 = vadd.f32 %v731, 1.0
    %v741 = vadd.f32 %v733, 1.0
    %v742 = vrcp.pop %v734
    %v743 = vmul.f32 1.0, %v742
    %v744 = vrcp.pop %v735
    %v745 = vmul.f32 1.0, %v744
    %v746 = vrcp.pop %v736
    %v747 = vmul.f32 1.0, %v746
    %v748 = vrcp.pop %v737
    %v749 = vmul.f32 1.0, %v748
    %v750 = vrcp.pop %v738
    %v751 = vmul.f32 1.0, %v750
    %v752 = vrcp.pop %v739
    %v753 = vmul.f32 1.0, %v752
    %v754 = vrcp.pop %v740
    %v755 = vmul.f32 1.0, %v754
    %v756 = vrcp.pop %v741
    %v757 = vmul.f32 1.0, %v756
    %v758 = vxor.u32 %v679, 2147483648
    %v759 = vxor.u32 %v683, 2147483648
    %v760 = vxor.u32 %v687, 2147483648
    %v761 = vxor.u32 %v691, 2147483648
    %v762 = vxor.u32 %v695, 2147483648
    %v763 = vxor.u32 %v699, 2147483648
    %v764 = vxor.u32 %v703, 2147483648
    %v765 = vxor.u32 %v707, 2147483648
    %v766 = vmul.f32 %v758, 1.442695
    %v767 = vpow.pop %v766
    %v768 = vmul.f32 %v759, 1.442695
    %v769 = vpow.pop %v768
    %v770 = vmul.f32 %v760, 1.442695
    %v771 = vpow.pop %v770
    %v772 = vmul.f32 %v761, 1.442695
    %v773 = vpow.pop %v772
    %v774 = vmul.f32 %v762, 1.442695
    %v775 = vpow.pop %v774
    %v776 = vmul.f32 %v763, 1.442695
    %v777 = vpow.pop %v776
    %v778 = vmul.f32 %v764, 1.442695
    %v779 = vpow.pop %v778
    %v780 = vmul.f32 %v765, 1.442695
    %v781 = vpow.pop %v780
    %v782 = vadd.f32 %v767, 1.0
    %v783 = vadd.f32 %v769, 1.0
    %v784 = vadd.f32 %v771, 1.0
    %v785 = vadd.f32 %v773, 1.0
    %v786 = vadd.f32 %v775, 1.0
    %v787 = vadd.f32 %v777, 1.0
    %v788 = vadd.f32 %v779, 1.0
    %v789 = vadd.f32 %v781, 1.0
    %v790 = vrcp.pop %v782
    %v791 = vmul.f32 1.0, %v790
    %v792 = vrcp.pop %v783
    %v793 = vmul.f32 1.0, %v792
    %v794 = vrcp.pop %v784
    %v795 = vmul.f32 1.0, %v794
    %v796 = vrcp.pop %v785
    %v797 = vmul.f32 1.0, %v796
    %v798 = vrcp.pop %v786
    %v799 = vmul.f32 1.0, %v798
    %v800 = vrcp.pop %v787
    %v801 = vmul.f32 1.0, %v800
    %v802 = vrcp.pop %v788
    %v803 = vmul.f32 1.0, %v802
    %v804 = vrcp.pop %v789
    %v805 = vmul.f32 1.0, %v804
    %v806 = vtanh.pop %v680
    %v807 = vtanh.pop %v684
    %v808 = vtanh.pop %v688
    %v809 = vtanh.pop %v692
    %v810 = vtanh.pop %v696
    %v811 = vtanh.pop %v700
    %v812 = vtanh.pop %v704
    %v813 = vtanh.pop %v708
    %v814 = vxor.u32 %v681, 2147483648
    %v815 = vxor.u32 %v685, 2147483648
    %v816 = vxor.u32 %v689, 2147483648
    %v817 = vxor.u32 %v693, 2147483648
    %v818 = vxor.u32 %v697, 2147483648
    %v819 = vxor.u32 %v701, 2147483648
    %v820 = vxor.u32 %v705, 2147483648
    %v821 = vxor.u32 %v709, 2147483648
    %v822 = vmul.f32 %v814, 1.442695
    %v823 = vpow.pop %v822
    %v824 = vmul.f32 %v815, 1.442695
    %v825 = vpow.pop %v824
    %v826 = vmul.f32 %v816, 1.442695
    %v827 = vpow.pop %v826
    %v828 = vmul.f32 %v817, 1.442695
    %v829 = vpow.pop %v828
    %v830 = vmul.f32 %v818, 1.442695
    %v831 = vpow.pop %v830
    %v832 = vmul.f32 %v819, 1.442695
    %v833 = vpow.pop %v832
    %v834 = vmul.f32 %v820, 1.442695
    %v835 = vpow.pop %v834
    %v836 = vmul.f32 %v821, 1.442695
    %v837 = vpow.pop %v836
    %v838 = vadd.f32 %v823, 1.0
    %v839 = vadd.f32 %v825, 1.0
    %v840 = vadd.f32 %v827, 1.0
    %v841 = vadd.f32 %v829, 1.0
    %v842 = vadd.f32 %v831, 1.0
    %v843 = vadd.f32 %v833, 1.0
    %v844 = vadd.f32 %v835, 1.0
    %v845 = vadd.f32 %v837, 1.0
    %v846 = vrcp.pop %v838
    %v847 = vmul.f32 1.0, %v846
    %v848 = vrcp.pop %v839
    %v849 = vmul.f32 1.0, %v848
    %v850 = vrcp.pop %v840
    %v851 = vmul.f32 1.0, %v850
    %v852 = vrcp.pop %v841
    %v853 = vmul.f32 1.0, %v852
    %v854 = vrcp.pop %v842
    %v855 = vmul.f32 1.0, %v854
    %v856 = vrcp.pop %v843
    %v857 = vmul.f32 1.0, %v856
    %v858 = vrcp.pop %v844
    %v859 = vmul.f32 1.0, %v858
    %v860 = vrcp.pop %v845
    %v861 = vmul.f32 1.0, %v860
    %v863 = vrot.slane %v439, 1
    %v864 = vrot.slane %v439, 2
    %v865 = vrot.slane %v439, 3
    %v866 = vrot.slane %v439, 4
    %v867 = vrot.slane %v439, 5
    %v868 = vrot.slane %v439, 6
    %v869 = vrot.slane %v439, 7
    %v878 = vmul.f32 %v791, %v439
    %v879 = vmul.f32 %v793, %v863
    %v880 = vmul.f32 %v795, %v864
    %v881 = vmul.f32 %v797, %v865
    %v882 = vmul.f32 %v799, %v866
    %v883 = vmul.f32 %v801, %v867
    %v884 = vmul.f32 %v803, %v868
    %v885 = vmul.f32 %v805, %v869
    %v886 = vmul.f32 %v743, %v806
    %v887 = vmul.f32 %v745, %v807
    %v888 = vmul.f32 %v747, %v808
    %v889 = vmul.f32 %v749, %v809
    %v890 = vmul.f32 %v751, %v810
    %v891 = vmul.f32 %v753, %v811
    %v892 = vmul.f32 %v755, %v812
    %v893 = vmul.f32 %v757, %v813
    %v894 = vadd.f32 %v878, %v886
    %v895 = vadd.f32 %v879, %v887
    %v896 = vadd.f32 %v880, %v888
    %v897 = vadd.f32 %v881, %v889
    %v898 = vadd.f32 %v882, %v890
    %v899 = vadd.f32 %v883, %v891
    %v900 = vadd.f32 %v884, %v892
    %v901 = vadd.f32 %v885, %v893
    %v902 = vtanh.pop %v894
    %v903 = vtanh.pop %v895
    %v904 = vtanh.pop %v896
    %v905 = vtanh.pop %v897
    %v906 = vtanh.pop %v898
    %v907 = vtanh.pop %v899
    %v908 = vtanh.pop %v900
    %v909 = vtanh.pop %v901
    %v910 = vmul.f32 %v847, %v902
    %v911 = vmul.f32 %v849, %v903
    %v912 = vmul.f32 %v851, %v904
    %v913 = vmul.f32 %v853, %v905
    %v914 = vmul.f32 %v855, %v906
    %v915 = vmul.f32 %v857, %v907
    %v916 = vmul.f32 %v859, %v908
    %v917 = vmul.f32 %v861, %v909
    %v926 = vrot.slane %v911, 7
    %vm927 = vcmask 1041409
    %v928 = vsel %vm927, %v926, %v910
    %v929 = vrot.slane %v912, 6
    %vm930 = vcmask 1042434
    %v931 = vsel %vm930, %v929, %v928
    %v932 = vrot.slane %v913, 5
    %vm933 = vcmask 1043459
    %v934 = vsel %vm933, %v932, %v931
    %v935 = vrot.slane %v914, 4
    %vm936 = vcmask 1044484
    %v937 = vsel %vm936, %v935, %v934
    %v938 = vrot.slane %v915, 3
    %vm939 = vcmask 1045509
    %v940 = vsel %vm939, %v938, %v937
    %v941 = vrot.slane %v916, 2
    %vm942 = vcmask 1046534
    %v943 = vsel %vm942, %v941, %v940
    %v944 = vrot.slane %v917, 1
    %vm945 = vcmask 1047559
    %v946 = vsel %vm945, %v944, %v943
    %948 = vmatprep.subr.mxu0 %v353
    %949 = vmatpush1.msra.mxu0 %v352
    %950 = vmatprep.subr.mxu0 %v357
    %951 = vmatpush1.msra.mxu0 %v356
    %952 = vmatprep.subr.mxu0 %v361
    %953 = vmatpush1.msra.mxu0 %v360
    %954 = vmatprep.subr.mxu0 %v365
    %955 = vmatpush1.msra.mxu0 %v364
    %956 = vmatprep.subr.mxu0 %v369
    %957 = vmatpush1.msra.mxu0 %v368
    %958 = vmatprep.subr.mxu0 %v373
    %959 = vmatpush1.msra.mxu0 %v372
    %960 = vmatprep.subr.mxu0 %v377
    %961 = vmatpush1.msra.mxu0 %v376
    %962 = vmatprep.subr.mxu0 %v381
    %963 = vmatpush1.msra.mxu0 %v380
    %964 = vmatprep.subr.mxu0 %v385
    %965 = vmatpush1.msra.mxu0 %v384
    %966 = vmatprep.subr.mxu0 %v389
    %967 = vmatpush1.msra.mxu0 %v388
    %968 = vmatprep.subr.mxu0 %v393
    %969 = vmatpush1.msra.mxu0 %v392
    %970 = vmatprep.subr.mxu0 %v397
    %971 = vmatpush1.msra.mxu0 %v396
    %972 = vmatprep.subr.mxu0 %v401
    %973 = vmatpush1.msra.mxu0 %v400
    %974 = vmatprep.subr.mxu0 %v405
    %975 = vmatpush1.msra.mxu0 %v404
    %976 = vmatprep.subr.mxu0 %v409
    %977 = vmatpush1.msra.mxu0 %v408
    %978 = vmatprep.subr.mxu0 %v413
    %979 = vmatpush1.msra.mxu0 %v412
    %980 = vmatprep.subr.mxu0 0.0
    %981 = vmatpush1.msra.mxu0 0.0
    %982 = vmatprep.subr.mxu0 0.0
    %983 = vmatpush1.msra.mxu0 0.0
    %984 = vmatprep.subr.mxu0 0.0
    %985 = vmatpush1.msra.mxu0 0.0
    %986 = vmatprep.subr.mxu0 0.0
    %987 = vmatpush1.msra.mxu0 0.0
    %988 = vmatprep.subr.mxu0 0.0
    %989 = vmatpush1.msra.mxu0 0.0
    %990 = vmatprep.subr.mxu0 0.0
    %991 = vmatpush1.msra.mxu0 0.0
    %992 = vmatprep.subr.mxu0 0.0
    %993 = vmatpush1.msra.mxu0 0.0
    %994 = vmatprep.subr.mxu0 0.0
    %995 = vmatpush1.msra.mxu0 0.0
    %996 = vmatprep.subr.mxu0 0.0
    %997 = vmatpush1.msra.mxu0 0.0
    %998 = vmatprep.subr.mxu0 0.0
    %999 = vmatpush1.msra.mxu0 0.0
    %1000 = vmatprep.subr.mxu0 0.0
    %1001 = vmatpush1.msra.mxu0 0.0
    %1002 = vmatprep.subr.mxu0 0.0
    %1003 = vmatpush1.msra.mxu0 0.0
    %1004 = vmatprep.subr.mxu0 0.0
    %1005 = vmatpush1.msra.mxu0 0.0
    %1006 = vmatprep.subr.mxu0 0.0
    %1007 = vmatpush1.msra.mxu0 0.0
    %1008 = vmatprep.subr.mxu0 0.0
    %1009 = vmatpush1.msra.mxu0 0.0
    %1010 = vmatprep.subr.mxu0 0.0
    %1011 = vmatpush1.msra.mxu0 0.0
    %1012 = vmatprep.mubr.f32.mxu0 0.0
    %1013 = vmatmul.mubr.f32.gmra.mrb[0].mxu0 %v946
    %v1014 = vpop.f32.mrb[0].mxu0
    %v1015 = vadd.f32 0.0, %v1014
    %v1016 = vpop.f32.mrb[0].mxu0
    %v1017 = vadd.f32 0.0, %v1016
    %1018 = vdwg.mxu0
    %1019 = vmatprep.subr.mxu0 %v355
    %1020 = vmatpush1.msra.mxu0 %v354
    %1021 = vmatprep.subr.mxu0 %v359
    %1022 = vmatpush1.msra.mxu0 %v358
    %1023 = vmatprep.subr.mxu0 %v363
    %1024 = vmatpush1.msra.mxu0 %v362
    %1025 = vmatprep.subr.mxu0 %v367
    %1026 = vmatpush1.msra.mxu0 %v366
    %1027 = vmatprep.subr.mxu0 %v371
    %1028 = vmatpush1.msra.mxu0 %v370
    %1029 = vmatprep.subr.mxu0 %v375
    %1030 = vmatpush1.msra.mxu0 %v374
    %1031 = vmatprep.subr.mxu0 %v379
    %1032 = vmatpush1.msra.mxu0 %v378
    %1033 = vmatprep.subr.mxu0 %v383
    %1034 = vmatpush1.msra.mxu0 %v382
    %1035 = vmatprep.subr.mxu0 %v387
    %1036 = vmatpush1.msra.mxu0 %v386
    %1037 = vmatprep.subr.mxu0 %v391
    %1038 = vmatpush1.msra.mxu0 %v390
    %1039 = vmatprep.subr.mxu0 %v395
    %1040 = vmatpush1.msra.mxu0 %v394
    %1041 = vmatprep.subr.mxu0 %v399
    %1042 = vmatpush1.msra.mxu0 %v398
    %1043 = vmatprep.subr.mxu0 %v403
    %1044 = vmatpush1.msra.mxu0 %v402
    %1045 = vmatprep.subr.mxu0 %v407
    %1046 = vmatpush1.msra.mxu0 %v406
    %1047 = vmatprep.subr.mxu0 %v411
    %1048 = vmatpush1.msra.mxu0 %v410
    %1049 = vmatprep.subr.mxu0 %v415
    %1050 = vmatpush1.msra.mxu0 %v414
    %1051 = vmatprep.subr.mxu0 0.0
    %1052 = vmatpush1.msra.mxu0 0.0
    %1053 = vmatprep.subr.mxu0 0.0
    %1054 = vmatpush1.msra.mxu0 0.0
    %1055 = vmatprep.subr.mxu0 0.0
    %1056 = vmatpush1.msra.mxu0 0.0
    %1057 = vmatprep.subr.mxu0 0.0
    %1058 = vmatpush1.msra.mxu0 0.0
    %1059 = vmatprep.subr.mxu0 0.0
    %1060 = vmatpush1.msra.mxu0 0.0
    %1061 = vmatprep.subr.mxu0 0.0
    %1062 = vmatpush1.msra.mxu0 0.0
    %1063 = vmatprep.subr.mxu0 0.0
    %1064 = vmatpush1.msra.mxu0 0.0
    %1065 = vmatprep.subr.mxu0 0.0
    %1066 = vmatpush1.msra.mxu0 0.0
    %1067 = vmatprep.subr.mxu0 0.0
    %1068 = vmatpush1.msra.mxu0 0.0
    %1069 = vmatprep.subr.mxu0 0.0
    %1070 = vmatpush1.msra.mxu0 0.0
    %1071 = vmatprep.subr.mxu0 0.0
    %1072 = vmatpush1.msra.mxu0 0.0
    %1073 = vmatprep.subr.mxu0 0.0
    %1074 = vmatpush1.msra.mxu0 0.0
    %1075 = vmatprep.subr.mxu0 0.0
    %1076 = vmatpush1.msra.mxu0 0.0
    %1077 = vmatprep.subr.mxu0 0.0
    %1078 = vmatpush1.msra.mxu0 0.0
    %1079 = vmatprep.subr.mxu0 0.0
    %1080 = vmatpush1.msra.mxu0 0.0
    %1081 = vmatprep.subr.mxu0 0.0
    %1082 = vmatpush1.msra.mxu0 0.0
    %1083 = vmatprep.mubr.f32.mxu0 0.0
    %1084 = vmatmul.mubr.f32.gmra.mrb[0].mxu0 %v946
    %v1085 = vpop.f32.mrb[0].mxu0
    %v1086 = vadd.f32 0.0, %v1085
    %v1087 = vpop.f32.mrb[0].mxu0
    %v1088 = vadd.f32 0.0, %v1087
    %1089 = vdwg.mxu0
    %v1094 = vrot.slane %v1015, 7
    %v1095 = vrot.slane %v1017, 7
    %v1096 = vrot.slane %v1086, 7
    %v1097 = vrot.slane %v1088, 7
    %v1098 = vrot.slane %v1015, 1
    %v1099 = vrot.slane %v1017, 1
    %v1100 = vrot.slane %v1086, 1
    %v1101 = vrot.slane %v1088, 1
    %v1102 = vrot.slane %v1015, 2
    %v1103 = vrot.slane %v1017, 2
    %v1104 = vrot.slane %v1086, 2
    %v1105 = vrot.slane %v1088, 2
    %v1106 = vrot.slane %v1015, 3
    %v1107 = vrot.slane %v1017, 3
    %v1108 = vrot.slane %v1086, 3
    %v1109 = vrot.slane %v1088, 3
    %v1110 = vrot.slane %v1015, 4
    %v1111 = vrot.slane %v1017, 4
    %v1112 = vrot.slane %v1086, 4
    %v1113 = vrot.slane %v1088, 4
    %v1114 = vrot.slane %v1015, 5
    %v1115 = vrot.slane %v1017, 5
    %v1116 = vrot.slane %v1086, 5
    %v1117 = vrot.slane %v1088, 5
    %v1118 = vrot.slane %v1015, 6
    %v1119 = vrot.slane %v1017, 6
    %v1120 = vrot.slane %v1086, 6
    %v1121 = vrot.slane %v1088, 6
    %v1154 = vadd.f32 %v193, %v1094
    %v1155 = vadd.f32 %v195, %v1095
    %v1156 = vadd.f32 %v306, %v1096
    %v1157 = vadd.f32 %v308, %v1097
    %v1158 = vadd.f32 %v199, %v1015
    %v1159 = vadd.f32 %v201, %v1017
    %v1160 = vadd.f32 %v312, %v1086
    %v1161 = vadd.f32 %v314, %v1088
    %v1162 = vadd.f32 %v205, %v1098
    %v1163 = vadd.f32 %v207, %v1099
    %v1164 = vadd.f32 %v318, %v1100
    %v1165 = vadd.f32 %v320, %v1101
    %v1166 = vadd.f32 %v211, %v1102
    %v1167 = vadd.f32 %v213, %v1103
    %v1168 = vadd.f32 %v324, %v1104
    %v1169 = vadd.f32 %v326, %v1105
    %v1170 = vadd.f32 %v217, %v1106
    %v1171 = vadd.f32 %v219, %v1107
    %v1172 = vadd.f32 %v330, %v1108
    %v1173 = vadd.f32 %v332, %v1109
    %v1174 = vadd.f32 %v223, %v1110
    %v1175 = vadd.f32 %v225, %v1111
    %v1176 = vadd.f32 %v336, %v1112
    %v1177 = vadd.f32 %v338, %v1113
    %v1178 = vadd.f32 %v229, %v1114
    %v1179 = vadd.f32 %v231, %v1115
    %v1180 = vadd.f32 %v342, %v1116
    %v1181 = vadd.f32 %v344, %v1117
    %v1182 = vadd.f32 %v235, %v1118
    %v1183 = vadd.f32 %v237, %v1119
    %v1184 = vadd.f32 %v348, %v1120
    %v1185 = vadd.f32 %v350, %v1121
    %v1186 = vadd.f32 %v1154, %v421
    %v1187 = vadd.f32 %v1155, %v425
    %v1188 = vadd.f32 %v1156, %v429
    %v1189 = vadd.f32 %v1157, %v433
    %v1190 = vadd.f32 %v1158, %v421
    %v1191 = vadd.f32 %v1159, %v425
    %v1192 = vadd.f32 %v1160, %v429
    %v1193 = vadd.f32 %v1161, %v433
    %v1194 = vadd.f32 %v1162, %v421
    %v1195 = vadd.f32 %v1163, %v425
    %v1196 = vadd.f32 %v1164, %v429
    %v1197 = vadd.f32 %v1165, %v433
    %v1198 = vadd.f32 %v1166, %v421
    %v1199 = vadd.f32 %v1167, %v425
    %v1200 = vadd.f32 %v1168, %v429
    %v1201 = vadd.f32 %v1169, %v433
    %v1202 = vadd.f32 %v1170, %v421
    %v1203 = vadd.f32 %v1171, %v425
    %v1204 = vadd.f32 %v1172, %v429
    %v1205 = vadd.f32 %v1173, %v433
    %v1206 = vadd.f32 %v1174, %v421
    %v1207 = vadd.f32 %v1175, %v425
    %v1208 = vadd.f32 %v1176, %v429
    %v1209 = vadd.f32 %v1177, %v433
    %v1210 = vadd.f32 %v1178, %v421
    %v1211 = vadd.f32 %v1179, %v425
    %v1212 = vadd.f32 %v1180, %v429
    %v1213 = vadd.f32 %v1181, %v433
    %v1214 = vadd.f32 %v1182, %v421
    %v1215 = vadd.f32 %v1183, %v425
    %v1216 = vadd.f32 %v1184, %v429
    %v1217 = vadd.f32 %v1185, %v433
    %v1218 = vxor.u32 %v1186, 2147483648
    %v1219 = vxor.u32 %v1190, 2147483648
    %v1220 = vxor.u32 %v1194, 2147483648
    %v1221 = vxor.u32 %v1198, 2147483648
    %v1222 = vxor.u32 %v1202, 2147483648
    %v1223 = vxor.u32 %v1206, 2147483648
    %v1224 = vxor.u32 %v1210, 2147483648
    %v1225 = vxor.u32 %v1214, 2147483648
    %v1226 = vmul.f32 %v1218, 1.442695
    %v1227 = vpow.pop %v1226
    %v1228 = vmul.f32 %v1219, 1.442695
    %v1229 = vpow.pop %v1228
    %v1230 = vmul.f32 %v1220, 1.442695
    %v1231 = vpow.pop %v1230
    %v1232 = vmul.f32 %v1221, 1.442695
    %v1233 = vpow.pop %v1232
    %v1234 = vmul.f32 %v1222, 1.442695
    %v1235 = vpow.pop %v1234
    %v1236 = vmul.f32 %v1223, 1.442695
    %v1237 = vpow.pop %v1236
    %v1238 = vmul.f32 %v1224, 1.442695
    %v1239 = vpow.pop %v1238
    %v1240 = vmul.f32 %v1225, 1.442695
    %v1241 = vpow.pop %v1240
    %v1242 = vadd.f32 %v1227, 1.0
    %v1243 = vadd.f32 %v1229, 1.0
    %v1244 = vadd.f32 %v1231, 1.0
    %v1245 = vadd.f32 %v1233, 1.0
    %v1246 = vadd.f32 %v1235, 1.0
    %v1247 = vadd.f32 %v1237, 1.0
    %v1248 = vadd.f32 %v1239, 1.0
    %v1249 = vadd.f32 %v1241, 1.0
    %v1250 = vrcp.pop %v1242
    %v1251 = vmul.f32 1.0, %v1250
    %v1252 = vrcp.pop %v1243
    %v1253 = vmul.f32 1.0, %v1252
    %v1254 = vrcp.pop %v1244
    %v1255 = vmul.f32 1.0, %v1254
    %v1256 = vrcp.pop %v1245
    %v1257 = vmul.f32 1.0, %v1256
    %v1258 = vrcp.pop %v1246
    %v1259 = vmul.f32 1.0, %v1258
    %v1260 = vrcp.pop %v1247
    %v1261 = vmul.f32 1.0, %v1260
    %v1262 = vrcp.pop %v1248
    %v1263 = vmul.f32 1.0, %v1262
    %v1264 = vrcp.pop %v1249
    %v1265 = vmul.f32 1.0, %v1264
    %v1266 = vxor.u32 %v1187, 2147483648
    %v1267 = vxor.u32 %v1191, 2147483648
    %v1268 = vxor.u32 %v1195, 2147483648
    %v1269 = vxor.u32 %v1199, 2147483648
    %v1270 = vxor.u32 %v1203, 2147483648
    %v1271 = vxor.u32 %v1207, 2147483648
    %v1272 = vxor.u32 %v1211, 2147483648
    %v1273 = vxor.u32 %v1215, 2147483648
    %v1274 = vmul.f32 %v1266, 1.442695
    %v1275 = vpow.pop %v1274
    %v1276 = vmul.f32 %v1267, 1.442695
    %v1277 = vpow.pop %v1276
    %v1278 = vmul.f32 %v1268, 1.442695
    %v1279 = vpow.pop %v1278
    %v1280 = vmul.f32 %v1269, 1.442695
    %v1281 = vpow.pop %v1280
    %v1282 = vmul.f32 %v1270, 1.442695
    %v1283 = vpow.pop %v1282
    %v1284 = vmul.f32 %v1271, 1.442695
    %v1285 = vpow.pop %v1284
    %v1286 = vmul.f32 %v1272, 1.442695
    %v1287 = vpow.pop %v1286
    %v1288 = vmul.f32 %v1273, 1.442695
    %v1289 = vpow.pop %v1288
    %v1290 = vadd.f32 %v1275, 1.0
    %v1291 = vadd.f32 %v1277, 1.0
    %v1292 = vadd.f32 %v1279, 1.0
    %v1293 = vadd.f32 %v1281, 1.0
    %v1294 = vadd.f32 %v1283, 1.0
    %v1295 = vadd.f32 %v1285, 1.0
    %v1296 = vadd.f32 %v1287, 1.0
    %v1297 = vadd.f32 %v1289, 1.0
    %v1298 = vrcp.pop %v1290
    %v1299 = vmul.f32 1.0, %v1298
    %v1300 = vrcp.pop %v1291
    %v1301 = vmul.f32 1.0, %v1300
    %v1302 = vrcp.pop %v1292
    %v1303 = vmul.f32 1.0, %v1302
    %v1304 = vrcp.pop %v1293
    %v1305 = vmul.f32 1.0, %v1304
    %v1306 = vrcp.pop %v1294
    %v1307 = vmul.f32 1.0, %v1306
    %v1308 = vrcp.pop %v1295
    %v1309 = vmul.f32 1.0, %v1308
    %v1310 = vrcp.pop %v1296
    %v1311 = vmul.f32 1.0, %v1310
    %v1312 = vrcp.pop %v1297
    %v1313 = vmul.f32 1.0, %v1312
    %v1314 = vtanh.pop %v1188
    %v1315 = vtanh.pop %v1192
    %v1316 = vtanh.pop %v1196
    %v1317 = vtanh.pop %v1200
    %v1318 = vtanh.pop %v1204
    %v1319 = vtanh.pop %v1208
    %v1320 = vtanh.pop %v1212
    %v1321 = vtanh.pop %v1216
    %v1322 = vxor.u32 %v1189, 2147483648
    %v1323 = vxor.u32 %v1193, 2147483648
    %v1324 = vxor.u32 %v1197, 2147483648
    %v1325 = vxor.u32 %v1201, 2147483648
    %v1326 = vxor.u32 %v1205, 2147483648
    %v1327 = vxor.u32 %v1209, 2147483648
    %v1328 = vxor.u32 %v1213, 2147483648
    %v1329 = vxor.u32 %v1217, 2147483648
    %v1330 = vmul.f32 %v1322, 1.442695
    %v1331 = vpow.pop %v1330
    %v1332 = vmul.f32 %v1323, 1.442695
    %v1333 = vpow.pop %v1332
    %v1334 = vmul.f32 %v1324, 1.442695
    %v1335 = vpow.pop %v1334
    %v1336 = vmul.f32 %v1325, 1.442695
    %v1337 = vpow.pop %v1336
    %v1338 = vmul.f32 %v1326, 1.442695
    %v1339 = vpow.pop %v1338
    %v1340 = vmul.f32 %v1327, 1.442695
    %v1341 = vpow.pop %v1340
    %v1342 = vmul.f32 %v1328, 1.442695
    %v1343 = vpow.pop %v1342
    %v1344 = vmul.f32 %v1329, 1.442695
    %v1345 = vpow.pop %v1344
    %v1346 = vadd.f32 %v1331, 1.0
    %v1347 = vadd.f32 %v1333, 1.0
    %v1348 = vadd.f32 %v1335, 1.0
    %v1349 = vadd.f32 %v1337, 1.0
    %v1350 = vadd.f32 %v1339, 1.0
    %v1351 = vadd.f32 %v1341, 1.0
    %v1352 = vadd.f32 %v1343, 1.0
    %v1353 = vadd.f32 %v1345, 1.0
    %v1354 = vrcp.pop %v1346
    %v1355 = vmul.f32 1.0, %v1354
    %v1356 = vrcp.pop %v1347
    %v1357 = vmul.f32 1.0, %v1356
    %v1358 = vrcp.pop %v1348
    %v1359 = vmul.f32 1.0, %v1358
    %v1360 = vrcp.pop %v1349
    %v1361 = vmul.f32 1.0, %v1360
    %v1362 = vrcp.pop %v1350
    %v1363 = vmul.f32 1.0, %v1362
    %v1364 = vrcp.pop %v1351
    %v1365 = vmul.f32 1.0, %v1364
    %v1366 = vrcp.pop %v1352
    %v1367 = vmul.f32 1.0, %v1366
    %v1368 = vrcp.pop %v1353
    %v1369 = vmul.f32 1.0, %v1368
    %v1378 = vrot.slane %v894, 7
    %v1379 = vrot.slane %v895, 7
    %v1380 = vrot.slane %v896, 7
    %v1381 = vrot.slane %v897, 7
    %v1382 = vrot.slane %v898, 7
    %v1383 = vrot.slane %v899, 7
    %v1384 = vrot.slane %v900, 7
    %v1385 = vrot.slane %v901, 7
    %v1394 = vmul.f32 %v1299, %v1378
    %v1395 = vmul.f32 %v1301, %v1379
    %v1396 = vmul.f32 %v1303, %v1380
    %v1397 = vmul.f32 %v1305, %v1381
    %v1398 = vmul.f32 %v1307, %v1382
    %v1399 = vmul.f32 %v1309, %v1383
    %v1400 = vmul.f32 %v1311, %v1384
    %v1401 = vmul.f32 %v1313, %v1385
    %v1402 = vmul.f32 %v1251, %v1314
    %v1403 = vmul.f32 %v1253, %v1315
    %v1404 = vmul.f32 %v1255, %v1316
    %v1405 = vmul.f32 %v1257, %v1317
    %v1406 = vmul.f32 %v1259, %v1318
    %v1407 = vmul.f32 %v1261, %v1319
    %v1408 = vmul.f32 %v1263, %v1320
    %v1409 = vmul.f32 %v1265, %v1321
    %v1410 = vadd.f32 %v1394, %v1402
    %v1411 = vadd.f32 %v1395, %v1403
    %v1412 = vadd.f32 %v1396, %v1404
    %v1413 = vadd.f32 %v1397, %v1405
    %v1414 = vadd.f32 %v1398, %v1406
    %v1415 = vadd.f32 %v1399, %v1407
    %v1416 = vadd.f32 %v1400, %v1408
    %v1417 = vadd.f32 %v1401, %v1409
    %v1418 = vtanh.pop %v1410
    %v1419 = vtanh.pop %v1411
    %v1420 = vtanh.pop %v1412
    %v1421 = vtanh.pop %v1413
    %v1422 = vtanh.pop %v1414
    %v1423 = vtanh.pop %v1415
    %v1424 = vtanh.pop %v1416
    %v1425 = vtanh.pop %v1417
    %v1426 = vmul.f32 %v1355, %v1418
    %v1427 = vmul.f32 %v1357, %v1419
    %v1428 = vmul.f32 %v1359, %v1420
    %v1429 = vmul.f32 %v1361, %v1421
    %v1430 = vmul.f32 %v1363, %v1422
    %v1431 = vmul.f32 %v1365, %v1423
    %v1432 = vmul.f32 %v1367, %v1424
    %v1433 = vmul.f32 %v1369, %v1425
    %v1442 = vrot.slane %v1426, 1
    %v1443 = vsel %vm927, %v1427, %v1442
    %v1444 = vrot.slane %v1428, 7
    %v1445 = vsel %vm930, %v1444, %v1443
    %v1446 = vrot.slane %v1429, 6
    %v1447 = vsel %vm933, %v1446, %v1445
    %v1448 = vrot.slane %v1430, 5
    %v1449 = vsel %vm936, %v1448, %v1447
    %v1450 = vrot.slane %v1431, 4
    %v1451 = vsel %vm939, %v1450, %v1449
    %v1452 = vrot.slane %v1432, 3
    %v1453 = vsel %vm942, %v1452, %v1451
    %v1454 = vrot.slane %v1433, 2
    %v1455 = vsel %vm945, %v1454, %v1453
    %1457 = vmatprep.subr.mxu0 %v353
    %1458 = vmatpush1.msra.mxu0 %v352
    %1459 = vmatprep.subr.mxu0 %v357
    %1460 = vmatpush1.msra.mxu0 %v356
    %1461 = vmatprep.subr.mxu0 %v361
    %1462 = vmatpush1.msra.mxu0 %v360
    %1463 = vmatprep.subr.mxu0 %v365
    %1464 = vmatpush1.msra.mxu0 %v364
    %1465 = vmatprep.subr.mxu0 %v369
    %1466 = vmatpush1.msra.mxu0 %v368
    %1467 = vmatprep.subr.mxu0 %v373
    %1468 = vmatpush1.msra.mxu0 %v372
    %1469 = vmatprep.subr.mxu0 %v377
    %1470 = vmatpush1.msra.mxu0 %v376
    %1471 = vmatprep.subr.mxu0 %v381
    %1472 = vmatpush1.msra.mxu0 %v380
    %1473 = vmatprep.subr.mxu0 %v385
    %1474 = vmatpush1.msra.mxu0 %v384
    %1475 = vmatprep.subr.mxu0 %v389
    %1476 = vmatpush1.msra.mxu0 %v388
    %1477 = vmatprep.subr.mxu0 %v393
    %1478 = vmatpush1.msra.mxu0 %v392
    %1479 = vmatprep.subr.mxu0 %v397
    %1480 = vmatpush1.msra.mxu0 %v396
    %1481 = vmatprep.subr.mxu0 %v401
    %1482 = vmatpush1.msra.mxu0 %v400
    %1483 = vmatprep.subr.mxu0 %v405
    %1484 = vmatpush1.msra.mxu0 %v404
    %1485 = vmatprep.subr.mxu0 %v409
    %1486 = vmatpush1.msra.mxu0 %v408
    %1487 = vmatprep.subr.mxu0 %v413
    %1488 = vmatpush1.msra.mxu0 %v412
    %1489 = vmatprep.subr.mxu0 0.0
    %1490 = vmatpush1.msra.mxu0 0.0
    %1491 = vmatprep.subr.mxu0 0.0
    %1492 = vmatpush1.msra.mxu0 0.0
    %1493 = vmatprep.subr.mxu0 0.0
    %1494 = vmatpush1.msra.mxu0 0.0
    %1495 = vmatprep.subr.mxu0 0.0
    %1496 = vmatpush1.msra.mxu0 0.0
    %1497 = vmatprep.subr.mxu0 0.0
    %1498 = vmatpush1.msra.mxu0 0.0
    %1499 = vmatprep.subr.mxu0 0.0
    %1500 = vmatpush1.msra.mxu0 0.0
    %1501 = vmatprep.subr.mxu0 0.0
    %1502 = vmatpush1.msra.mxu0 0.0
    %1503 = vmatprep.subr.mxu0 0.0
    %1504 = vmatpush1.msra.mxu0 0.0
    %1505 = vmatprep.subr.mxu0 0.0
    %1506 = vmatpush1.msra.mxu0 0.0
    %1507 = vmatprep.subr.mxu0 0.0
    %1508 = vmatpush1.msra.mxu0 0.0
    %1509 = vmatprep.subr.mxu0 0.0
    %1510 = vmatpush1.msra.mxu0 0.0
    %1511 = vmatprep.subr.mxu0 0.0
    %1512 = vmatpush1.msra.mxu0 0.0
    %1513 = vmatprep.subr.mxu0 0.0
    %1514 = vmatpush1.msra.mxu0 0.0
    %1515 = vmatprep.subr.mxu0 0.0
    %1516 = vmatpush1.msra.mxu0 0.0
    %1517 = vmatprep.subr.mxu0 0.0
    %1518 = vmatpush1.msra.mxu0 0.0
    %1519 = vmatprep.subr.mxu0 0.0
    %1520 = vmatpush1.msra.mxu0 0.0
    %1521 = vmatprep.mubr.f32.mxu0 0.0
    %1522 = vmatmul.mubr.f32.gmra.mrb[0].mxu0 %v1455
    %v1523 = vpop.f32.mrb[0].mxu0
    %v1524 = vadd.f32 0.0, %v1523
    %v1525 = vpop.f32.mrb[0].mxu0
    %v1526 = vadd.f32 0.0, %v1525
    %1527 = vdwg.mxu0
    %1528 = vmatprep.subr.mxu0 %v355
    %1529 = vmatpush1.msra.mxu0 %v354
    %1530 = vmatprep.subr.mxu0 %v359
    %1531 = vmatpush1.msra.mxu0 %v358
    %1532 = vmatprep.subr.mxu0 %v363
    %1533 = vmatpush1.msra.mxu0 %v362
    %1534 = vmatprep.subr.mxu0 %v367
    %1535 = vmatpush1.msra.mxu0 %v366
    %1536 = vmatprep.subr.mxu0 %v371
    %1537 = vmatpush1.msra.mxu0 %v370
    %1538 = vmatprep.subr.mxu0 %v375
    %1539 = vmatpush1.msra.mxu0 %v374
    %1540 = vmatprep.subr.mxu0 %v379
    %1541 = vmatpush1.msra.mxu0 %v378
    %1542 = vmatprep.subr.mxu0 %v383
    %1543 = vmatpush1.msra.mxu0 %v382
    %1544 = vmatprep.subr.mxu0 %v387
    %1545 = vmatpush1.msra.mxu0 %v386
    %1546 = vmatprep.subr.mxu0 %v391
    %1547 = vmatpush1.msra.mxu0 %v390
    %1548 = vmatprep.subr.mxu0 %v395
    %1549 = vmatpush1.msra.mxu0 %v394
    %1550 = vmatprep.subr.mxu0 %v399
    %1551 = vmatpush1.msra.mxu0 %v398
    %1552 = vmatprep.subr.mxu0 %v403
    %1553 = vmatpush1.msra.mxu0 %v402
    %1554 = vmatprep.subr.mxu0 %v407
    %1555 = vmatpush1.msra.mxu0 %v406
    %1556 = vmatprep.subr.mxu0 %v411
    %1557 = vmatpush1.msra.mxu0 %v410
    %1558 = vmatprep.subr.mxu0 %v415
    %1559 = vmatpush1.msra.mxu0 %v414
    %1560 = vmatprep.subr.mxu0 0.0
    %1561 = vmatpush1.msra.mxu0 0.0
    %1562 = vmatprep.subr.mxu0 0.0
    %1563 = vmatpush1.msra.mxu0 0.0
    %1564 = vmatprep.subr.mxu0 0.0
    %1565 = vmatpush1.msra.mxu0 0.0
    %1566 = vmatprep.subr.mxu0 0.0
    %1567 = vmatpush1.msra.mxu0 0.0
    %1568 = vmatprep.subr.mxu0 0.0
    %1569 = vmatpush1.msra.mxu0 0.0
    %1570 = vmatprep.subr.mxu0 0.0
    %1571 = vmatpush1.msra.mxu0 0.0
    %1572 = vmatprep.subr.mxu0 0.0
    %1573 = vmatpush1.msra.mxu0 0.0
    %1574 = vmatprep.subr.mxu0 0.0
    %1575 = vmatpush1.msra.mxu0 0.0
    %1576 = vmatprep.subr.mxu0 0.0
    %1577 = vmatpush1.msra.mxu0 0.0
    %1578 = vmatprep.subr.mxu0 0.0
    %1579 = vmatpush1.msra.mxu0 0.0
    %1580 = vmatprep.subr.mxu0 0.0
    %1581 = vmatpush1.msra.mxu0 0.0
    %1582 = vmatprep.subr.mxu0 0.0
    %1583 = vmatpush1.msra.mxu0 0.0
    %1584 = vmatprep.subr.mxu0 0.0
    %1585 = vmatpush1.msra.mxu0 0.0
    %1586 = vmatprep.subr.mxu0 0.0
    %1587 = vmatpush1.msra.mxu0 0.0
    %1588 = vmatprep.subr.mxu0 0.0
    %1589 = vmatpush1.msra.mxu0 0.0
    %1590 = vmatprep.subr.mxu0 0.0
    %1591 = vmatpush1.msra.mxu0 0.0
    %1592 = vmatprep.mubr.f32.mxu0 0.0
    %1593 = vmatmul.mubr.f32.gmra.mrb[0].mxu0 %v1455
    %v1594 = vpop.f32.mrb[0].mxu0
    %v1595 = vadd.f32 0.0, %v1594
    %v1596 = vpop.f32.mrb[0].mxu0
    %v1597 = vadd.f32 0.0, %v1596
    %1598 = vdwg.mxu0
    %v1603 = vrot.slane %v1524, 6
    %v1604 = vrot.slane %v1526, 6
    %v1605 = vrot.slane %v1595, 6
    %v1606 = vrot.slane %v1597, 6
    %v1607 = vrot.slane %v1524, 7
    %v1608 = vrot.slane %v1526, 7
    %v1609 = vrot.slane %v1595, 7
    %v1610 = vrot.slane %v1597, 7
    %v1611 = vrot.slane %v1524, 1
    %v1612 = vrot.slane %v1526, 1
    %v1613 = vrot.slane %v1595, 1
    %v1614 = vrot.slane %v1597, 1
    %v1615 = vrot.slane %v1524, 2
    %v1616 = vrot.slane %v1526, 2
    %v1617 = vrot.slane %v1595, 2
    %v1618 = vrot.slane %v1597, 2
    %v1619 = vrot.slane %v1524, 3
    %v1620 = vrot.slane %v1526, 3
    %v1621 = vrot.slane %v1595, 3
    %v1622 = vrot.slane %v1597, 3
    %v1623 = vrot.slane %v1524, 4
    %v1624 = vrot.slane %v1526, 4
    %v1625 = vrot.slane %v1595, 4
    %v1626 = vrot.slane %v1597, 4
    %v1627 = vrot.slane %v1524, 5
    %v1628 = vrot.slane %v1526, 5
    %v1629 = vrot.slane %v1595, 5
    %v1630 = vrot.slane %v1597, 5
    %v1663 = vadd.f32 %v193, %v1603
    %v1664 = vadd.f32 %v195, %v1604
    %v1665 = vadd.f32 %v306, %v1605
    %v1666 = vadd.f32 %v308, %v1606
    %v1667 = vadd.f32 %v199, %v1607
    %v1668 = vadd.f32 %v201, %v1608
    %v1669 = vadd.f32 %v312, %v1609
    %v1670 = vadd.f32 %v314, %v1610
    %v1671 = vadd.f32 %v205, %v1524
    %v1672 = vadd.f32 %v207, %v1526
    %v1673 = vadd.f32 %v318, %v1595
    %v1674 = vadd.f32 %v320, %v1597
    %v1675 = vadd.f32 %v211, %v1611
    %v1676 = vadd.f32 %v213, %v1612
    %v1677 = vadd.f32 %v324, %v1613
    %v1678 = vadd.f32 %v326, %v1614
    %v1679 = vadd.f32 %v217, %v1615
    %v1680 = vadd.f32 %v219, %v1616
    %v1681 = vadd.f32 %v330, %v1617
    %v1682 = vadd.f32 %v332, %v1618
    %v1683 = vadd.f32 %v223, %v1619
    %v1684 = vadd.f32 %v225, %v1620
    %v1685 = vadd.f32 %v336, %v1621
    %v1686 = vadd.f32 %v338, %v1622
    %v1687 = vadd.f32 %v229, %v1623
    %v1688 = vadd.f32 %v231, %v1624
    %v1689 = vadd.f32 %v342, %v1625
    %v1690 = vadd.f32 %v344, %v1626
    %v1691 = vadd.f32 %v235, %v1627
    %v1692 = vadd.f32 %v237, %v1628
    %v1693 = vadd.f32 %v348, %v1629
    %v1694 = vadd.f32 %v350, %v1630
    %v1695 = vadd.f32 %v1663, %v421
    %v1696 = vadd.f32 %v1664, %v425
    %v1697 = vadd.f32 %v1665, %v429
    %v1698 = vadd.f32 %v1666, %v433
    %v1699 = vadd.f32 %v1667, %v421
    %v1700 = vadd.f32 %v1668, %v425
    %v1701 = vadd.f32 %v1669, %v429
    %v1702 = vadd.f32 %v1670, %v433
    %v1703 = vadd.f32 %v1671, %v421
    %v1704 = vadd.f32 %v1672, %v425
    %v1705 = vadd.f32 %v1673, %v429
    %v1706 = vadd.f32 %v1674, %v433
    %v1707 = vadd.f32 %v1675, %v421
    %v1708 = vadd.f32 %v1676, %v425
    %v1709 = vadd.f32 %v1677, %v429
    %v1710 = vadd.f32 %v1678, %v433
    %v1711 = vadd.f32 %v1679, %v421
    %v1712 = vadd.f32 %v1680, %v425
    %v1713 = vadd.f32 %v1681, %v429
    %v1714 = vadd.f32 %v1682, %v433
    %v1715 = vadd.f32 %v1683, %v421
    %v1716 = vadd.f32 %v1684, %v425
    %v1717 = vadd.f32 %v1685, %v429
    %v1718 = vadd.f32 %v1686, %v433
    %v1719 = vadd.f32 %v1687, %v421
    %v1720 = vadd.f32 %v1688, %v425
    %v1721 = vadd.f32 %v1689, %v429
    %v1722 = vadd.f32 %v1690, %v433
    %v1723 = vadd.f32 %v1691, %v421
    %v1724 = vadd.f32 %v1692, %v425
    %v1725 = vadd.f32 %v1693, %v429
    %v1726 = vadd.f32 %v1694, %v433
    %v1727 = vxor.u32 %v1695, 2147483648
    %v1728 = vxor.u32 %v1699, 2147483648
    %v1729 = vxor.u32 %v1703, 2147483648
    %v1730 = vxor.u32 %v1707, 2147483648
    %v1731 = vxor.u32 %v1711, 2147483648
    %v1732 = vxor.u32 %v1715, 2147483648
    %v1733 = vxor.u32 %v1719, 2147483648
    %v1734 = vxor.u32 %v1723, 2147483648
    %v1735 = vmul.f32 %v1727, 1.442695
    %v1736 = vpow.pop %v1735
    %v1737 = vmul.f32 %v1728, 1.442695
    %v1738 = vpow.pop %v1737
    %v1739 = vmul.f32 %v1729, 1.442695
    %v1740 = vpow.pop %v1739
    %v1741 = vmul.f32 %v1730, 1.442695
    %v1742 = vpow.pop %v1741
    %v1743 = vmul.f32 %v1731, 1.442695
    %v1744 = vpow.pop %v1743
    %v1745 = vmul.f32 %v1732, 1.442695
    %v1746 = vpow.pop %v1745
    %v1747 = vmul.f32 %v1733, 1.442695
    %v1748 = vpow.pop %v1747
    %v1749 = vmul.f32 %v1734, 1.442695
    %v1750 = vpow.pop %v1749
    %v1751 = vadd.f32 %v1736, 1.0
    %v1752 = vadd.f32 %v1738, 1.0
    %v1753 = vadd.f32 %v1740, 1.0
    %v1754 = vadd.f32 %v1742, 1.0
    %v1755 = vadd.f32 %v1744, 1.0
    %v1756 = vadd.f32 %v1746, 1.0
    %v1757 = vadd.f32 %v1748, 1.0
    %v1758 = vadd.f32 %v1750, 1.0
    %v1759 = vrcp.pop %v1751
    %v1760 = vmul.f32 1.0, %v1759
    %v1761 = vrcp.pop %v1752
    %v1762 = vmul.f32 1.0, %v1761
    %v1763 = vrcp.pop %v1753
    %v1764 = vmul.f32 1.0, %v1763
    %v1765 = vrcp.pop %v1754
    %v1766 = vmul.f32 1.0, %v1765
    %v1767 = vrcp.pop %v1755
    %v1768 = vmul.f32 1.0, %v1767
    %v1769 = vrcp.pop %v1756
    %v1770 = vmul.f32 1.0, %v1769
    %v1771 = vrcp.pop %v1757
    %v1772 = vmul.f32 1.0, %v1771
    %v1773 = vrcp.pop %v1758
    %v1774 = vmul.f32 1.0, %v1773
    %v1775 = vxor.u32 %v1696, 2147483648
    %v1776 = vxor.u32 %v1700, 2147483648
    %v1777 = vxor.u32 %v1704, 2147483648
    %v1778 = vxor.u32 %v1708, 2147483648
    %v1779 = vxor.u32 %v1712, 2147483648
    %v1780 = vxor.u32 %v1716, 2147483648
    %v1781 = vxor.u32 %v1720, 2147483648
    %v1782 = vxor.u32 %v1724, 2147483648
    %v1783 = vmul.f32 %v1775, 1.442695
    %v1784 = vpow.pop %v1783
    %v1785 = vmul.f32 %v1776, 1.442695
    %v1786 = vpow.pop %v1785
    %v1787 = vmul.f32 %v1777, 1.442695
    %v1788 = vpow.pop %v1787
    %v1789 = vmul.f32 %v1778, 1.442695
    %v1790 = vpow.pop %v1789
    %v1791 = vmul.f32 %v1779, 1.442695
    %v1792 = vpow.pop %v1791
    %v1793 = vmul.f32 %v1780, 1.442695
    %v1794 = vpow.pop %v1793
    %v1795 = vmul.f32 %v1781, 1.442695
    %v1796 = vpow.pop %v1795
    %v1797 = vmul.f32 %v1782, 1.442695
    %v1798 = vpow.pop %v1797
    %v1799 = vadd.f32 %v1784, 1.0
    %v1800 = vadd.f32 %v1786, 1.0
    %v1801 = vadd.f32 %v1788, 1.0
    %v1802 = vadd.f32 %v1790, 1.0
    %v1803 = vadd.f32 %v1792, 1.0
    %v1804 = vadd.f32 %v1794, 1.0
    %v1805 = vadd.f32 %v1796, 1.0
    %v1806 = vadd.f32 %v1798, 1.0
    %v1807 = vrcp.pop %v1799
    %v1808 = vmul.f32 1.0, %v1807
    %v1809 = vrcp.pop %v1800
    %v1810 = vmul.f32 1.0, %v1809
    %v1811 = vrcp.pop %v1801
    %v1812 = vmul.f32 1.0, %v1811
    %v1813 = vrcp.pop %v1802
    %v1814 = vmul.f32 1.0, %v1813
    %v1815 = vrcp.pop %v1803
    %v1816 = vmul.f32 1.0, %v1815
    %v1817 = vrcp.pop %v1804
    %v1818 = vmul.f32 1.0, %v1817
    %v1819 = vrcp.pop %v1805
    %v1820 = vmul.f32 1.0, %v1819
    %v1821 = vrcp.pop %v1806
    %v1822 = vmul.f32 1.0, %v1821
    %v1823 = vtanh.pop %v1697
    %v1824 = vtanh.pop %v1701
    %v1825 = vtanh.pop %v1705
    %v1826 = vtanh.pop %v1709
    %v1827 = vtanh.pop %v1713
    %v1828 = vtanh.pop %v1717
    %v1829 = vtanh.pop %v1721
    %v1830 = vtanh.pop %v1725
    %v1831 = vxor.u32 %v1698, 2147483648
    %v1832 = vxor.u32 %v1702, 2147483648
    %v1833 = vxor.u32 %v1706, 2147483648
    %v1834 = vxor.u32 %v1710, 2147483648
    %v1835 = vxor.u32 %v1714, 2147483648
    %v1836 = vxor.u32 %v1718, 2147483648
    %v1837 = vxor.u32 %v1722, 2147483648
    %v1838 = vxor.u32 %v1726, 2147483648
    %v1839 = vmul.f32 %v1831, 1.442695
    %v1840 = vpow.pop %v1839
    %v1841 = vmul.f32 %v1832, 1.442695
    %v1842 = vpow.pop %v1841
    %v1843 = vmul.f32 %v1833, 1.442695
    %v1844 = vpow.pop %v1843
    %v1845 = vmul.f32 %v1834, 1.442695
    %v1846 = vpow.pop %v1845
    %v1847 = vmul.f32 %v1835, 1.442695
    %v1848 = vpow.pop %v1847
    %v1849 = vmul.f32 %v1836, 1.442695
    %v1850 = vpow.pop %v1849
    %v1851 = vmul.f32 %v1837, 1.442695
    %v1852 = vpow.pop %v1851
    %v1853 = vmul.f32 %v1838, 1.442695
    %v1854 = vpow.pop %v1853
    %v1855 = vadd.f32 %v1840, 1.0
    %v1856 = vadd.f32 %v1842, 1.0
    %v1857 = vadd.f32 %v1844, 1.0
    %v1858 = vadd.f32 %v1846, 1.0
    %v1859 = vadd.f32 %v1848, 1.0
    %v1860 = vadd.f32 %v1850, 1.0
    %v1861 = vadd.f32 %v1852, 1.0
    %v1862 = vadd.f32 %v1854, 1.0
    %v1863 = vrcp.pop %v1855
    %v1864 = vmul.f32 1.0, %v1863
    %v1865 = vrcp.pop %v1856
    %v1866 = vmul.f32 1.0, %v1865
    %v1867 = vrcp.pop %v1857
    %v1868 = vmul.f32 1.0, %v1867
    %v1869 = vrcp.pop %v1858
    %v1870 = vmul.f32 1.0, %v1869
    %v1871 = vrcp.pop %v1859
    %v1872 = vmul.f32 1.0, %v1871
    %v1873 = vrcp.pop %v1860
    %v1874 = vmul.f32 1.0, %v1873
    %v1875 = vrcp.pop %v1861
    %v1876 = vmul.f32 1.0, %v1875
    %v1877 = vrcp.pop %v1862
    %v1878 = vmul.f32 1.0, %v1877
    %v1887 = vrot.slane %v1410, 7
    %v1888 = vrot.slane %v1411, 7
    %v1889 = vrot.slane %v1412, 7
    %v1890 = vrot.slane %v1413, 7
    %v1891 = vrot.slane %v1414, 7
    %v1892 = vrot.slane %v1415, 7
    %v1893 = vrot.slane %v1416, 7
    %v1894 = vrot.slane %v1417, 7
    %v1903 = vmul.f32 %v1808, %v1887
    %v1904 = vmul.f32 %v1810, %v1888
    %v1905 = vmul.f32 %v1812, %v1889
    %v1906 = vmul.f32 %v1814, %v1890
    %v1907 = vmul.f32 %v1816, %v1891
    %v1908 = vmul.f32 %v1818, %v1892
    %v1909 = vmul.f32 %v1820, %v1893
    %v1910 = vmul.f32 %v1822, %v1894
    %v1911 = vmul.f32 %v1760, %v1823
    %v1912 = vmul.f32 %v1762, %v1824
    %v1913 = vmul.f32 %v1764, %v1825
    %v1914 = vmul.f32 %v1766, %v1826
    %v1915 = vmul.f32 %v1768, %v1827
    %v1916 = vmul.f32 %v1770, %v1828
    %v1917 = vmul.f32 %v1772, %v1829
    %v1918 = vmul.f32 %v1774, %v1830
    %v1919 = vadd.f32 %v1903, %v1911
    %v1920 = vadd.f32 %v1904, %v1912
    %v1921 = vadd.f32 %v1905, %v1913
    %v1922 = vadd.f32 %v1906, %v1914
    %v1923 = vadd.f32 %v1907, %v1915
    %v1924 = vadd.f32 %v1908, %v1916
    %v1925 = vadd.f32 %v1909, %v1917
    %v1926 = vadd.f32 %v1910, %v1918
    %v1927 = vtanh.pop %v1919
    %v1928 = vtanh.pop %v1920
    %v1929 = vtanh.pop %v1921
    %v1930 = vtanh.pop %v1922
    %v1931 = vtanh.pop %v1923
    %v1932 = vtanh.pop %v1924
    %v1933 = vtanh.pop %v1925
    %v1934 = vtanh.pop %v1926
    %v1935 = vmul.f32 %v1864, %v1927
    %v1936 = vmul.f32 %v1866, %v1928
    %v1937 = vmul.f32 %v1868, %v1929
    %v1938 = vmul.f32 %v1870, %v1930
    %v1939 = vmul.f32 %v1872, %v1931
    %v1940 = vmul.f32 %v1874, %v1932
    %v1941 = vmul.f32 %v1876, %v1933
    %v1942 = vmul.f32 %v1878, %v1934
    %v1951 = vrot.slane %v1935, 2
    %v1952 = vrot.slane %v1936, 1
    %v1953 = vsel %vm927, %v1952, %v1951
    %v1954 = vsel %vm930, %v1937, %v1953
    %v1955 = vrot.slane %v1938, 7
    %v1956 = vsel %vm933, %v1955, %v1954
    %v1957 = vrot.slane %v1939, 6
    %v1958 = vsel %vm936, %v1957, %v1956
    %v1959 = vrot.slane %v1940, 5
    %v1960 = vsel %vm939, %v1959, %v1958
    %v1961 = vrot.slane %v1941, 4
    %v1962 = vsel %vm942, %v1961, %v1960
    %v1963 = vrot.slane %v1942, 3
    %v1964 = vsel %vm945, %v1963, %v1962
    %1966 = vmatprep.subr.mxu0 %v353
    %1967 = vmatpush1.msra.mxu0 %v352
    %1968 = vmatprep.subr.mxu0 %v357
    %1969 = vmatpush1.msra.mxu0 %v356
    %1970 = vmatprep.subr.mxu0 %v361
    %1971 = vmatpush1.msra.mxu0 %v360
    %1972 = vmatprep.subr.mxu0 %v365
    %1973 = vmatpush1.msra.mxu0 %v364
    %1974 = vmatprep.subr.mxu0 %v369
    %1975 = vmatpush1.msra.mxu0 %v368
    %1976 = vmatprep.subr.mxu0 %v373
    %1977 = vmatpush1.msra.mxu0 %v372
    %1978 = vmatprep.subr.mxu0 %v377
    %1979 = vmatpush1.msra.mxu0 %v376
    %1980 = vmatprep.subr.mxu0 %v381
    %1981 = vmatpush1.msra.mxu0 %v380
    %1982 = vmatprep.subr.mxu0 %v385
    %1983 = vmatpush1.msra.mxu0 %v384
    %1984 = vmatprep.subr.mxu0 %v389
    %1985 = vmatpush1.msra.mxu0 %v388
    %1986 = vmatprep.subr.mxu0 %v393
    %1987 = vmatpush1.msra.mxu0 %v392
    %1988 = vmatprep.subr.mxu0 %v397
    %1989 = vmatpush1.msra.mxu0 %v396
    %1990 = vmatprep.subr.mxu0 %v401
    %1991 = vmatpush1.msra.mxu0 %v400
    %1992 = vmatprep.subr.mxu0 %v405
    %1993 = vmatpush1.msra.mxu0 %v404
    %1994 = vmatprep.subr.mxu0 %v409
    %1995 = vmatpush1.msra.mxu0 %v408
    %1996 = vmatprep.subr.mxu0 %v413
    %1997 = vmatpush1.msra.mxu0 %v412
    %1998 = vmatprep.subr.mxu0 0.0
    %1999 = vmatpush1.msra.mxu0 0.0
    %2000 = vmatprep.subr.mxu0 0.0
    %2001 = vmatpush1.msra.mxu0 0.0
    %2002 = vmatprep.subr.mxu0 0.0
    %2003 = vmatpush1.msra.mxu0 0.0
    %2004 = vmatprep.subr.mxu0 0.0
    %2005 = vmatpush1.msra.mxu0 0.0
    %2006 = vmatprep.subr.mxu0 0.0
    %2007 = vmatpush1.msra.mxu0 0.0
    %2008 = vmatprep.subr.mxu0 0.0
    %2009 = vmatpush1.msra.mxu0 0.0
    %2010 = vmatprep.subr.mxu0 0.0
    %2011 = vmatpush1.msra.mxu0 0.0
    %2012 = vmatprep.subr.mxu0 0.0
    %2013 = vmatpush1.msra.mxu0 0.0
    %2014 = vmatprep.subr.mxu0 0.0
    %2015 = vmatpush1.msra.mxu0 0.0
    %2016 = vmatprep.subr.mxu0 0.0
    %2017 = vmatpush1.msra.mxu0 0.0
    %2018 = vmatprep.subr.mxu0 0.0
    %2019 = vmatpush1.msra.mxu0 0.0
    %2020 = vmatprep.subr.mxu0 0.0
    %2021 = vmatpush1.msra.mxu0 0.0
    %2022 = vmatprep.subr.mxu0 0.0
    %2023 = vmatpush1.msra.mxu0 0.0
    %2024 = vmatprep.subr.mxu0 0.0
    %2025 = vmatpush1.msra.mxu0 0.0
    %2026 = vmatprep.subr.mxu0 0.0
    %2027 = vmatpush1.msra.mxu0 0.0
    %2028 = vmatprep.subr.mxu0 0.0
    %2029 = vmatpush1.msra.mxu0 0.0
    %2030 = vmatprep.mubr.f32.mxu0 0.0
    %2031 = vmatmul.mubr.f32.gmra.mrb[0].mxu0 %v1964
    %v2032 = vpop.f32.mrb[0].mxu0
    %v2033 = vadd.f32 0.0, %v2032
    %v2034 = vpop.f32.mrb[0].mxu0
    %v2035 = vadd.f32 0.0, %v2034
    %2036 = vdwg.mxu0
    %2037 = vmatprep.subr.mxu0 %v355
    %2038 = vmatpush1.msra.mxu0 %v354
    %2039 = vmatprep.subr.mxu0 %v359
    %2040 = vmatpush1.msra.mxu0 %v358
    %2041 = vmatprep.subr.mxu0 %v363
    %2042 = vmatpush1.msra.mxu0 %v362
    %2043 = vmatprep.subr.mxu0 %v367
    %2044 = vmatpush1.msra.mxu0 %v366
    %2045 = vmatprep.subr.mxu0 %v371
    %2046 = vmatpush1.msra.mxu0 %v370
    %2047 = vmatprep.subr.mxu0 %v375
    %2048 = vmatpush1.msra.mxu0 %v374
    %2049 = vmatprep.subr.mxu0 %v379
    %2050 = vmatpush1.msra.mxu0 %v378
    %2051 = vmatprep.subr.mxu0 %v383
    %2052 = vmatpush1.msra.mxu0 %v382
    %2053 = vmatprep.subr.mxu0 %v387
    %2054 = vmatpush1.msra.mxu0 %v386
    %2055 = vmatprep.subr.mxu0 %v391
    %2056 = vmatpush1.msra.mxu0 %v390
    %2057 = vmatprep.subr.mxu0 %v395
    %2058 = vmatpush1.msra.mxu0 %v394
    %2059 = vmatprep.subr.mxu0 %v399
    %2060 = vmatpush1.msra.mxu0 %v398
    %2061 = vmatprep.subr.mxu0 %v403
    %2062 = vmatpush1.msra.mxu0 %v402
    %2063 = vmatprep.subr.mxu0 %v407
    %2064 = vmatpush1.msra.mxu0 %v406
    %2065 = vmatprep.subr.mxu0 %v411
    %2066 = vmatpush1.msra.mxu0 %v410
    %2067 = vmatprep.subr.mxu0 %v415
    %2068 = vmatpush1.msra.mxu0 %v414
    %2069 = vmatprep.subr.mxu0 0.0
    %2070 = vmatpush1.msra.mxu0 0.0
    %2071 = vmatprep.subr.mxu0 0.0
    %2072 = vmatpush1.msra.mxu0 0.0
    %2073 = vmatprep.subr.mxu0 0.0
    %2074 = vmatpush1.msra.mxu0 0.0
    %2075 = vmatprep.subr.mxu0 0.0
    %2076 = vmatpush1.msra.mxu0 0.0
    %2077 = vmatprep.subr.mxu0 0.0
    %2078 = vmatpush1.msra.mxu0 0.0
    %2079 = vmatprep.subr.mxu0 0.0
    %2080 = vmatpush1.msra.mxu0 0.0
    %2081 = vmatprep.subr.mxu0 0.0
    %2082 = vmatpush1.msra.mxu0 0.0
    %2083 = vmatprep.subr.mxu0 0.0
    %2084 = vmatpush1.msra.mxu0 0.0
    %2085 = vmatprep.subr.mxu0 0.0
    %2086 = vmatpush1.msra.mxu0 0.0
    %2087 = vmatprep.subr.mxu0 0.0
    %2088 = vmatpush1.msra.mxu0 0.0
    %2089 = vmatprep.subr.mxu0 0.0
    %2090 = vmatpush1.msra.mxu0 0.0
    %2091 = vmatprep.subr.mxu0 0.0
    %2092 = vmatpush1.msra.mxu0 0.0
    %2093 = vmatprep.subr.mxu0 0.0
    %2094 = vmatpush1.msra.mxu0 0.0
    %2095 = vmatprep.subr.mxu0 0.0
    %2096 = vmatpush1.msra.mxu0 0.0
    %2097 = vmatprep.subr.mxu0 0.0
    %2098 = vmatpush1.msra.mxu0 0.0
    %2099 = vmatprep.subr.mxu0 0.0
    %2100 = vmatpush1.msra.mxu0 0.0
    %2101 = vmatprep.mubr.f32.mxu0 0.0
    %2102 = vmatmul.mubr.f32.gmra.mrb[0].mxu0 %v1964
    %v2103 = vpop.f32.mrb[0].mxu0
    %v2104 = vadd.f32 0.0, %v2103
    %v2105 = vpop.f32.mrb[0].mxu0
    %v2106 = vadd.f32 0.0, %v2105
    %2107 = vdwg.mxu0
    %v2112 = vrot.slane %v2033, 5
    %v2113 = vrot.slane %v2035, 5
    %v2114 = vrot.slane %v2104, 5
    %v2115 = vrot.slane %v2106, 5
    %v2116 = vrot.slane %v2033, 6
    %v2117 = vrot.slane %v2035, 6
    %v2118 = vrot.slane %v2104, 6
    %v2119 = vrot.slane %v2106, 6
    %v2120 = vrot.slane %v2033, 7
    %v2121 = vrot.slane %v2035, 7
    %v2122 = vrot.slane %v2104, 7
    %v2123 = vrot.slane %v2106, 7
    %v2124 = vrot.slane %v2033, 1
    %v2125 = vrot.slane %v2035, 1
    %v2126 = vrot.slane %v2104, 1
    %v2127 = vrot.slane %v2106, 1
    %v2128 = vrot.slane %v2033, 2
    %v2129 = vrot.slane %v2035, 2
    %v2130 = vrot.slane %v2104, 2
    %v2131 = vrot.slane %v2106, 2
    %v2132 = vrot.slane %v2033, 3
    %v2133 = vrot.slane %v2035, 3
    %v2134 = vrot.slane %v2104, 3
    %v2135 = vrot.slane %v2106, 3
    %v2136 = vrot.slane %v2033, 4
    %v2137 = vrot.slane %v2035, 4
    %v2138 = vrot.slane %v2104, 4
    %v2139 = vrot.slane %v2106, 4
    %v2172 = vadd.f32 %v193, %v2112
    %v2173 = vadd.f32 %v195, %v2113
    %v2174 = vadd.f32 %v306, %v2114
    %v2175 = vadd.f32 %v308, %v2115
    %v2176 = vadd.f32 %v199, %v2116
    %v2177 = vadd.f32 %v201, %v2117
    %v2178 = vadd.f32 %v312, %v2118
    %v2179 = vadd.f32 %v314, %v2119
    %v2180 = vadd.f32 %v205, %v2120
    %v2181 = vadd.f32 %v207, %v2121
    %v2182 = vadd.f32 %v318, %v2122
    %v2183 = vadd.f32 %v320, %v2123
    %v2184 = vadd.f32 %v211, %v2033
    %v2185 = vadd.f32 %v213, %v2035
    %v2186 = vadd.f32 %v324, %v2104
    %v2187 = vadd.f32 %v326, %v2106
    %v2188 = vadd.f32 %v217, %v2124
    %v2189 = vadd.f32 %v219, %v2125
    %v2190 = vadd.f32 %v330, %v2126
    %v2191 = vadd.f32 %v332, %v2127
    %v2192 = vadd.f32 %v223, %v2128
    %v2193 = vadd.f32 %v225, %v2129
    %v2194 = vadd.f32 %v336, %v2130
    %v2195 = vadd.f32 %v338, %v2131
    %v2196 = vadd.f32 %v229, %v2132
    %v2197 = vadd.f32 %v231, %v2133
    %v2198 = vadd.f32 %v342, %v2134
    %v2199 = vadd.f32 %v344, %v2135
    %v2200 = vadd.f32 %v235, %v2136
    %v2201 = vadd.f32 %v237, %v2137
    %v2202 = vadd.f32 %v348, %v2138
    %v2203 = vadd.f32 %v350, %v2139
    %v2204 = vadd.f32 %v2172, %v421
    %v2205 = vadd.f32 %v2173, %v425
    %v2206 = vadd.f32 %v2174, %v429
    %v2207 = vadd.f32 %v2175, %v433
    %v2208 = vadd.f32 %v2176, %v421
    %v2209 = vadd.f32 %v2177, %v425
    %v2210 = vadd.f32 %v2178, %v429
    %v2211 = vadd.f32 %v2179, %v433
    %v2212 = vadd.f32 %v2180, %v421
    %v2213 = vadd.f32 %v2181, %v425
    %v2214 = vadd.f32 %v2182, %v429
    %v2215 = vadd.f32 %v2183, %v433
    %v2216 = vadd.f32 %v2184, %v421
    %v2217 = vadd.f32 %v2185, %v425
    %v2218 = vadd.f32 %v2186, %v429
    %v2219 = vadd.f32 %v2187, %v433
    %v2220 = vadd.f32 %v2188, %v421
    %v2221 = vadd.f32 %v2189, %v425
    %v2222 = vadd.f32 %v2190, %v429
    %v2223 = vadd.f32 %v2191, %v433
    %v2224 = vadd.f32 %v2192, %v421
    %v2225 = vadd.f32 %v2193, %v425
    %v2226 = vadd.f32 %v2194, %v429
    %v2227 = vadd.f32 %v2195, %v433
    %v2228 = vadd.f32 %v2196, %v421
    %v2229 = vadd.f32 %v2197, %v425
    %v2230 = vadd.f32 %v2198, %v429
    %v2231 = vadd.f32 %v2199, %v433
    %v2232 = vadd.f32 %v2200, %v421
    %v2233 = vadd.f32 %v2201, %v425
    %v2234 = vadd.f32 %v2202, %v429
    %v2235 = vadd.f32 %v2203, %v433
    %v2236 = vxor.u32 %v2204, 2147483648
    %v2237 = vxor.u32 %v2208, 2147483648
    %v2238 = vxor.u32 %v2212, 2147483648
    %v2239 = vxor.u32 %v2216, 2147483648
    %v2240 = vxor.u32 %v2220, 2147483648
    %v2241 = vxor.u32 %v2224, 2147483648
    %v2242 = vxor.u32 %v2228, 2147483648
    %v2243 = vxor.u32 %v2232, 2147483648
    %v2244 = vmul.f32 %v2236, 1.442695
    %v2245 = vpow.pop %v2244
    %v2246 = vmul.f32 %v2237, 1.442695
    %v2247 = vpow.pop %v2246
    %v2248 = vmul.f32 %v2238, 1.442695
    %v2249 = vpow.pop %v2248
    %v2250 = vmul.f32 %v2239, 1.442695
    %v2251 = vpow.pop %v2250
    %v2252 = vmul.f32 %v2240, 1.442695
    %v2253 = vpow.pop %v2252
    %v2254 = vmul.f32 %v2241, 1.442695
    %v2255 = vpow.pop %v2254
    %v2256 = vmul.f32 %v2242, 1.442695
    %v2257 = vpow.pop %v2256
    %v2258 = vmul.f32 %v2243, 1.442695
    %v2259 = vpow.pop %v2258
    %v2260 = vadd.f32 %v2245, 1.0
    %v2261 = vadd.f32 %v2247, 1.0
    %v2262 = vadd.f32 %v2249, 1.0
    %v2263 = vadd.f32 %v2251, 1.0
    %v2264 = vadd.f32 %v2253, 1.0
    %v2265 = vadd.f32 %v2255, 1.0
    %v2266 = vadd.f32 %v2257, 1.0
    %v2267 = vadd.f32 %v2259, 1.0
    %v2268 = vrcp.pop %v2260
    %v2269 = vmul.f32 1.0, %v2268
    %v2270 = vrcp.pop %v2261
    %v2271 = vmul.f32 1.0, %v2270
    %v2272 = vrcp.pop %v2262
    %v2273 = vmul.f32 1.0, %v2272
    %v2274 = vrcp.pop %v2263
    %v2275 = vmul.f32 1.0, %v2274
    %v2276 = vrcp.pop %v2264
    %v2277 = vmul.f32 1.0, %v2276
    %v2278 = vrcp.pop %v2265
    %v2279 = vmul.f32 1.0, %v2278
    %v2280 = vrcp.pop %v2266
    %v2281 = vmul.f32 1.0, %v2280
    %v2282 = vrcp.pop %v2267
    %v2283 = vmul.f32 1.0, %v2282
    %v2284 = vxor.u32 %v2205, 2147483648
    %v2285 = vxor.u32 %v2209, 2147483648
    %v2286 = vxor.u32 %v2213, 2147483648
    %v2287 = vxor.u32 %v2217, 2147483648
    %v2288 = vxor.u32 %v2221, 2147483648
    %v2289 = vxor.u32 %v2225, 2147483648
    %v2290 = vxor.u32 %v2229, 2147483648
    %v2291 = vxor.u32 %v2233, 2147483648
    %v2292 = vmul.f32 %v2284, 1.442695
    %v2293 = vpow.pop %v2292
    %v2294 = vmul.f32 %v2285, 1.442695
    %v2295 = vpow.pop %v2294
    %v2296 = vmul.f32 %v2286, 1.442695
    %v2297 = vpow.pop %v2296
    %v2298 = vmul.f32 %v2287, 1.442695
    %v2299 = vpow.pop %v2298
    %v2300 = vmul.f32 %v2288, 1.442695
    %v2301 = vpow.pop %v2300
    %v2302 = vmul.f32 %v2289, 1.442695
    %v2303 = vpow.pop %v2302
    %v2304 = vmul.f32 %v2290, 1.442695
    %v2305 = vpow.pop %v2304
    %v2306 = vmul.f32 %v2291, 1.442695
    %v2307 = vpow.pop %v2306
    %v2308 = vadd.f32 %v2293, 1.0
    %v2309 = vadd.f32 %v2295, 1.0
    %v2310 = vadd.f32 %v2297, 1.0
    %v2311 = vadd.f32 %v2299, 1.0
    %v2312 = vadd.f32 %v2301, 1.0
    %v2313 = vadd.f32 %v2303, 1.0
    %v2314 = vadd.f32 %v2305, 1.0
    %v2315 = vadd.f32 %v2307, 1.0
    %v2316 = vrcp.pop %v2308
    %v2317 = vmul.f32 1.0, %v2316
    %v2318 = vrcp.pop %v2309
    %v2319 = vmul.f32 1.0, %v2318
    %v2320 = vrcp.pop %v2310
    %v2321 = vmul.f32 1.0, %v2320
    %v2322 = vrcp.pop %v2311
    %v2323 = vmul.f32 1.0, %v2322
    %v2324 = vrcp.pop %v2312
    %v2325 = vmul.f32 1.0, %v2324
    %v2326 = vrcp.pop %v2313
    %v2327 = vmul.f32 1.0, %v2326
    %v2328 = vrcp.pop %v2314
    %v2329 = vmul.f32 1.0, %v2328
    %v2330 = vrcp.pop %v2315
    %v2331 = vmul.f32 1.0, %v2330
    %v2332 = vtanh.pop %v2206
    %v2333 = vtanh.pop %v2210
    %v2334 = vtanh.pop %v2214
    %v2335 = vtanh.pop %v2218
    %v2336 = vtanh.pop %v2222
    %v2337 = vtanh.pop %v2226
    %v2338 = vtanh.pop %v2230
    %v2339 = vtanh.pop %v2234
    %v2340 = vxor.u32 %v2207, 2147483648
    %v2341 = vxor.u32 %v2211, 2147483648
    %v2342 = vxor.u32 %v2215, 2147483648
    %v2343 = vxor.u32 %v2219, 2147483648
    %v2344 = vxor.u32 %v2223, 2147483648
    %v2345 = vxor.u32 %v2227, 2147483648
    %v2346 = vxor.u32 %v2231, 2147483648
    %v2347 = vxor.u32 %v2235, 2147483648
    %v2348 = vmul.f32 %v2340, 1.442695
    %v2349 = vpow.pop %v2348
    %v2350 = vmul.f32 %v2341, 1.442695
    %v2351 = vpow.pop %v2350
    %v2352 = vmul.f32 %v2342, 1.442695
    %v2353 = vpow.pop %v2352
    %v2354 = vmul.f32 %v2343, 1.442695
    %v2355 = vpow.pop %v2354
    %v2356 = vmul.f32 %v2344, 1.442695
    %v2357 = vpow.pop %v2356
    %v2358 = vmul.f32 %v2345, 1.442695
    %v2359 = vpow.pop %v2358
    %v2360 = vmul.f32 %v2346, 1.442695
    %v2361 = vpow.pop %v2360
    %v2362 = vmul.f32 %v2347, 1.442695
    %v2363 = vpow.pop %v2362
    %v2364 = vadd.f32 %v2349, 1.0
    %v2365 = vadd.f32 %v2351, 1.0
    %v2366 = vadd.f32 %v2353, 1.0
    %v2367 = vadd.f32 %v2355, 1.0
    %v2368 = vadd.f32 %v2357, 1.0
    %v2369 = vadd.f32 %v2359, 1.0
    %v2370 = vadd.f32 %v2361, 1.0
    %v2371 = vadd.f32 %v2363, 1.0
    %v2372 = vrcp.pop %v2364
    %v2373 = vmul.f32 1.0, %v2372
    %v2374 = vrcp.pop %v2365
    %v2375 = vmul.f32 1.0, %v2374
    %v2376 = vrcp.pop %v2366
    %v2377 = vmul.f32 1.0, %v2376
    %v2378 = vrcp.pop %v2367
    %v2379 = vmul.f32 1.0, %v2378
    %v2380 = vrcp.pop %v2368
    %v2381 = vmul.f32 1.0, %v2380
    %v2382 = vrcp.pop %v2369
    %v2383 = vmul.f32 1.0, %v2382
    %v2384 = vrcp.pop %v2370
    %v2385 = vmul.f32 1.0, %v2384
    %v2386 = vrcp.pop %v2371
    %v2387 = vmul.f32 1.0, %v2386
    %v2396 = vrot.slane %v1919, 7
    %v2397 = vrot.slane %v1920, 7
    %v2398 = vrot.slane %v1921, 7
    %v2399 = vrot.slane %v1922, 7
    %v2400 = vrot.slane %v1923, 7
    %v2401 = vrot.slane %v1924, 7
    %v2402 = vrot.slane %v1925, 7
    %v2403 = vrot.slane %v1926, 7
    %v2412 = vmul.f32 %v2317, %v2396
    %v2413 = vmul.f32 %v2319, %v2397
    %v2414 = vmul.f32 %v2321, %v2398
    %v2415 = vmul.f32 %v2323, %v2399
    %v2416 = vmul.f32 %v2325, %v2400
    %v2417 = vmul.f32 %v2327, %v2401
    %v2418 = vmul.f32 %v2329, %v2402
    %v2419 = vmul.f32 %v2331, %v2403
    %v2420 = vmul.f32 %v2269, %v2332
    %v2421 = vmul.f32 %v2271, %v2333
    %v2422 = vmul.f32 %v2273, %v2334
    %v2423 = vmul.f32 %v2275, %v2335
    %v2424 = vmul.f32 %v2277, %v2336
    %v2425 = vmul.f32 %v2279, %v2337
    %v2426 = vmul.f32 %v2281, %v2338
    %v2427 = vmul.f32 %v2283, %v2339
    %v2428 = vadd.f32 %v2412, %v2420
    %v2429 = vadd.f32 %v2413, %v2421
    %v2430 = vadd.f32 %v2414, %v2422
    %v2431 = vadd.f32 %v2415, %v2423
    %v2432 = vadd.f32 %v2416, %v2424
    %v2433 = vadd.f32 %v2417, %v2425
    %v2434 = vadd.f32 %v2418, %v2426
    %v2435 = vadd.f32 %v2419, %v2427
    %v2436 = vtanh.pop %v2428
    %v2437 = vtanh.pop %v2429
    %v2438 = vtanh.pop %v2430
    %v2439 = vtanh.pop %v2431
    %v2440 = vtanh.pop %v2432
    %v2441 = vtanh.pop %v2433
    %v2442 = vtanh.pop %v2434
    %v2443 = vtanh.pop %v2435
    %v2444 = vmul.f32 %v2373, %v2436
    %v2445 = vmul.f32 %v2375, %v2437
    %v2446 = vmul.f32 %v2377, %v2438
    %v2447 = vmul.f32 %v2379, %v2439
    %v2448 = vmul.f32 %v2381, %v2440
    %v2449 = vmul.f32 %v2383, %v2441
    %v2450 = vmul.f32 %v2385, %v2442
    %v2451 = vmul.f32 %v2387, %v2443
    %v2460 = vrot.slane %v2444, 3
    %v2461 = vrot.slane %v2445, 2
    %v2462 = vsel %vm927, %v2461, %v2460
    %v2463 = vrot.slane %v2446, 1
    %v2464 = vsel %vm930, %v2463, %v2462
    %v2465 = vsel %vm933, %v2447, %v2464
    %v2466 = vrot.slane %v2448, 7
    %v2467 = vsel %vm936, %v2466, %v2465
    %v2468 = vrot.slane %v2449, 6
    %v2469 = vsel %vm939, %v2468, %v2467
    %v2470 = vrot.slane %v2450, 5
    %v2471 = vsel %vm942, %v2470, %v2469
    %v2472 = vrot.slane %v2451, 4
    %v2473 = vsel %vm945, %v2472, %v2471
    %2475 = vmatprep.subr.mxu0 %v353
    %2476 = vmatpush1.msra.mxu0 %v352
    %2477 = vmatprep.subr.mxu0 %v357
    %2478 = vmatpush1.msra.mxu0 %v356
    %2479 = vmatprep.subr.mxu0 %v361
    %2480 = vmatpush1.msra.mxu0 %v360
    %2481 = vmatprep.subr.mxu0 %v365
    %2482 = vmatpush1.msra.mxu0 %v364
    %2483 = vmatprep.subr.mxu0 %v369
    %2484 = vmatpush1.msra.mxu0 %v368
    %2485 = vmatprep.subr.mxu0 %v373
    %2486 = vmatpush1.msra.mxu0 %v372
    %2487 = vmatprep.subr.mxu0 %v377
    %2488 = vmatpush1.msra.mxu0 %v376
    %2489 = vmatprep.subr.mxu0 %v381
    %2490 = vmatpush1.msra.mxu0 %v380
    %2491 = vmatprep.subr.mxu0 %v385
    %2492 = vmatpush1.msra.mxu0 %v384
    %2493 = vmatprep.subr.mxu0 %v389
    %2494 = vmatpush1.msra.mxu0 %v388
    %2495 = vmatprep.subr.mxu0 %v393
    %2496 = vmatpush1.msra.mxu0 %v392
    %2497 = vmatprep.subr.mxu0 %v397
    %2498 = vmatpush1.msra.mxu0 %v396
    %2499 = vmatprep.subr.mxu0 %v401
    %2500 = vmatpush1.msra.mxu0 %v400
    %2501 = vmatprep.subr.mxu0 %v405
    %2502 = vmatpush1.msra.mxu0 %v404
    %2503 = vmatprep.subr.mxu0 %v409
    %2504 = vmatpush1.msra.mxu0 %v408
    %2505 = vmatprep.subr.mxu0 %v413
    %2506 = vmatpush1.msra.mxu0 %v412
    %2507 = vmatprep.subr.mxu0 0.0
    %2508 = vmatpush1.msra.mxu0 0.0
    %2509 = vmatprep.subr.mxu0 0.0
    %2510 = vmatpush1.msra.mxu0 0.0
    %2511 = vmatprep.subr.mxu0 0.0
    %2512 = vmatpush1.msra.mxu0 0.0
    %2513 = vmatprep.subr.mxu0 0.0
    %2514 = vmatpush1.msra.mxu0 0.0
    %2515 = vmatprep.subr.mxu0 0.0
    %2516 = vmatpush1.msra.mxu0 0.0
    %2517 = vmatprep.subr.mxu0 0.0
    %2518 = vmatpush1.msra.mxu0 0.0
    %2519 = vmatprep.subr.mxu0 0.0
    %2520 = vmatpush1.msra.mxu0 0.0
    %2521 = vmatprep.subr.mxu0 0.0
    %2522 = vmatpush1.msra.mxu0 0.0
    %2523 = vmatprep.subr.mxu0 0.0
    %2524 = vmatpush1.msra.mxu0 0.0
    %2525 = vmatprep.subr.mxu0 0.0
    %2526 = vmatpush1.msra.mxu0 0.0
    %2527 = vmatprep.subr.mxu0 0.0
    %2528 = vmatpush1.msra.mxu0 0.0
    %2529 = vmatprep.subr.mxu0 0.0
    %2530 = vmatpush1.msra.mxu0 0.0
    %2531 = vmatprep.subr.mxu0 0.0
    %2532 = vmatpush1.msra.mxu0 0.0
    %2533 = vmatprep.subr.mxu0 0.0
    %2534 = vmatpush1.msra.mxu0 0.0
    %2535 = vmatprep.subr.mxu0 0.0
    %2536 = vmatpush1.msra.mxu0 0.0
    %2537 = vmatprep.subr.mxu0 0.0
    %2538 = vmatpush1.msra.mxu0 0.0
    %2539 = vmatprep.mubr.f32.mxu0 0.0
    %2540 = vmatmul.mubr.f32.gmra.mrb[0].mxu0 %v2473
    %v2541 = vpop.f32.mrb[0].mxu0
    %v2542 = vadd.f32 0.0, %v2541
    %v2543 = vpop.f32.mrb[0].mxu0
    %v2544 = vadd.f32 0.0, %v2543
    %2545 = vdwg.mxu0
    %2546 = vmatprep.subr.mxu0 %v355
    %2547 = vmatpush1.msra.mxu0 %v354
    %2548 = vmatprep.subr.mxu0 %v359
    %2549 = vmatpush1.msra.mxu0 %v358
    %2550 = vmatprep.subr.mxu0 %v363
    %2551 = vmatpush1.msra.mxu0 %v362
    %2552 = vmatprep.subr.mxu0 %v367
    %2553 = vmatpush1.msra.mxu0 %v366
    %2554 = vmatprep.subr.mxu0 %v371
    %2555 = vmatpush1.msra.mxu0 %v370
    %2556 = vmatprep.subr.mxu0 %v375
    %2557 = vmatpush1.msra.mxu0 %v374
    %2558 = vmatprep.subr.mxu0 %v379
    %2559 = vmatpush1.msra.mxu0 %v378
    %2560 = vmatprep.subr.mxu0 %v383
    %2561 = vmatpush1.msra.mxu0 %v382
    %2562 = vmatprep.subr.mxu0 %v387
    %2563 = vmatpush1.msra.mxu0 %v386
    %2564 = vmatprep.subr.mxu0 %v391
    %2565 = vmatpush1.msra.mxu0 %v390
    %2566 = vmatprep.subr.mxu0 %v395
    %2567 = vmatpush1.msra.mxu0 %v394
    %2568 = vmatprep.subr.mxu0 %v399
    %2569 = vmatpush1.msra.mxu0 %v398
    %2570 = vmatprep.subr.mxu0 %v403
    %2571 = vmatpush1.msra.mxu0 %v402
    %2572 = vmatprep.subr.mxu0 %v407
    %2573 = vmatpush1.msra.mxu0 %v406
    %2574 = vmatprep.subr.mxu0 %v411
    %2575 = vmatpush1.msra.mxu0 %v410
    %2576 = vmatprep.subr.mxu0 %v415
    %2577 = vmatpush1.msra.mxu0 %v414
    %2578 = vmatprep.subr.mxu0 0.0
    %2579 = vmatpush1.msra.mxu0 0.0
    %2580 = vmatprep.subr.mxu0 0.0
    %2581 = vmatpush1.msra.mxu0 0.0
    %2582 = vmatprep.subr.mxu0 0.0
    %2583 = vmatpush1.msra.mxu0 0.0
    %2584 = vmatprep.subr.mxu0 0.0
    %2585 = vmatpush1.msra.mxu0 0.0
    %2586 = vmatprep.subr.mxu0 0.0
    %2587 = vmatpush1.msra.mxu0 0.0
    %2588 = vmatprep.subr.mxu0 0.0
    %2589 = vmatpush1.msra.mxu0 0.0
    %2590 = vmatprep.subr.mxu0 0.0
    %2591 = vmatpush1.msra.mxu0 0.0
    %2592 = vmatprep.subr.mxu0 0.0
    %2593 = vmatpush1.msra.mxu0 0.0
    %2594 = vmatprep.subr.mxu0 0.0
    %2595 = vmatpush1.msra.mxu0 0.0
    %2596 = vmatprep.subr.mxu0 0.0
    %2597 = vmatpush1.msra.mxu0 0.0
    %2598 = vmatprep.subr.mxu0 0.0
    %2599 = vmatpush1.msra.mxu0 0.0
    %2600 = vmatprep.subr.mxu0 0.0
    %2601 = vmatpush1.msra.mxu0 0.0
    %2602 = vmatprep.subr.mxu0 0.0
    %2603 = vmatpush1.msra.mxu0 0.0
    %2604 = vmatprep.subr.mxu0 0.0
    %2605 = vmatpush1.msra.mxu0 0.0
    %2606 = vmatprep.subr.mxu0 0.0
    %2607 = vmatpush1.msra.mxu0 0.0
    %2608 = vmatprep.subr.mxu0 0.0
    %2609 = vmatpush1.msra.mxu0 0.0
    %2610 = vmatprep.mubr.f32.mxu0 0.0
    %2611 = vmatmul.mubr.f32.gmra.mrb[0].mxu0 %v2473
    %v2612 = vpop.f32.mrb[0].mxu0
    %v2613 = vadd.f32 0.0, %v2612
    %v2614 = vpop.f32.mrb[0].mxu0
    %v2615 = vadd.f32 0.0, %v2614
    %2616 = vdwg.mxu0
    %v2621 = vrot.slane %v2542, 4
    %v2622 = vrot.slane %v2544, 4
    %v2623 = vrot.slane %v2613, 4
    %v2624 = vrot.slane %v2615, 4
    %v2625 = vrot.slane %v2542, 5
    %v2626 = vrot.slane %v2544, 5
    %v2627 = vrot.slane %v2613, 5
    %v2628 = vrot.slane %v2615, 5
    %v2629 = vrot.slane %v2542, 6
    %v2630 = vrot.slane %v2544, 6
    %v2631 = vrot.slane %v2613, 6
    %v2632 = vrot.slane %v2615, 6
    %v2633 = vrot.slane %v2542, 7
    %v2634 = vrot.slane %v2544, 7
    %v2635 = vrot.slane %v2613, 7
    %v2636 = vrot.slane %v2615, 7
    %v2637 = vrot.slane %v2542, 1
    %v2638 = vrot.slane %v2544, 1
    %v2639 = vrot.slane %v2613, 1
    %v2640 = vrot.slane %v2615, 1
    %v2641 = vrot.slane %v2542, 2
    %v2642 = vrot.slane %v2544, 2
    %v2643 = vrot.slane %v2613, 2
    %v2644 = vrot.slane %v2615, 2
    %v2645 = vrot.slane %v2542, 3
    %v2646 = vrot.slane %v2544, 3
    %v2647 = vrot.slane %v2613, 3
    %v2648 = vrot.slane %v2615, 3
    %v2681 = vadd.f32 %v193, %v2621
    %v2682 = vadd.f32 %v195, %v2622
    %v2683 = vadd.f32 %v306, %v2623
    %v2684 = vadd.f32 %v308, %v2624
    %v2685 = vadd.f32 %v199, %v2625
    %v2686 = vadd.f32 %v201, %v2626
    %v2687 = vadd.f32 %v312, %v2627
    %v2688 = vadd.f32 %v314, %v2628
    %v2689 = vadd.f32 %v205, %v2629
    %v2690 = vadd.f32 %v207, %v2630
    %v2691 = vadd.f32 %v318, %v2631
    %v2692 = vadd.f32 %v320, %v2632
    %v2693 = vadd.f32 %v211, %v2633
    %v2694 = vadd.f32 %v213, %v2634
    %v2695 = vadd.f32 %v324, %v2635
    %v2696 = vadd.f32 %v326, %v2636
    %v2697 = vadd.f32 %v217, %v2542
    %v2698 = vadd.f32 %v219, %v2544
    %v2699 = vadd.f32 %v330, %v2613
    %v2700 = vadd.f32 %v332, %v2615
    %v2701 = vadd.f32 %v223, %v2637
    %v2702 = vadd.f32 %v225, %v2638
    %v2703 = vadd.f32 %v336, %v2639
    %v2704 = vadd.f32 %v338, %v2640
    %v2705 = vadd.f32 %v229, %v2641
    %v2706 = vadd.f32 %v231, %v2642
    %v2707 = vadd.f32 %v342, %v2643
    %v2708 = vadd.f32 %v344, %v2644
    %v2709 = vadd.f32 %v235, %v2645
    %v2710 = vadd.f32 %v237, %v2646
    %v2711 = vadd.f32 %v348, %v2647
    %v2712 = vadd.f32 %v350, %v2648
    %v2713 = vadd.f32 %v2681, %v421
    %v2714 = vadd.f32 %v2682, %v425
    %v2715 = vadd.f32 %v2683, %v429
    %v2716 = vadd.f32 %v2684, %v433
    %v2717 = vadd.f32 %v2685, %v421
    %v2718 = vadd.f32 %v2686, %v425
    %v2719 = vadd.f32 %v2687, %v429
    %v2720 = vadd.f32 %v2688, %v433
    %v2721 = vadd.f32 %v2689, %v421
    %v2722 = vadd.f32 %v2690, %v425
    %v2723 = vadd.f32 %v2691, %v429
    %v2724 = vadd.f32 %v2692, %v433
    %v2725 = vadd.f32 %v2693, %v421
    %v2726 = vadd.f32 %v2694, %v425
    %v2727 = vadd.f32 %v2695, %v429
    %v2728 = vadd.f32 %v2696, %v433
    %v2729 = vadd.f32 %v2697, %v421
    %v2730 = vadd.f32 %v2698, %v425
    %v2731 = vadd.f32 %v2699, %v429
    %v2732 = vadd.f32 %v2700, %v433
    %v2733 = vadd.f32 %v2701, %v421
    %v2734 = vadd.f32 %v2702, %v425
    %v2735 = vadd.f32 %v2703, %v429
    %v2736 = vadd.f32 %v2704, %v433
    %v2737 = vadd.f32 %v2705, %v421
    %v2738 = vadd.f32 %v2706, %v425
    %v2739 = vadd.f32 %v2707, %v429
    %v2740 = vadd.f32 %v2708, %v433
    %v2741 = vadd.f32 %v2709, %v421
    %v2742 = vadd.f32 %v2710, %v425
    %v2743 = vadd.f32 %v2711, %v429
    %v2744 = vadd.f32 %v2712, %v433
    %v2745 = vxor.u32 %v2713, 2147483648
    %v2746 = vxor.u32 %v2717, 2147483648
    %v2747 = vxor.u32 %v2721, 2147483648
    %v2748 = vxor.u32 %v2725, 2147483648
    %v2749 = vxor.u32 %v2729, 2147483648
    %v2750 = vxor.u32 %v2733, 2147483648
    %v2751 = vxor.u32 %v2737, 2147483648
    %v2752 = vxor.u32 %v2741, 2147483648
    %v2753 = vmul.f32 %v2745, 1.442695
    %v2754 = vpow.pop %v2753
    %v2755 = vmul.f32 %v2746, 1.442695
    %v2756 = vpow.pop %v2755
    %v2757 = vmul.f32 %v2747, 1.442695
    %v2758 = vpow.pop %v2757
    %v2759 = vmul.f32 %v2748, 1.442695
    %v2760 = vpow.pop %v2759
    %v2761 = vmul.f32 %v2749, 1.442695
    %v2762 = vpow.pop %v2761
    %v2763 = vmul.f32 %v2750, 1.442695
    %v2764 = vpow.pop %v2763
    %v2765 = vmul.f32 %v2751, 1.442695
    %v2766 = vpow.pop %v2765
    %v2767 = vmul.f32 %v2752, 1.442695
    %v2768 = vpow.pop %v2767
    %v2769 = vadd.f32 %v2754, 1.0
    %v2770 = vadd.f32 %v2756, 1.0
    %v2771 = vadd.f32 %v2758, 1.0
    %v2772 = vadd.f32 %v2760, 1.0
    %v2773 = vadd.f32 %v2762, 1.0
    %v2774 = vadd.f32 %v2764, 1.0
    %v2775 = vadd.f32 %v2766, 1.0
    %v2776 = vadd.f32 %v2768, 1.0
    %v2777 = vrcp.pop %v2769
    %v2778 = vmul.f32 1.0, %v2777
    %v2779 = vrcp.pop %v2770
    %v2780 = vmul.f32 1.0, %v2779
    %v2781 = vrcp.pop %v2771
    %v2782 = vmul.f32 1.0, %v2781
    %v2783 = vrcp.pop %v2772
    %v2784 = vmul.f32 1.0, %v2783
    %v2785 = vrcp.pop %v2773
    %v2786 = vmul.f32 1.0, %v2785
    %v2787 = vrcp.pop %v2774
    %v2788 = vmul.f32 1.0, %v2787
    %v2789 = vrcp.pop %v2775
    %v2790 = vmul.f32 1.0, %v2789
    %v2791 = vrcp.pop %v2776
    %v2792 = vmul.f32 1.0, %v2791
    %v2793 = vxor.u32 %v2714, 2147483648
    %v2794 = vxor.u32 %v2718, 2147483648
    %v2795 = vxor.u32 %v2722, 2147483648
    %v2796 = vxor.u32 %v2726, 2147483648
    %v2797 = vxor.u32 %v2730, 2147483648
    %v2798 = vxor.u32 %v2734, 2147483648
    %v2799 = vxor.u32 %v2738, 2147483648
    %v2800 = vxor.u32 %v2742, 2147483648
    %v2801 = vmul.f32 %v2793, 1.442695
    %v2802 = vpow.pop %v2801
    %v2803 = vmul.f32 %v2794, 1.442695
    %v2804 = vpow.pop %v2803
    %v2805 = vmul.f32 %v2795, 1.442695
    %v2806 = vpow.pop %v2805
    %v2807 = vmul.f32 %v2796, 1.442695
    %v2808 = vpow.pop %v2807
    %v2809 = vmul.f32 %v2797, 1.442695
    %v2810 = vpow.pop %v2809
    %v2811 = vmul.f32 %v2798, 1.442695
    %v2812 = vpow.pop %v2811
    %v2813 = vmul.f32 %v2799, 1.442695
    %v2814 = vpow.pop %v2813
    %v2815 = vmul.f32 %v2800, 1.442695
    %v2816 = vpow.pop %v2815
    %v2817 = vadd.f32 %v2802, 1.0
    %v2818 = vadd.f32 %v2804, 1.0
    %v2819 = vadd.f32 %v2806, 1.0
    %v2820 = vadd.f32 %v2808, 1.0
    %v2821 = vadd.f32 %v2810, 1.0
    %v2822 = vadd.f32 %v2812, 1.0
    %v2823 = vadd.f32 %v2814, 1.0
    %v2824 = vadd.f32 %v2816, 1.0
    %v2825 = vrcp.pop %v2817
    %v2826 = vmul.f32 1.0, %v2825
    %v2827 = vrcp.pop %v2818
    %v2828 = vmul.f32 1.0, %v2827
    %v2829 = vrcp.pop %v2819
    %v2830 = vmul.f32 1.0, %v2829
    %v2831 = vrcp.pop %v2820
    %v2832 = vmul.f32 1.0, %v2831
    %v2833 = vrcp.pop %v2821
    %v2834 = vmul.f32 1.0, %v2833
    %v2835 = vrcp.pop %v2822
    %v2836 = vmul.f32 1.0, %v2835
    %v2837 = vrcp.pop %v2823
    %v2838 = vmul.f32 1.0, %v2837
    %v2839 = vrcp.pop %v2824
    %v2840 = vmul.f32 1.0, %v2839
    %v2841 = vtanh.pop %v2715
    %v2842 = vtanh.pop %v2719
    %v2843 = vtanh.pop %v2723
    %v2844 = vtanh.pop %v2727
    %v2845 = vtanh.pop %v2731
    %v2846 = vtanh.pop %v2735
    %v2847 = vtanh.pop %v2739
    %v2848 = vtanh.pop %v2743
    %v2849 = vxor.u32 %v2716, 2147483648
    %v2850 = vxor.u32 %v2720, 2147483648
    %v2851 = vxor.u32 %v2724, 2147483648
    %v2852 = vxor.u32 %v2728, 2147483648
    %v2853 = vxor.u32 %v2732, 2147483648
    %v2854 = vxor.u32 %v2736, 2147483648
    %v2855 = vxor.u32 %v2740, 2147483648
    %v2856 = vxor.u32 %v2744, 2147483648
    %v2857 = vmul.f32 %v2849, 1.442695
    %v2858 = vpow.pop %v2857
    %v2859 = vmul.f32 %v2850, 1.442695
    %v2860 = vpow.pop %v2859
    %v2861 = vmul.f32 %v2851, 1.442695
    %v2862 = vpow.pop %v2861
    %v2863 = vmul.f32 %v2852, 1.442695
    %v2864 = vpow.pop %v2863
    %v2865 = vmul.f32 %v2853, 1.442695
    %v2866 = vpow.pop %v2865
    %v2867 = vmul.f32 %v2854, 1.442695
    %v2868 = vpow.pop %v2867
    %v2869 = vmul.f32 %v2855, 1.442695
    %v2870 = vpow.pop %v2869
    %v2871 = vmul.f32 %v2856, 1.442695
    %v2872 = vpow.pop %v2871
    %v2873 = vadd.f32 %v2858, 1.0
    %v2874 = vadd.f32 %v2860, 1.0
    %v2875 = vadd.f32 %v2862, 1.0
    %v2876 = vadd.f32 %v2864, 1.0
    %v2877 = vadd.f32 %v2866, 1.0
    %v2878 = vadd.f32 %v2868, 1.0
    %v2879 = vadd.f32 %v2870, 1.0
    %v2880 = vadd.f32 %v2872, 1.0
    %v2881 = vrcp.pop %v2873
    %v2882 = vmul.f32 1.0, %v2881
    %v2883 = vrcp.pop %v2874
    %v2884 = vmul.f32 1.0, %v2883
    %v2885 = vrcp.pop %v2875
    %v2886 = vmul.f32 1.0, %v2885
    %v2887 = vrcp.pop %v2876
    %v2888 = vmul.f32 1.0, %v2887
    %v2889 = vrcp.pop %v2877
    %v2890 = vmul.f32 1.0, %v2889
    %v2891 = vrcp.pop %v2878
    %v2892 = vmul.f32 1.0, %v2891
    %v2893 = vrcp.pop %v2879
    %v2894 = vmul.f32 1.0, %v2893
    %v2895 = vrcp.pop %v2880
    %v2896 = vmul.f32 1.0, %v2895
    %v2905 = vrot.slane %v2428, 7
    %v2906 = vrot.slane %v2429, 7
    %v2907 = vrot.slane %v2430, 7
    %v2908 = vrot.slane %v2431, 7
    %v2909 = vrot.slane %v2432, 7
    %v2910 = vrot.slane %v2433, 7
    %v2911 = vrot.slane %v2434, 7
    %v2912 = vrot.slane %v2435, 7
    %v2921 = vmul.f32 %v2826, %v2905
    %v2922 = vmul.f32 %v2828, %v2906
    %v2923 = vmul.f32 %v2830, %v2907
    %v2924 = vmul.f32 %v2832, %v2908
    %v2925 = vmul.f32 %v2834, %v2909
    %v2926 = vmul.f32 %v2836, %v2910
    %v2927 = vmul.f32 %v2838, %v2911
    %v2928 = vmul.f32 %v2840, %v2912
    %v2929 = vmul.f32 %v2778, %v2841
    %v2930 = vmul.f32 %v2780, %v2842
    %v2931 = vmul.f32 %v2782, %v2843
    %v2932 = vmul.f32 %v2784, %v2844
    %v2933 = vmul.f32 %v2786, %v2845
    %v2934 = vmul.f32 %v2788, %v2846
    %v2935 = vmul.f32 %v2790, %v2847
    %v2936 = vmul.f32 %v2792, %v2848
    %v2937 = vadd.f32 %v2921, %v2929
    %v2938 = vadd.f32 %v2922, %v2930
    %v2939 = vadd.f32 %v2923, %v2931
    %v2940 = vadd.f32 %v2924, %v2932
    %v2941 = vadd.f32 %v2925, %v2933
    %v2942 = vadd.f32 %v2926, %v2934
    %v2943 = vadd.f32 %v2927, %v2935
    %v2944 = vadd.f32 %v2928, %v2936
    %v2945 = vtanh.pop %v2937
    %v2946 = vtanh.pop %v2938
    %v2947 = vtanh.pop %v2939
    %v2948 = vtanh.pop %v2940
    %v2949 = vtanh.pop %v2941
    %v2950 = vtanh.pop %v2942
    %v2951 = vtanh.pop %v2943
    %v2952 = vtanh.pop %v2944
    %v2953 = vmul.f32 %v2882, %v2945
    %v2954 = vmul.f32 %v2884, %v2946
    %v2955 = vmul.f32 %v2886, %v2947
    %v2956 = vmul.f32 %v2888, %v2948
    %v2957 = vmul.f32 %v2890, %v2949
    %v2958 = vmul.f32 %v2892, %v2950
    %v2959 = vmul.f32 %v2894, %v2951
    %v2960 = vmul.f32 %v2896, %v2952
    %v2969 = vrot.slane %v2953, 4
    %v2970 = vrot.slane %v2954, 3
    %v2971 = vsel %vm927, %v2970, %v2969
    %v2972 = vrot.slane %v2955, 2
    %v2973 = vsel %vm930, %v2972, %v2971
    %v2974 = vrot.slane %v2956, 1
    %v2975 = vsel %vm933, %v2974, %v2973
    %v2976 = vsel %vm936, %v2957, %v2975
    %v2977 = vrot.slane %v2958, 7
    %v2978 = vsel %vm939, %v2977, %v2976
    %v2979 = vrot.slane %v2959, 6
    %v2980 = vsel %vm942, %v2979, %v2978
    %v2981 = vrot.slane %v2960, 5
    %v2982 = vsel %vm945, %v2981, %v2980
    %2984 = vmatprep.subr.mxu0 %v353
    %2985 = vmatpush1.msra.mxu0 %v352
    %2986 = vmatprep.subr.mxu0 %v357
    %2987 = vmatpush1.msra.mxu0 %v356
    %2988 = vmatprep.subr.mxu0 %v361
    %2989 = vmatpush1.msra.mxu0 %v360
    %2990 = vmatprep.subr.mxu0 %v365
    %2991 = vmatpush1.msra.mxu0 %v364
    %2992 = vmatprep.subr.mxu0 %v369
    %2993 = vmatpush1.msra.mxu0 %v368
    %2994 = vmatprep.subr.mxu0 %v373
    %2995 = vmatpush1.msra.mxu0 %v372
    %2996 = vmatprep.subr.mxu0 %v377
    %2997 = vmatpush1.msra.mxu0 %v376
    %2998 = vmatprep.subr.mxu0 %v381
    %2999 = vmatpush1.msra.mxu0 %v380
    %3000 = vmatprep.subr.mxu0 %v385
    %3001 = vmatpush1.msra.mxu0 %v384
    %3002 = vmatprep.subr.mxu0 %v389
    %3003 = vmatpush1.msra.mxu0 %v388
    %3004 = vmatprep.subr.mxu0 %v393
    %3005 = vmatpush1.msra.mxu0 %v392
    %3006 = vmatprep.subr.mxu0 %v397
    %3007 = vmatpush1.msra.mxu0 %v396
    %3008 = vmatprep.subr.mxu0 %v401
    %3009 = vmatpush1.msra.mxu0 %v400
    %3010 = vmatprep.subr.mxu0 %v405
    %3011 = vmatpush1.msra.mxu0 %v404
    %3012 = vmatprep.subr.mxu0 %v409
    %3013 = vmatpush1.msra.mxu0 %v408
    %3014 = vmatprep.subr.mxu0 %v413
    %3015 = vmatpush1.msra.mxu0 %v412
    %3016 = vmatprep.subr.mxu0 0.0
    %3017 = vmatpush1.msra.mxu0 0.0
    %3018 = vmatprep.subr.mxu0 0.0
    %3019 = vmatpush1.msra.mxu0 0.0
    %3020 = vmatprep.subr.mxu0 0.0
    %3021 = vmatpush1.msra.mxu0 0.0
    %3022 = vmatprep.subr.mxu0 0.0
    %3023 = vmatpush1.msra.mxu0 0.0
    %3024 = vmatprep.subr.mxu0 0.0
    %3025 = vmatpush1.msra.mxu0 0.0
    %3026 = vmatprep.subr.mxu0 0.0
    %3027 = vmatpush1.msra.mxu0 0.0
    %3028 = vmatprep.subr.mxu0 0.0
    %3029 = vmatpush1.msra.mxu0 0.0
    %3030 = vmatprep.subr.mxu0 0.0
    %3031 = vmatpush1.msra.mxu0 0.0
    %3032 = vmatprep.subr.mxu0 0.0
    %3033 = vmatpush1.msra.mxu0 0.0
    %3034 = vmatprep.subr.mxu0 0.0
    %3035 = vmatpush1.msra.mxu0 0.0
    %3036 = vmatprep.subr.mxu0 0.0
    %3037 = vmatpush1.msra.mxu0 0.0
    %3038 = vmatprep.subr.mxu0 0.0
    %3039 = vmatpush1.msra.mxu0 0.0
    %3040 = vmatprep.subr.mxu0 0.0
    %3041 = vmatpush1.msra.mxu0 0.0
    %3042 = vmatprep.subr.mxu0 0.0
    %3043 = vmatpush1.msra.mxu0 0.0
    %3044 = vmatprep.subr.mxu0 0.0
    %3045 = vmatpush1.msra.mxu0 0.0
    %3046 = vmatprep.subr.mxu0 0.0
    %3047 = vmatpush1.msra.mxu0 0.0
    %3048 = vmatprep.mubr.f32.mxu0 0.0
    %3049 = vmatmul.mubr.f32.gmra.mrb[0].mxu0 %v2982
    %v3050 = vpop.f32.mrb[0].mxu0
    %v3051 = vadd.f32 0.0, %v3050
    %v3052 = vpop.f32.mrb[0].mxu0
    %v3053 = vadd.f32 0.0, %v3052
    %3054 = vdwg.mxu0
    %3055 = vmatprep.subr.mxu0 %v355
    %3056 = vmatpush1.msra.mxu0 %v354
    %3057 = vmatprep.subr.mxu0 %v359
    %3058 = vmatpush1.msra.mxu0 %v358
    %3059 = vmatprep.subr.mxu0 %v363
    %3060 = vmatpush1.msra.mxu0 %v362
    %3061 = vmatprep.subr.mxu0 %v367
    %3062 = vmatpush1.msra.mxu0 %v366
    %3063 = vmatprep.subr.mxu0 %v371
    %3064 = vmatpush1.msra.mxu0 %v370
    %3065 = vmatprep.subr.mxu0 %v375
    %3066 = vmatpush1.msra.mxu0 %v374
    %3067 = vmatprep.subr.mxu0 %v379
    %3068 = vmatpush1.msra.mxu0 %v378
    %3069 = vmatprep.subr.mxu0 %v383
    %3070 = vmatpush1.msra.mxu0 %v382
    %3071 = vmatprep.subr.mxu0 %v387
    %3072 = vmatpush1.msra.mxu0 %v386
    %3073 = vmatprep.subr.mxu0 %v391
    %3074 = vmatpush1.msra.mxu0 %v390
    %3075 = vmatprep.subr.mxu0 %v395
    %3076 = vmatpush1.msra.mxu0 %v394
    %3077 = vmatprep.subr.mxu0 %v399
    %3078 = vmatpush1.msra.mxu0 %v398
    %3079 = vmatprep.subr.mxu0 %v403
    %3080 = vmatpush1.msra.mxu0 %v402
    %3081 = vmatprep.subr.mxu0 %v407
    %3082 = vmatpush1.msra.mxu0 %v406
    %3083 = vmatprep.subr.mxu0 %v411
    %3084 = vmatpush1.msra.mxu0 %v410
    %3085 = vmatprep.subr.mxu0 %v415
    %3086 = vmatpush1.msra.mxu0 %v414
    %3087 = vmatprep.subr.mxu0 0.0
    %3088 = vmatpush1.msra.mxu0 0.0
    %3089 = vmatprep.subr.mxu0 0.0
    %3090 = vmatpush1.msra.mxu0 0.0
    %3091 = vmatprep.subr.mxu0 0.0
    %3092 = vmatpush1.msra.mxu0 0.0
    %3093 = vmatprep.subr.mxu0 0.0
    %3094 = vmatpush1.msra.mxu0 0.0
    %3095 = vmatprep.subr.mxu0 0.0
    %3096 = vmatpush1.msra.mxu0 0.0
    %3097 = vmatprep.subr.mxu0 0.0
    %3098 = vmatpush1.msra.mxu0 0.0
    %3099 = vmatprep.subr.mxu0 0.0
    %3100 = vmatpush1.msra.mxu0 0.0
    %3101 = vmatprep.subr.mxu0 0.0
    %3102 = vmatpush1.msra.mxu0 0.0
    %3103 = vmatprep.subr.mxu0 0.0
    %3104 = vmatpush1.msra.mxu0 0.0
    %3105 = vmatprep.subr.mxu0 0.0
    %3106 = vmatpush1.msra.mxu0 0.0
    %3107 = vmatprep.subr.mxu0 0.0
    %3108 = vmatpush1.msra.mxu0 0.0
    %3109 = vmatprep.subr.mxu0 0.0
    %3110 = vmatpush1.msra.mxu0 0.0
    %3111 = vmatprep.subr.mxu0 0.0
    %3112 = vmatpush1.msra.mxu0 0.0
    %3113 = vmatprep.subr.mxu0 0.0
    %3114 = vmatpush1.msra.mxu0 0.0
    %3115 = vmatprep.subr.mxu0 0.0
    %3116 = vmatpush1.msra.mxu0 0.0
    %3117 = vmatprep.subr.mxu0 0.0
    %3118 = vmatpush1.msra.mxu0 0.0
    %3119 = vmatprep.mubr.f32.mxu0 0.0
    %3120 = vmatmul.mubr.f32.gmra.mrb[0].mxu0 %v2982
    %v3121 = vpop.f32.mrb[0].mxu0
    %v3122 = vadd.f32 0.0, %v3121
    %v3123 = vpop.f32.mrb[0].mxu0
    %v3124 = vadd.f32 0.0, %v3123
    %3125 = vdwg.mxu0
    %v3130 = vrot.slane %v3051, 3
    %v3131 = vrot.slane %v3053, 3
    %v3132 = vrot.slane %v3122, 3
    %v3133 = vrot.slane %v3124, 3
    %v3134 = vrot.slane %v3051, 4
    %v3135 = vrot.slane %v3053, 4
    %v3136 = vrot.slane %v3122, 4
    %v3137 = vrot.slane %v3124, 4
    %v3138 = vrot.slane %v3051, 5
    %v3139 = vrot.slane %v3053, 5
    %v3140 = vrot.slane %v3122, 5
    %v3141 = vrot.slane %v3124, 5
    %v3142 = vrot.slane %v3051, 6
    %v3143 = vrot.slane %v3053, 6
    %v3144 = vrot.slane %v3122, 6
    %v3145 = vrot.slane %v3124, 6
    %v3146 = vrot.slane %v3051, 7
    %v3147 = vrot.slane %v3053, 7
    %v3148 = vrot.slane %v3122, 7
    %v3149 = vrot.slane %v3124, 7
    %v3150 = vrot.slane %v3051, 1
    %v3151 = vrot.slane %v3053, 1
    %v3152 = vrot.slane %v3122, 1
    %v3153 = vrot.slane %v3124, 1
    %v3154 = vrot.slane %v3051, 2
    %v3155 = vrot.slane %v3053, 2
    %v3156 = vrot.slane %v3122, 2
    %v3157 = vrot.slane %v3124, 2
    %v3190 = vadd.f32 %v193, %v3130
    %v3191 = vadd.f32 %v195, %v3131
    %v3192 = vadd.f32 %v306, %v3132
    %v3193 = vadd.f32 %v308, %v3133
    %v3194 = vadd.f32 %v199, %v3134
    %v3195 = vadd.f32 %v201, %v3135
    %v3196 = vadd.f32 %v312, %v3136
    %v3197 = vadd.f32 %v314, %v3137
    %v3198 = vadd.f32 %v205, %v3138
    %v3199 = vadd.f32 %v207, %v3139
    %v3200 = vadd.f32 %v318, %v3140
    %v3201 = vadd.f32 %v320, %v3141
    %v3202 = vadd.f32 %v211, %v3142
    %v3203 = vadd.f32 %v213, %v3143
    %v3204 = vadd.f32 %v324, %v3144
    %v3205 = vadd.f32 %v326, %v3145
    %v3206 = vadd.f32 %v217, %v3146
    %v3207 = vadd.f32 %v219, %v3147
    %v3208 = vadd.f32 %v330, %v3148
    %v3209 = vadd.f32 %v332, %v3149
    %v3210 = vadd.f32 %v223, %v3051
    %v3211 = vadd.f32 %v225, %v3053
    %v3212 = vadd.f32 %v336, %v3122
    %v3213 = vadd.f32 %v338, %v3124
    %v3214 = vadd.f32 %v229, %v3150
    %v3215 = vadd.f32 %v231, %v3151
    %v3216 = vadd.f32 %v342, %v3152
    %v3217 = vadd.f32 %v344, %v3153
    %v3218 = vadd.f32 %v235, %v3154
    %v3219 = vadd.f32 %v237, %v3155
    %v3220 = vadd.f32 %v348, %v3156
    %v3221 = vadd.f32 %v350, %v3157
    %v3222 = vadd.f32 %v3190, %v421
    %v3223 = vadd.f32 %v3191, %v425
    %v3224 = vadd.f32 %v3192, %v429
    %v3225 = vadd.f32 %v3193, %v433
    %v3226 = vadd.f32 %v3194, %v421
    %v3227 = vadd.f32 %v3195, %v425
    %v3228 = vadd.f32 %v3196, %v429
    %v3229 = vadd.f32 %v3197, %v433
    %v3230 = vadd.f32 %v3198, %v421
    %v3231 = vadd.f32 %v3199, %v425
    %v3232 = vadd.f32 %v3200, %v429
    %v3233 = vadd.f32 %v3201, %v433
    %v3234 = vadd.f32 %v3202, %v421
    %v3235 = vadd.f32 %v3203, %v425
    %v3236 = vadd.f32 %v3204, %v429
    %v3237 = vadd.f32 %v3205, %v433
    %v3238 = vadd.f32 %v3206, %v421
    %v3239 = vadd.f32 %v3207, %v425
    %v3240 = vadd.f32 %v3208, %v429
    %v3241 = vadd.f32 %v3209, %v433
    %v3242 = vadd.f32 %v3210, %v421
    %v3243 = vadd.f32 %v3211, %v425
    %v3244 = vadd.f32 %v3212, %v429
    %v3245 = vadd.f32 %v3213, %v433
    %v3246 = vadd.f32 %v3214, %v421
    %v3247 = vadd.f32 %v3215, %v425
    %v3248 = vadd.f32 %v3216, %v429
    %v3249 = vadd.f32 %v3217, %v433
    %v3250 = vadd.f32 %v3218, %v421
    %v3251 = vadd.f32 %v3219, %v425
    %v3252 = vadd.f32 %v3220, %v429
    %v3253 = vadd.f32 %v3221, %v433
    %v3254 = vxor.u32 %v3222, 2147483648
    %v3255 = vxor.u32 %v3226, 2147483648
    %v3256 = vxor.u32 %v3230, 2147483648
    %v3257 = vxor.u32 %v3234, 2147483648
    %v3258 = vxor.u32 %v3238, 2147483648
    %v3259 = vxor.u32 %v3242, 2147483648
    %v3260 = vxor.u32 %v3246, 2147483648
    %v3261 = vxor.u32 %v3250, 2147483648
    %v3262 = vmul.f32 %v3254, 1.442695
    %v3263 = vpow.pop %v3262
    %v3264 = vmul.f32 %v3255, 1.442695
    %v3265 = vpow.pop %v3264
    %v3266 = vmul.f32 %v3256, 1.442695
    %v3267 = vpow.pop %v3266
    %v3268 = vmul.f32 %v3257, 1.442695
    %v3269 = vpow.pop %v3268
    %v3270 = vmul.f32 %v3258, 1.442695
    %v3271 = vpow.pop %v3270
    %v3272 = vmul.f32 %v3259, 1.442695
    %v3273 = vpow.pop %v3272
    %v3274 = vmul.f32 %v3260, 1.442695
    %v3275 = vpow.pop %v3274
    %v3276 = vmul.f32 %v3261, 1.442695
    %v3277 = vpow.pop %v3276
    %v3278 = vadd.f32 %v3263, 1.0
    %v3279 = vadd.f32 %v3265, 1.0
    %v3280 = vadd.f32 %v3267, 1.0
    %v3281 = vadd.f32 %v3269, 1.0
    %v3282 = vadd.f32 %v3271, 1.0
    %v3283 = vadd.f32 %v3273, 1.0
    %v3284 = vadd.f32 %v3275, 1.0
    %v3285 = vadd.f32 %v3277, 1.0
    %v3286 = vrcp.pop %v3278
    %v3287 = vmul.f32 1.0, %v3286
    %v3288 = vrcp.pop %v3279
    %v3289 = vmul.f32 1.0, %v3288
    %v3290 = vrcp.pop %v3280
    %v3291 = vmul.f32 1.0, %v3290
    %v3292 = vrcp.pop %v3281
    %v3293 = vmul.f32 1.0, %v3292
    %v3294 = vrcp.pop %v3282
    %v3295 = vmul.f32 1.0, %v3294
    %v3296 = vrcp.pop %v3283
    %v3297 = vmul.f32 1.0, %v3296
    %v3298 = vrcp.pop %v3284
    %v3299 = vmul.f32 1.0, %v3298
    %v3300 = vrcp.pop %v3285
    %v3301 = vmul.f32 1.0, %v3300
    %v3302 = vxor.u32 %v3223, 2147483648
    %v3303 = vxor.u32 %v3227, 2147483648
    %v3304 = vxor.u32 %v3231, 2147483648
    %v3305 = vxor.u32 %v3235, 2147483648
    %v3306 = vxor.u32 %v3239, 2147483648
    %v3307 = vxor.u32 %v3243, 2147483648
    %v3308 = vxor.u32 %v3247, 2147483648
    %v3309 = vxor.u32 %v3251, 2147483648
    %v3310 = vmul.f32 %v3302, 1.442695
    %v3311 = vpow.pop %v3310
    %v3312 = vmul.f32 %v3303, 1.442695
    %v3313 = vpow.pop %v3312
    %v3314 = vmul.f32 %v3304, 1.442695
    %v3315 = vpow.pop %v3314
    %v3316 = vmul.f32 %v3305, 1.442695
    %v3317 = vpow.pop %v3316
    %v3318 = vmul.f32 %v3306, 1.442695
    %v3319 = vpow.pop %v3318
    %v3320 = vmul.f32 %v3307, 1.442695
    %v3321 = vpow.pop %v3320
    %v3322 = vmul.f32 %v3308, 1.442695
    %v3323 = vpow.pop %v3322
    %v3324 = vmul.f32 %v3309, 1.442695
    %v3325 = vpow.pop %v3324
    %v3326 = vadd.f32 %v3311, 1.0
    %v3327 = vadd.f32 %v3313, 1.0
    %v3328 = vadd.f32 %v3315, 1.0
    %v3329 = vadd.f32 %v3317, 1.0
    %v3330 = vadd.f32 %v3319, 1.0
    %v3331 = vadd.f32 %v3321, 1.0
    %v3332 = vadd.f32 %v3323, 1.0
    %v3333 = vadd.f32 %v3325, 1.0
    %v3334 = vrcp.pop %v3326
    %v3335 = vmul.f32 1.0, %v3334
    %v3336 = vrcp.pop %v3327
    %v3337 = vmul.f32 1.0, %v3336
    %v3338 = vrcp.pop %v3328
    %v3339 = vmul.f32 1.0, %v3338
    %v3340 = vrcp.pop %v3329
    %v3341 = vmul.f32 1.0, %v3340
    %v3342 = vrcp.pop %v3330
    %v3343 = vmul.f32 1.0, %v3342
    %v3344 = vrcp.pop %v3331
    %v3345 = vmul.f32 1.0, %v3344
    %v3346 = vrcp.pop %v3332
    %v3347 = vmul.f32 1.0, %v3346
    %v3348 = vrcp.pop %v3333
    %v3349 = vmul.f32 1.0, %v3348
    %v3350 = vtanh.pop %v3224
    %v3351 = vtanh.pop %v3228
    %v3352 = vtanh.pop %v3232
    %v3353 = vtanh.pop %v3236
    %v3354 = vtanh.pop %v3240
    %v3355 = vtanh.pop %v3244
    %v3356 = vtanh.pop %v3248
    %v3357 = vtanh.pop %v3252
    %v3358 = vxor.u32 %v3225, 2147483648
    %v3359 = vxor.u32 %v3229, 2147483648
    %v3360 = vxor.u32 %v3233, 2147483648
    %v3361 = vxor.u32 %v3237, 2147483648
    %v3362 = vxor.u32 %v3241, 2147483648
    %v3363 = vxor.u32 %v3245, 2147483648
    %v3364 = vxor.u32 %v3249, 2147483648
    %v3365 = vxor.u32 %v3253, 2147483648
    %v3366 = vmul.f32 %v3358, 1.442695
    %v3367 = vpow.pop %v3366
    %v3368 = vmul.f32 %v3359, 1.442695
    %v3369 = vpow.pop %v3368
    %v3370 = vmul.f32 %v3360, 1.442695
    %v3371 = vpow.pop %v3370
    %v3372 = vmul.f32 %v3361, 1.442695
    %v3373 = vpow.pop %v3372
    %v3374 = vmul.f32 %v3362, 1.442695
    %v3375 = vpow.pop %v3374
    %v3376 = vmul.f32 %v3363, 1.442695
    %v3377 = vpow.pop %v3376
    %v3378 = vmul.f32 %v3364, 1.442695
    %v3379 = vpow.pop %v3378
    %v3380 = vmul.f32 %v3365, 1.442695
    %v3381 = vpow.pop %v3380
    %v3382 = vadd.f32 %v3367, 1.0
    %v3383 = vadd.f32 %v3369, 1.0
    %v3384 = vadd.f32 %v3371, 1.0
    %v3385 = vadd.f32 %v3373, 1.0
    %v3386 = vadd.f32 %v3375, 1.0
    %v3387 = vadd.f32 %v3377, 1.0
    %v3388 = vadd.f32 %v3379, 1.0
    %v3389 = vadd.f32 %v3381, 1.0
    %v3390 = vrcp.pop %v3382
    %v3391 = vmul.f32 1.0, %v3390
    %v3392 = vrcp.pop %v3383
    %v3393 = vmul.f32 1.0, %v3392
    %v3394 = vrcp.pop %v3384
    %v3395 = vmul.f32 1.0, %v3394
    %v3396 = vrcp.pop %v3385
    %v3397 = vmul.f32 1.0, %v3396
    %v3398 = vrcp.pop %v3386
    %v3399 = vmul.f32 1.0, %v3398
    %v3400 = vrcp.pop %v3387
    %v3401 = vmul.f32 1.0, %v3400
    %v3402 = vrcp.pop %v3388
    %v3403 = vmul.f32 1.0, %v3402
    %v3404 = vrcp.pop %v3389
    %v3405 = vmul.f32 1.0, %v3404
    %v3414 = vrot.slane %v2937, 7
    %v3415 = vrot.slane %v2938, 7
    %v3416 = vrot.slane %v2939, 7
    %v3417 = vrot.slane %v2940, 7
    %v3418 = vrot.slane %v2941, 7
    %v3419 = vrot.slane %v2942, 7
    %v3420 = vrot.slane %v2943, 7
    %v3421 = vrot.slane %v2944, 7
    %v3430 = vmul.f32 %v3335, %v3414
    %v3431 = vmul.f32 %v3337, %v3415
    %v3432 = vmul.f32 %v3339, %v3416
    %v3433 = vmul.f32 %v3341, %v3417
    %v3434 = vmul.f32 %v3343, %v3418
    %v3435 = vmul.f32 %v3345, %v3419
    %v3436 = vmul.f32 %v3347, %v3420
    %v3437 = vmul.f32 %v3349, %v3421
    %v3438 = vmul.f32 %v3287, %v3350
    %v3439 = vmul.f32 %v3289, %v3351
    %v3440 = vmul.f32 %v3291, %v3352
    %v3441 = vmul.f32 %v3293, %v3353
    %v3442 = vmul.f32 %v3295, %v3354
    %v3443 = vmul.f32 %v3297, %v3355
    %v3444 = vmul.f32 %v3299, %v3356
    %v3445 = vmul.f32 %v3301, %v3357
    %v3446 = vadd.f32 %v3430, %v3438
    %v3447 = vadd.f32 %v3431, %v3439
    %v3448 = vadd.f32 %v3432, %v3440
    %v3449 = vadd.f32 %v3433, %v3441
    %v3450 = vadd.f32 %v3434, %v3442
    %v3451 = vadd.f32 %v3435, %v3443
    %v3452 = vadd.f32 %v3436, %v3444
    %v3453 = vadd.f32 %v3437, %v3445
    %v3454 = vtanh.pop %v3446
    %v3455 = vtanh.pop %v3447
    %v3456 = vtanh.pop %v3448
    %v3457 = vtanh.pop %v3449
    %v3458 = vtanh.pop %v3450
    %v3459 = vtanh.pop %v3451
    %v3460 = vtanh.pop %v3452
    %v3461 = vtanh.pop %v3453
    %v3462 = vmul.f32 %v3391, %v3454
    %v3463 = vmul.f32 %v3393, %v3455
    %v3464 = vmul.f32 %v3395, %v3456
    %v3465 = vmul.f32 %v3397, %v3457
    %v3466 = vmul.f32 %v3399, %v3458
    %v3467 = vmul.f32 %v3401, %v3459
    %v3468 = vmul.f32 %v3403, %v3460
    %v3469 = vmul.f32 %v3405, %v3461
    %v3478 = vrot.slane %v3462, 5
    %v3479 = vrot.slane %v3463, 4
    %v3480 = vsel %vm927, %v3479, %v3478
    %v3481 = vrot.slane %v3464, 3
    %v3482 = vsel %vm930, %v3481, %v3480
    %v3483 = vrot.slane %v3465, 2
    %v3484 = vsel %vm933, %v3483, %v3482
    %v3485 = vrot.slane %v3466, 1
    %v3486 = vsel %vm936, %v3485, %v3484
    %v3487 = vsel %vm939, %v3467, %v3486
    %v3488 = vrot.slane %v3468, 7
    %v3489 = vsel %vm942, %v3488, %v3487
    %v3490 = vrot.slane %v3469, 6
    %v3491 = vsel %vm945, %v3490, %v3489
    %3493 = vmatprep.subr.mxu0 %v353
    %3494 = vmatpush1.msra.mxu0 %v352
    %3495 = vmatprep.subr.mxu0 %v357
    %3496 = vmatpush1.msra.mxu0 %v356
    %3497 = vmatprep.subr.mxu0 %v361
    %3498 = vmatpush1.msra.mxu0 %v360
    %3499 = vmatprep.subr.mxu0 %v365
    %3500 = vmatpush1.msra.mxu0 %v364
    %3501 = vmatprep.subr.mxu0 %v369
    %3502 = vmatpush1.msra.mxu0 %v368
    %3503 = vmatprep.subr.mxu0 %v373
    %3504 = vmatpush1.msra.mxu0 %v372
    %3505 = vmatprep.subr.mxu0 %v377
    %3506 = vmatpush1.msra.mxu0 %v376
    %3507 = vmatprep.subr.mxu0 %v381
    %3508 = vmatpush1.msra.mxu0 %v380
    %3509 = vmatprep.subr.mxu0 %v385
    %3510 = vmatpush1.msra.mxu0 %v384
    %3511 = vmatprep.subr.mxu0 %v389
    %3512 = vmatpush1.msra.mxu0 %v388
    %3513 = vmatprep.subr.mxu0 %v393
    %3514 = vmatpush1.msra.mxu0 %v392
    %3515 = vmatprep.subr.mxu0 %v397
    %3516 = vmatpush1.msra.mxu0 %v396
    %3517 = vmatprep.subr.mxu0 %v401
    %3518 = vmatpush1.msra.mxu0 %v400
    %3519 = vmatprep.subr.mxu0 %v405
    %3520 = vmatpush1.msra.mxu0 %v404
    %3521 = vmatprep.subr.mxu0 %v409
    %3522 = vmatpush1.msra.mxu0 %v408
    %3523 = vmatprep.subr.mxu0 %v413
    %3524 = vmatpush1.msra.mxu0 %v412
    %3525 = vmatprep.subr.mxu0 0.0
    %3526 = vmatpush1.msra.mxu0 0.0
    %3527 = vmatprep.subr.mxu0 0.0
    %3528 = vmatpush1.msra.mxu0 0.0
    %3529 = vmatprep.subr.mxu0 0.0
    %3530 = vmatpush1.msra.mxu0 0.0
    %3531 = vmatprep.subr.mxu0 0.0
    %3532 = vmatpush1.msra.mxu0 0.0
    %3533 = vmatprep.subr.mxu0 0.0
    %3534 = vmatpush1.msra.mxu0 0.0
    %3535 = vmatprep.subr.mxu0 0.0
    %3536 = vmatpush1.msra.mxu0 0.0
    %3537 = vmatprep.subr.mxu0 0.0
    %3538 = vmatpush1.msra.mxu0 0.0
    %3539 = vmatprep.subr.mxu0 0.0
    %3540 = vmatpush1.msra.mxu0 0.0
    %3541 = vmatprep.subr.mxu0 0.0
    %3542 = vmatpush1.msra.mxu0 0.0
    %3543 = vmatprep.subr.mxu0 0.0
    %3544 = vmatpush1.msra.mxu0 0.0
    %3545 = vmatprep.subr.mxu0 0.0
    %3546 = vmatpush1.msra.mxu0 0.0
    %3547 = vmatprep.subr.mxu0 0.0
    %3548 = vmatpush1.msra.mxu0 0.0
    %3549 = vmatprep.subr.mxu0 0.0
    %3550 = vmatpush1.msra.mxu0 0.0
    %3551 = vmatprep.subr.mxu0 0.0
    %3552 = vmatpush1.msra.mxu0 0.0
    %3553 = vmatprep.subr.mxu0 0.0
    %3554 = vmatpush1.msra.mxu0 0.0
    %3555 = vmatprep.subr.mxu0 0.0
    %3556 = vmatpush1.msra.mxu0 0.0
    %3557 = vmatprep.mubr.f32.mxu0 0.0
    %3558 = vmatmul.mubr.f32.gmra.mrb[0].mxu0 %v3491
    %v3559 = vpop.f32.mrb[0].mxu0
    %v3560 = vadd.f32 0.0, %v3559
    %v3561 = vpop.f32.mrb[0].mxu0
    %v3562 = vadd.f32 0.0, %v3561
    %3563 = vdwg.mxu0
    %3564 = vmatprep.subr.mxu0 %v355
    %3565 = vmatpush1.msra.mxu0 %v354
    %3566 = vmatprep.subr.mxu0 %v359
    %3567 = vmatpush1.msra.mxu0 %v358
    %3568 = vmatprep.subr.mxu0 %v363
    %3569 = vmatpush1.msra.mxu0 %v362
    %3570 = vmatprep.subr.mxu0 %v367
    %3571 = vmatpush1.msra.mxu0 %v366
    %3572 = vmatprep.subr.mxu0 %v371
    %3573 = vmatpush1.msra.mxu0 %v370
    %3574 = vmatprep.subr.mxu0 %v375
    %3575 = vmatpush1.msra.mxu0 %v374
    %3576 = vmatprep.subr.mxu0 %v379
    %3577 = vmatpush1.msra.mxu0 %v378
    %3578 = vmatprep.subr.mxu0 %v383
    %3579 = vmatpush1.msra.mxu0 %v382
    %3580 = vmatprep.subr.mxu0 %v387
    %3581 = vmatpush1.msra.mxu0 %v386
    %3582 = vmatprep.subr.mxu0 %v391
    %3583 = vmatpush1.msra.mxu0 %v390
    %3584 = vmatprep.subr.mxu0 %v395
    %3585 = vmatpush1.msra.mxu0 %v394
    %3586 = vmatprep.subr.mxu0 %v399
    %3587 = vmatpush1.msra.mxu0 %v398
    %3588 = vmatprep.subr.mxu0 %v403
    %3589 = vmatpush1.msra.mxu0 %v402
    %3590 = vmatprep.subr.mxu0 %v407
    %3591 = vmatpush1.msra.mxu0 %v406
    %3592 = vmatprep.subr.mxu0 %v411
    %3593 = vmatpush1.msra.mxu0 %v410
    %3594 = vmatprep.subr.mxu0 %v415
    %3595 = vmatpush1.msra.mxu0 %v414
    %3596 = vmatprep.subr.mxu0 0.0
    %3597 = vmatpush1.msra.mxu0 0.0
    %3598 = vmatprep.subr.mxu0 0.0
    %3599 = vmatpush1.msra.mxu0 0.0
    %3600 = vmatprep.subr.mxu0 0.0
    %3601 = vmatpush1.msra.mxu0 0.0
    %3602 = vmatprep.subr.mxu0 0.0
    %3603 = vmatpush1.msra.mxu0 0.0
    %3604 = vmatprep.subr.mxu0 0.0
    %3605 = vmatpush1.msra.mxu0 0.0
    %3606 = vmatprep.subr.mxu0 0.0
    %3607 = vmatpush1.msra.mxu0 0.0
    %3608 = vmatprep.subr.mxu0 0.0
    %3609 = vmatpush1.msra.mxu0 0.0
    %3610 = vmatprep.subr.mxu0 0.0
    %3611 = vmatpush1.msra.mxu0 0.0
    %3612 = vmatprep.subr.mxu0 0.0
    %3613 = vmatpush1.msra.mxu0 0.0
    %3614 = vmatprep.subr.mxu0 0.0
    %3615 = vmatpush1.msra.mxu0 0.0
    %3616 = vmatprep.subr.mxu0 0.0
    %3617 = vmatpush1.msra.mxu0 0.0
    %3618 = vmatprep.subr.mxu0 0.0
    %3619 = vmatpush1.msra.mxu0 0.0
    %3620 = vmatprep.subr.mxu0 0.0
    %3621 = vmatpush1.msra.mxu0 0.0
    %3622 = vmatprep.subr.mxu0 0.0
    %3623 = vmatpush1.msra.mxu0 0.0
    %3624 = vmatprep.subr.mxu0 0.0
    %3625 = vmatpush1.msra.mxu0 0.0
    %3626 = vmatprep.subr.mxu0 0.0
    %3627 = vmatpush1.msra.mxu0 0.0
    %3628 = vmatprep.mubr.f32.mxu0 0.0
    %3629 = vmatmul.mubr.f32.gmra.mrb[0].mxu0 %v3491
    %v3630 = vpop.f32.mrb[0].mxu0
    %v3631 = vadd.f32 0.0, %v3630
    %v3632 = vpop.f32.mrb[0].mxu0
    %v3633 = vadd.f32 0.0, %v3632
    %3634 = vdwg.mxu0
    %v3639 = vrot.slane %v3560, 2
    %v3640 = vrot.slane %v3562, 2
    %v3641 = vrot.slane %v3631, 2
    %v3642 = vrot.slane %v3633, 2
    %v3643 = vrot.slane %v3560, 3
    %v3644 = vrot.slane %v3562, 3
    %v3645 = vrot.slane %v3631, 3
    %v3646 = vrot.slane %v3633, 3
    %v3647 = vrot.slane %v3560, 4
    %v3648 = vrot.slane %v3562, 4
    %v3649 = vrot.slane %v3631, 4
    %v3650 = vrot.slane %v3633, 4
    %v3651 = vrot.slane %v3560, 5
    %v3652 = vrot.slane %v3562, 5
    %v3653 = vrot.slane %v3631, 5
    %v3654 = vrot.slane %v3633, 5
    %v3655 = vrot.slane %v3560, 6
    %v3656 = vrot.slane %v3562, 6
    %v3657 = vrot.slane %v3631, 6
    %v3658 = vrot.slane %v3633, 6
    %v3659 = vrot.slane %v3560, 7
    %v3660 = vrot.slane %v3562, 7
    %v3661 = vrot.slane %v3631, 7
    %v3662 = vrot.slane %v3633, 7
    %v3663 = vrot.slane %v3560, 1
    %v3664 = vrot.slane %v3562, 1
    %v3665 = vrot.slane %v3631, 1
    %v3666 = vrot.slane %v3633, 1
    %v3699 = vadd.f32 %v193, %v3639
    %v3700 = vadd.f32 %v195, %v3640
    %v3701 = vadd.f32 %v306, %v3641
    %v3702 = vadd.f32 %v308, %v3642
    %v3703 = vadd.f32 %v199, %v3643
    %v3704 = vadd.f32 %v201, %v3644
    %v3705 = vadd.f32 %v312, %v3645
    %v3706 = vadd.f32 %v314, %v3646
    %v3707 = vadd.f32 %v205, %v3647
    %v3708 = vadd.f32 %v207, %v3648
    %v3709 = vadd.f32 %v318, %v3649
    %v3710 = vadd.f32 %v320, %v3650
    %v3711 = vadd.f32 %v211, %v3651
    %v3712 = vadd.f32 %v213, %v3652
    %v3713 = vadd.f32 %v324, %v3653
    %v3714 = vadd.f32 %v326, %v3654
    %v3715 = vadd.f32 %v217, %v3655
    %v3716 = vadd.f32 %v219, %v3656
    %v3717 = vadd.f32 %v330, %v3657
    %v3718 = vadd.f32 %v332, %v3658
    %v3719 = vadd.f32 %v223, %v3659
    %v3720 = vadd.f32 %v225, %v3660
    %v3721 = vadd.f32 %v336, %v3661
    %v3722 = vadd.f32 %v338, %v3662
    %v3723 = vadd.f32 %v229, %v3560
    %v3724 = vadd.f32 %v231, %v3562
    %v3725 = vadd.f32 %v342, %v3631
    %v3726 = vadd.f32 %v344, %v3633
    %v3727 = vadd.f32 %v235, %v3663
    %v3728 = vadd.f32 %v237, %v3664
    %v3729 = vadd.f32 %v348, %v3665
    %v3730 = vadd.f32 %v350, %v3666
    %v3731 = vadd.f32 %v3699, %v421
    %v3732 = vadd.f32 %v3700, %v425
    %v3733 = vadd.f32 %v3701, %v429
    %v3734 = vadd.f32 %v3702, %v433
    %v3735 = vadd.f32 %v3703, %v421
    %v3736 = vadd.f32 %v3704, %v425
    %v3737 = vadd.f32 %v3705, %v429
    %v3738 = vadd.f32 %v3706, %v433
    %v3739 = vadd.f32 %v3707, %v421
    %v3740 = vadd.f32 %v3708, %v425
    %v3741 = vadd.f32 %v3709, %v429
    %v3742 = vadd.f32 %v3710, %v433
    %v3743 = vadd.f32 %v3711, %v421
    %v3744 = vadd.f32 %v3712, %v425
    %v3745 = vadd.f32 %v3713, %v429
    %v3746 = vadd.f32 %v3714, %v433
    %v3747 = vadd.f32 %v3715, %v421
    %v3748 = vadd.f32 %v3716, %v425
    %v3749 = vadd.f32 %v3717, %v429
    %v3750 = vadd.f32 %v3718, %v433
    %v3751 = vadd.f32 %v3719, %v421
    %v3752 = vadd.f32 %v3720, %v425
    %v3753 = vadd.f32 %v3721, %v429
    %v3754 = vadd.f32 %v3722, %v433
    %v3755 = vadd.f32 %v3723, %v421
    %v3756 = vadd.f32 %v3724, %v425
    %v3757 = vadd.f32 %v3725, %v429
    %v3758 = vadd.f32 %v3726, %v433
    %v3759 = vadd.f32 %v3727, %v421
    %v3760 = vadd.f32 %v3728, %v425
    %v3761 = vadd.f32 %v3729, %v429
    %v3762 = vadd.f32 %v3730, %v433
    %v3763 = vxor.u32 %v3731, 2147483648
    %v3764 = vxor.u32 %v3735, 2147483648
    %v3765 = vxor.u32 %v3739, 2147483648
    %v3766 = vxor.u32 %v3743, 2147483648
    %v3767 = vxor.u32 %v3747, 2147483648
    %v3768 = vxor.u32 %v3751, 2147483648
    %v3769 = vxor.u32 %v3755, 2147483648
    %v3770 = vxor.u32 %v3759, 2147483648
    %v3771 = vmul.f32 %v3763, 1.442695
    %v3772 = vpow.pop %v3771
    %v3773 = vmul.f32 %v3764, 1.442695
    %v3774 = vpow.pop %v3773
    %v3775 = vmul.f32 %v3765, 1.442695
    %v3776 = vpow.pop %v3775
    %v3777 = vmul.f32 %v3766, 1.442695
    %v3778 = vpow.pop %v3777
    %v3779 = vmul.f32 %v3767, 1.442695
    %v3780 = vpow.pop %v3779
    %v3781 = vmul.f32 %v3768, 1.442695
    %v3782 = vpow.pop %v3781
    %v3783 = vmul.f32 %v3769, 1.442695
    %v3784 = vpow.pop %v3783
    %v3785 = vmul.f32 %v3770, 1.442695
    %v3786 = vpow.pop %v3785
    %v3787 = vadd.f32 %v3772, 1.0
    %v3788 = vadd.f32 %v3774, 1.0
    %v3789 = vadd.f32 %v3776, 1.0
    %v3790 = vadd.f32 %v3778, 1.0
    %v3791 = vadd.f32 %v3780, 1.0
    %v3792 = vadd.f32 %v3782, 1.0
    %v3793 = vadd.f32 %v3784, 1.0
    %v3794 = vadd.f32 %v3786, 1.0
    %v3795 = vrcp.pop %v3787
    %v3796 = vmul.f32 1.0, %v3795
    %v3797 = vrcp.pop %v3788
    %v3798 = vmul.f32 1.0, %v3797
    %v3799 = vrcp.pop %v3789
    %v3800 = vmul.f32 1.0, %v3799
    %v3801 = vrcp.pop %v3790
    %v3802 = vmul.f32 1.0, %v3801
    %v3803 = vrcp.pop %v3791
    %v3804 = vmul.f32 1.0, %v3803
    %v3805 = vrcp.pop %v3792
    %v3806 = vmul.f32 1.0, %v3805
    %v3807 = vrcp.pop %v3793
    %v3808 = vmul.f32 1.0, %v3807
    %v3809 = vrcp.pop %v3794
    %v3810 = vmul.f32 1.0, %v3809
    %v3811 = vxor.u32 %v3732, 2147483648
    %v3812 = vxor.u32 %v3736, 2147483648
    %v3813 = vxor.u32 %v3740, 2147483648
    %v3814 = vxor.u32 %v3744, 2147483648
    %v3815 = vxor.u32 %v3748, 2147483648
    %v3816 = vxor.u32 %v3752, 2147483648
    %v3817 = vxor.u32 %v3756, 2147483648
    %v3818 = vxor.u32 %v3760, 2147483648
    %v3819 = vmul.f32 %v3811, 1.442695
    %v3820 = vpow.pop %v3819
    %v3821 = vmul.f32 %v3812, 1.442695
    %v3822 = vpow.pop %v3821
    %v3823 = vmul.f32 %v3813, 1.442695
    %v3824 = vpow.pop %v3823
    %v3825 = vmul.f32 %v3814, 1.442695
    %v3826 = vpow.pop %v3825
    %v3827 = vmul.f32 %v3815, 1.442695
    %v3828 = vpow.pop %v3827
    %v3829 = vmul.f32 %v3816, 1.442695
    %v3830 = vpow.pop %v3829
    %v3831 = vmul.f32 %v3817, 1.442695
    %v3832 = vpow.pop %v3831
    %v3833 = vmul.f32 %v3818, 1.442695
    %v3834 = vpow.pop %v3833
    %v3835 = vadd.f32 %v3820, 1.0
    %v3836 = vadd.f32 %v3822, 1.0
    %v3837 = vadd.f32 %v3824, 1.0
    %v3838 = vadd.f32 %v3826, 1.0
    %v3839 = vadd.f32 %v3828, 1.0
    %v3840 = vadd.f32 %v3830, 1.0
    %v3841 = vadd.f32 %v3832, 1.0
    %v3842 = vadd.f32 %v3834, 1.0
    %v3843 = vrcp.pop %v3835
    %v3844 = vmul.f32 1.0, %v3843
    %v3845 = vrcp.pop %v3836
    %v3846 = vmul.f32 1.0, %v3845
    %v3847 = vrcp.pop %v3837
    %v3848 = vmul.f32 1.0, %v3847
    %v3849 = vrcp.pop %v3838
    %v3850 = vmul.f32 1.0, %v3849
    %v3851 = vrcp.pop %v3839
    %v3852 = vmul.f32 1.0, %v3851
    %v3853 = vrcp.pop %v3840
    %v3854 = vmul.f32 1.0, %v3853
    %v3855 = vrcp.pop %v3841
    %v3856 = vmul.f32 1.0, %v3855
    %v3857 = vrcp.pop %v3842
    %v3858 = vmul.f32 1.0, %v3857
    %v3859 = vtanh.pop %v3733
    %v3860 = vtanh.pop %v3737
    %v3861 = vtanh.pop %v3741
    %v3862 = vtanh.pop %v3745
    %v3863 = vtanh.pop %v3749
    %v3864 = vtanh.pop %v3753
    %v3865 = vtanh.pop %v3757
    %v3866 = vtanh.pop %v3761
    %v3867 = vxor.u32 %v3734, 2147483648
    %v3868 = vxor.u32 %v3738, 2147483648
    %v3869 = vxor.u32 %v3742, 2147483648
    %v3870 = vxor.u32 %v3746, 2147483648
    %v3871 = vxor.u32 %v3750, 2147483648
    %v3872 = vxor.u32 %v3754, 2147483648
    %v3873 = vxor.u32 %v3758, 2147483648
    %v3874 = vxor.u32 %v3762, 2147483648
    %v3875 = vmul.f32 %v3867, 1.442695
    %v3876 = vpow.pop %v3875
    %v3877 = vmul.f32 %v3868, 1.442695
    %v3878 = vpow.pop %v3877
    %v3879 = vmul.f32 %v3869, 1.442695
    %v3880 = vpow.pop %v3879
    %v3881 = vmul.f32 %v3870, 1.442695
    %v3882 = vpow.pop %v3881
    %v3883 = vmul.f32 %v3871, 1.442695
    %v3884 = vpow.pop %v3883
    %v3885 = vmul.f32 %v3872, 1.442695
    %v3886 = vpow.pop %v3885
    %v3887 = vmul.f32 %v3873, 1.442695
    %v3888 = vpow.pop %v3887
    %v3889 = vmul.f32 %v3874, 1.442695
    %v3890 = vpow.pop %v3889
    %v3891 = vadd.f32 %v3876, 1.0
    %v3892 = vadd.f32 %v3878, 1.0
    %v3893 = vadd.f32 %v3880, 1.0
    %v3894 = vadd.f32 %v3882, 1.0
    %v3895 = vadd.f32 %v3884, 1.0
    %v3896 = vadd.f32 %v3886, 1.0
    %v3897 = vadd.f32 %v3888, 1.0
    %v3898 = vadd.f32 %v3890, 1.0
    %v3899 = vrcp.pop %v3891
    %v3900 = vmul.f32 1.0, %v3899
    %v3901 = vrcp.pop %v3892
    %v3902 = vmul.f32 1.0, %v3901
    %v3903 = vrcp.pop %v3893
    %v3904 = vmul.f32 1.0, %v3903
    %v3905 = vrcp.pop %v3894
    %v3906 = vmul.f32 1.0, %v3905
    %v3907 = vrcp.pop %v3895
    %v3908 = vmul.f32 1.0, %v3907
    %v3909 = vrcp.pop %v3896
    %v3910 = vmul.f32 1.0, %v3909
    %v3911 = vrcp.pop %v3897
    %v3912 = vmul.f32 1.0, %v3911
    %v3913 = vrcp.pop %v3898
    %v3914 = vmul.f32 1.0, %v3913
    %v3923 = vrot.slane %v3446, 7
    %v3924 = vrot.slane %v3447, 7
    %v3925 = vrot.slane %v3448, 7
    %v3926 = vrot.slane %v3449, 7
    %v3927 = vrot.slane %v3450, 7
    %v3928 = vrot.slane %v3451, 7
    %v3929 = vrot.slane %v3452, 7
    %v3930 = vrot.slane %v3453, 7
    %v3939 = vmul.f32 %v3844, %v3923
    %v3940 = vmul.f32 %v3846, %v3924
    %v3941 = vmul.f32 %v3848, %v3925
    %v3942 = vmul.f32 %v3850, %v3926
    %v3943 = vmul.f32 %v3852, %v3927
    %v3944 = vmul.f32 %v3854, %v3928
    %v3945 = vmul.f32 %v3856, %v3929
    %v3946 = vmul.f32 %v3858, %v3930
    %v3947 = vmul.f32 %v3796, %v3859
    %v3948 = vmul.f32 %v3798, %v3860
    %v3949 = vmul.f32 %v3800, %v3861
    %v3950 = vmul.f32 %v3802, %v3862
    %v3951 = vmul.f32 %v3804, %v3863
    %v3952 = vmul.f32 %v3806, %v3864
    %v3953 = vmul.f32 %v3808, %v3865
    %v3954 = vmul.f32 %v3810, %v3866
    %v3955 = vadd.f32 %v3939, %v3947
    %v3956 = vadd.f32 %v3940, %v3948
    %v3957 = vadd.f32 %v3941, %v3949
    %v3958 = vadd.f32 %v3942, %v3950
    %v3959 = vadd.f32 %v3943, %v3951
    %v3960 = vadd.f32 %v3944, %v3952
    %v3961 = vadd.f32 %v3945, %v3953
    %v3962 = vadd.f32 %v3946, %v3954
    %v3963 = vtanh.pop %v3955
    %v3964 = vtanh.pop %v3956
    %v3965 = vtanh.pop %v3957
    %v3966 = vtanh.pop %v3958
    %v3967 = vtanh.pop %v3959
    %v3968 = vtanh.pop %v3960
    %v3969 = vtanh.pop %v3961
    %v3970 = vtanh.pop %v3962
    %v3971 = vmul.f32 %v3900, %v3963
    %v3972 = vmul.f32 %v3902, %v3964
    %v3973 = vmul.f32 %v3904, %v3965
    %v3974 = vmul.f32 %v3906, %v3966
    %v3975 = vmul.f32 %v3908, %v3967
    %v3976 = vmul.f32 %v3910, %v3968
    %v3977 = vmul.f32 %v3912, %v3969
    %v3978 = vmul.f32 %v3914, %v3970
    %v3987 = vrot.slane %v3971, 6
    %v3988 = vrot.slane %v3972, 5
    %v3989 = vsel %vm927, %v3988, %v3987
    %v3990 = vrot.slane %v3973, 4
    %v3991 = vsel %vm930, %v3990, %v3989
    %v3992 = vrot.slane %v3974, 3
    %v3993 = vsel %vm933, %v3992, %v3991
    %v3994 = vrot.slane %v3975, 2
    %v3995 = vsel %vm936, %v3994, %v3993
    %v3996 = vrot.slane %v3976, 1
    %v3997 = vsel %vm939, %v3996, %v3995
    %v3998 = vsel %vm942, %v3977, %v3997
    %v3999 = vrot.slane %v3978, 7
    %v4000 = vsel %vm945, %v3999, %v3998
    %4002 = vmatprep.subr.mxu0 %v353
    %4003 = vmatpush1.msra.mxu0 %v352
    %4004 = vmatprep.subr.mxu0 %v357
    %4005 = vmatpush1.msra.mxu0 %v356
    %4006 = vmatprep.subr.mxu0 %v361
    %4007 = vmatpush1.msra.mxu0 %v360
    %4008 = vmatprep.subr.mxu0 %v365
    %4009 = vmatpush1.msra.mxu0 %v364
    %4010 = vmatprep.subr.mxu0 %v369
    %4011 = vmatpush1.msra.mxu0 %v368
    %4012 = vmatprep.subr.mxu0 %v373
    %4013 = vmatpush1.msra.mxu0 %v372
    %4014 = vmatprep.subr.mxu0 %v377
    %4015 = vmatpush1.msra.mxu0 %v376
    %4016 = vmatprep.subr.mxu0 %v381
    %4017 = vmatpush1.msra.mxu0 %v380
    %4018 = vmatprep.subr.mxu0 %v385
    %4019 = vmatpush1.msra.mxu0 %v384
    %4020 = vmatprep.subr.mxu0 %v389
    %4021 = vmatpush1.msra.mxu0 %v388
    %4022 = vmatprep.subr.mxu0 %v393
    %4023 = vmatpush1.msra.mxu0 %v392
    %4024 = vmatprep.subr.mxu0 %v397
    %4025 = vmatpush1.msra.mxu0 %v396
    %4026 = vmatprep.subr.mxu0 %v401
    %4027 = vmatpush1.msra.mxu0 %v400
    %4028 = vmatprep.subr.mxu0 %v405
    %4029 = vmatpush1.msra.mxu0 %v404
    %4030 = vmatprep.subr.mxu0 %v409
    %4031 = vmatpush1.msra.mxu0 %v408
    %4032 = vmatprep.subr.mxu0 %v413
    %4033 = vmatpush1.msra.mxu0 %v412
    %4034 = vmatprep.subr.mxu0 0.0
    %4035 = vmatpush1.msra.mxu0 0.0
    %4036 = vmatprep.subr.mxu0 0.0
    %4037 = vmatpush1.msra.mxu0 0.0
    %4038 = vmatprep.subr.mxu0 0.0
    %4039 = vmatpush1.msra.mxu0 0.0
    %4040 = vmatprep.subr.mxu0 0.0
    %4041 = vmatpush1.msra.mxu0 0.0
    %4042 = vmatprep.subr.mxu0 0.0
    %4043 = vmatpush1.msra.mxu0 0.0
    %4044 = vmatprep.subr.mxu0 0.0
    %4045 = vmatpush1.msra.mxu0 0.0
    %4046 = vmatprep.subr.mxu0 0.0
    %4047 = vmatpush1.msra.mxu0 0.0
    %4048 = vmatprep.subr.mxu0 0.0
    %4049 = vmatpush1.msra.mxu0 0.0
    %4050 = vmatprep.subr.mxu0 0.0
    %4051 = vmatpush1.msra.mxu0 0.0
    %4052 = vmatprep.subr.mxu0 0.0
    %4053 = vmatpush1.msra.mxu0 0.0
    %4054 = vmatprep.subr.mxu0 0.0
    %4055 = vmatpush1.msra.mxu0 0.0
    %4056 = vmatprep.subr.mxu0 0.0
    %4057 = vmatpush1.msra.mxu0 0.0
    %4058 = vmatprep.subr.mxu0 0.0
    %4059 = vmatpush1.msra.mxu0 0.0
    %4060 = vmatprep.subr.mxu0 0.0
    %4061 = vmatpush1.msra.mxu0 0.0
    %4062 = vmatprep.subr.mxu0 0.0
    %4063 = vmatpush1.msra.mxu0 0.0
    %4064 = vmatprep.subr.mxu0 0.0
    %4065 = vmatpush1.msra.mxu0 0.0
    %4066 = vmatprep.mubr.f32.mxu0 0.0
    %4067 = vmatmul.mubr.f32.gmra.mrb[0].mxu0 %v4000
    %v4068 = vpop.f32.mrb[0].mxu0
    %v4069 = vadd.f32 0.0, %v4068
    %v4070 = vpop.f32.mrb[0].mxu0
    %v4071 = vadd.f32 0.0, %v4070
    %4072 = vdwg.mxu0
    %4073 = vmatprep.subr.mxu0 %v355
    %4074 = vmatpush1.msra.mxu0 %v354
    %4075 = vmatprep.subr.mxu0 %v359
    %4076 = vmatpush1.msra.mxu0 %v358
    %4077 = vmatprep.subr.mxu0 %v363
    %4078 = vmatpush1.msra.mxu0 %v362
    %4079 = vmatprep.subr.mxu0 %v367
    %4080 = vmatpush1.msra.mxu0 %v366
    %4081 = vmatprep.subr.mxu0 %v371
    %4082 = vmatpush1.msra.mxu0 %v370
    %4083 = vmatprep.subr.mxu0 %v375
    %4084 = vmatpush1.msra.mxu0 %v374
    %4085 = vmatprep.subr.mxu0 %v379
    %4086 = vmatpush1.msra.mxu0 %v378
    %4087 = vmatprep.subr.mxu0 %v383
    %4088 = vmatpush1.msra.mxu0 %v382
    %4089 = vmatprep.subr.mxu0 %v387
    %4090 = vmatpush1.msra.mxu0 %v386
    %4091 = vmatprep.subr.mxu0 %v391
    %4092 = vmatpush1.msra.mxu0 %v390
    %4093 = vmatprep.subr.mxu0 %v395
    %4094 = vmatpush1.msra.mxu0 %v394
    %4095 = vmatprep.subr.mxu0 %v399
    %4096 = vmatpush1.msra.mxu0 %v398
    %4097 = vmatprep.subr.mxu0 %v403
    %4098 = vmatpush1.msra.mxu0 %v402
    %4099 = vmatprep.subr.mxu0 %v407
    %4100 = vmatpush1.msra.mxu0 %v406
    %4101 = vmatprep.subr.mxu0 %v411
    %4102 = vmatpush1.msra.mxu0 %v410
    %4103 = vmatprep.subr.mxu0 %v415
    %4104 = vmatpush1.msra.mxu0 %v414
    %4105 = vmatprep.subr.mxu0 0.0
    %4106 = vmatpush1.msra.mxu0 0.0
    %4107 = vmatprep.subr.mxu0 0.0
    %4108 = vmatpush1.msra.mxu0 0.0
    %4109 = vmatprep.subr.mxu0 0.0
    %4110 = vmatpush1.msra.mxu0 0.0
    %4111 = vmatprep.subr.mxu0 0.0
    %4112 = vmatpush1.msra.mxu0 0.0
    %4113 = vmatprep.subr.mxu0 0.0
    %4114 = vmatpush1.msra.mxu0 0.0
    %4115 = vmatprep.subr.mxu0 0.0
    %4116 = vmatpush1.msra.mxu0 0.0
    %4117 = vmatprep.subr.mxu0 0.0
    %4118 = vmatpush1.msra.mxu0 0.0
    %4119 = vmatprep.subr.mxu0 0.0
    %4120 = vmatpush1.msra.mxu0 0.0
    %4121 = vmatprep.subr.mxu0 0.0
    %4122 = vmatpush1.msra.mxu0 0.0
    %4123 = vmatprep.subr.mxu0 0.0
    %4124 = vmatpush1.msra.mxu0 0.0
    %4125 = vmatprep.subr.mxu0 0.0
    %4126 = vmatpush1.msra.mxu0 0.0
    %4127 = vmatprep.subr.mxu0 0.0
    %4128 = vmatpush1.msra.mxu0 0.0
    %4129 = vmatprep.subr.mxu0 0.0
    %4130 = vmatpush1.msra.mxu0 0.0
    %4131 = vmatprep.subr.mxu0 0.0
    %4132 = vmatpush1.msra.mxu0 0.0
    %4133 = vmatprep.subr.mxu0 0.0
    %4134 = vmatpush1.msra.mxu0 0.0
    %4135 = vmatprep.subr.mxu0 0.0
    %4136 = vmatpush1.msra.mxu0 0.0
    %4137 = vmatprep.mubr.f32.mxu0 0.0
    %4138 = vmatmul.mubr.f32.gmra.mrb[0].mxu0 %v4000
    %v4139 = vpop.f32.mrb[0].mxu0
    %v4140 = vadd.f32 0.0, %v4139
    %v4141 = vpop.f32.mrb[0].mxu0
    %v4142 = vadd.f32 0.0, %v4141
    %4143 = vdwg.mxu0
    %v4148 = vrot.slane %v4069, 1
    %v4149 = vrot.slane %v4071, 1
    %v4150 = vrot.slane %v4140, 1
    %v4151 = vrot.slane %v4142, 1
    %v4152 = vrot.slane %v4069, 2
    %v4153 = vrot.slane %v4071, 2
    %v4154 = vrot.slane %v4140, 2
    %v4155 = vrot.slane %v4142, 2
    %v4156 = vrot.slane %v4069, 3
    %v4157 = vrot.slane %v4071, 3
    %v4158 = vrot.slane %v4140, 3
    %v4159 = vrot.slane %v4142, 3
    %v4160 = vrot.slane %v4069, 4
    %v4161 = vrot.slane %v4071, 4
    %v4162 = vrot.slane %v4140, 4
    %v4163 = vrot.slane %v4142, 4
    %v4164 = vrot.slane %v4069, 5
    %v4165 = vrot.slane %v4071, 5
    %v4166 = vrot.slane %v4140, 5
    %v4167 = vrot.slane %v4142, 5
    %v4168 = vrot.slane %v4069, 6
    %v4169 = vrot.slane %v4071, 6
    %v4170 = vrot.slane %v4140, 6
    %v4171 = vrot.slane %v4142, 6
    %v4172 = vrot.slane %v4069, 7
    %v4173 = vrot.slane %v4071, 7
    %v4174 = vrot.slane %v4140, 7
    %v4175 = vrot.slane %v4142, 7
    %v4208 = vadd.f32 %v193, %v4148
    %v4209 = vadd.f32 %v195, %v4149
    %v4210 = vadd.f32 %v306, %v4150
    %v4211 = vadd.f32 %v308, %v4151
    %v4212 = vadd.f32 %v199, %v4152
    %v4213 = vadd.f32 %v201, %v4153
    %v4214 = vadd.f32 %v312, %v4154
    %v4215 = vadd.f32 %v314, %v4155
    %v4216 = vadd.f32 %v205, %v4156
    %v4217 = vadd.f32 %v207, %v4157
    %v4218 = vadd.f32 %v318, %v4158
    %v4219 = vadd.f32 %v320, %v4159
    %v4220 = vadd.f32 %v211, %v4160
    %v4221 = vadd.f32 %v213, %v4161
    %v4222 = vadd.f32 %v324, %v4162
    %v4223 = vadd.f32 %v326, %v4163
    %v4224 = vadd.f32 %v217, %v4164
    %v4225 = vadd.f32 %v219, %v4165
    %v4226 = vadd.f32 %v330, %v4166
    %v4227 = vadd.f32 %v332, %v4167
    %v4228 = vadd.f32 %v223, %v4168
    %v4229 = vadd.f32 %v225, %v4169
    %v4230 = vadd.f32 %v336, %v4170
    %v4231 = vadd.f32 %v338, %v4171
    %v4232 = vadd.f32 %v229, %v4172
    %v4233 = vadd.f32 %v231, %v4173
    %v4234 = vadd.f32 %v342, %v4174
    %v4235 = vadd.f32 %v344, %v4175
    %v4236 = vadd.f32 %v235, %v4069
    %v4237 = vadd.f32 %v237, %v4071
    %v4238 = vadd.f32 %v348, %v4140
    %v4239 = vadd.f32 %v350, %v4142
    %v4240 = vadd.f32 %v4208, %v421
    %v4241 = vadd.f32 %v4209, %v425
    %v4242 = vadd.f32 %v4210, %v429
    %v4243 = vadd.f32 %v4211, %v433
    %v4244 = vadd.f32 %v4212, %v421
    %v4245 = vadd.f32 %v4213, %v425
    %v4246 = vadd.f32 %v4214, %v429
    %v4247 = vadd.f32 %v4215, %v433
    %v4248 = vadd.f32 %v4216, %v421
    %v4249 = vadd.f32 %v4217, %v425
    %v4250 = vadd.f32 %v4218, %v429
    %v4251 = vadd.f32 %v4219, %v433
    %v4252 = vadd.f32 %v4220, %v421
    %v4253 = vadd.f32 %v4221, %v425
    %v4254 = vadd.f32 %v4222, %v429
    %v4255 = vadd.f32 %v4223, %v433
    %v4256 = vadd.f32 %v4224, %v421
    %v4257 = vadd.f32 %v4225, %v425
    %v4258 = vadd.f32 %v4226, %v429
    %v4259 = vadd.f32 %v4227, %v433
    %v4260 = vadd.f32 %v4228, %v421
    %v4261 = vadd.f32 %v4229, %v425
    %v4262 = vadd.f32 %v4230, %v429
    %v4263 = vadd.f32 %v4231, %v433
    %v4264 = vadd.f32 %v4232, %v421
    %v4265 = vadd.f32 %v4233, %v425
    %v4266 = vadd.f32 %v4234, %v429
    %v4267 = vadd.f32 %v4235, %v433
    %v4268 = vadd.f32 %v4236, %v421
    %v4269 = vadd.f32 %v4237, %v425
    %v4270 = vadd.f32 %v4238, %v429
    %v4271 = vadd.f32 %v4239, %v433
    %v4272 = vxor.u32 %v4240, 2147483648
    %v4273 = vxor.u32 %v4244, 2147483648
    %v4274 = vxor.u32 %v4248, 2147483648
    %v4275 = vxor.u32 %v4252, 2147483648
    %v4276 = vxor.u32 %v4256, 2147483648
    %v4277 = vxor.u32 %v4260, 2147483648
    %v4278 = vxor.u32 %v4264, 2147483648
    %v4279 = vxor.u32 %v4268, 2147483648
    %v4280 = vmul.f32 %v4272, 1.442695
    %v4281 = vpow.pop %v4280
    %v4282 = vmul.f32 %v4273, 1.442695
    %v4283 = vpow.pop %v4282
    %v4284 = vmul.f32 %v4274, 1.442695
    %v4285 = vpow.pop %v4284
    %v4286 = vmul.f32 %v4275, 1.442695
    %v4287 = vpow.pop %v4286
    %v4288 = vmul.f32 %v4276, 1.442695
    %v4289 = vpow.pop %v4288
    %v4290 = vmul.f32 %v4277, 1.442695
    %v4291 = vpow.pop %v4290
    %v4292 = vmul.f32 %v4278, 1.442695
    %v4293 = vpow.pop %v4292
    %v4294 = vmul.f32 %v4279, 1.442695
    %v4295 = vpow.pop %v4294
    %v4296 = vadd.f32 %v4281, 1.0
    %v4297 = vadd.f32 %v4283, 1.0
    %v4298 = vadd.f32 %v4285, 1.0
    %v4299 = vadd.f32 %v4287, 1.0
    %v4300 = vadd.f32 %v4289, 1.0
    %v4301 = vadd.f32 %v4291, 1.0
    %v4302 = vadd.f32 %v4293, 1.0
    %v4303 = vadd.f32 %v4295, 1.0
    %v4304 = vrcp.pop %v4296
    %v4305 = vmul.f32 1.0, %v4304
    %v4306 = vrcp.pop %v4297
    %v4307 = vmul.f32 1.0, %v4306
    %v4308 = vrcp.pop %v4298
    %v4309 = vmul.f32 1.0, %v4308
    %v4310 = vrcp.pop %v4299
    %v4311 = vmul.f32 1.0, %v4310
    %v4312 = vrcp.pop %v4300
    %v4313 = vmul.f32 1.0, %v4312
    %v4314 = vrcp.pop %v4301
    %v4315 = vmul.f32 1.0, %v4314
    %v4316 = vrcp.pop %v4302
    %v4317 = vmul.f32 1.0, %v4316
    %v4318 = vrcp.pop %v4303
    %v4319 = vmul.f32 1.0, %v4318
    %v4320 = vxor.u32 %v4241, 2147483648
    %v4321 = vxor.u32 %v4245, 2147483648
    %v4322 = vxor.u32 %v4249, 2147483648
    %v4323 = vxor.u32 %v4253, 2147483648
    %v4324 = vxor.u32 %v4257, 2147483648
    %v4325 = vxor.u32 %v4261, 2147483648
    %v4326 = vxor.u32 %v4265, 2147483648
    %v4327 = vxor.u32 %v4269, 2147483648
    %v4328 = vmul.f32 %v4320, 1.442695
    %v4329 = vpow.pop %v4328
    %v4330 = vmul.f32 %v4321, 1.442695
    %v4331 = vpow.pop %v4330
    %v4332 = vmul.f32 %v4322, 1.442695
    %v4333 = vpow.pop %v4332
    %v4334 = vmul.f32 %v4323, 1.442695
    %v4335 = vpow.pop %v4334
    %v4336 = vmul.f32 %v4324, 1.442695
    %v4337 = vpow.pop %v4336
    %v4338 = vmul.f32 %v4325, 1.442695
    %v4339 = vpow.pop %v4338
    %v4340 = vmul.f32 %v4326, 1.442695
    %v4341 = vpow.pop %v4340
    %v4342 = vmul.f32 %v4327, 1.442695
    %v4343 = vpow.pop %v4342
    %v4344 = vadd.f32 %v4329, 1.0
    %v4345 = vadd.f32 %v4331, 1.0
    %v4346 = vadd.f32 %v4333, 1.0
    %v4347 = vadd.f32 %v4335, 1.0
    %v4348 = vadd.f32 %v4337, 1.0
    %v4349 = vadd.f32 %v4339, 1.0
    %v4350 = vadd.f32 %v4341, 1.0
    %v4351 = vadd.f32 %v4343, 1.0
    %v4352 = vrcp.pop %v4344
    %v4353 = vmul.f32 1.0, %v4352
    %v4354 = vrcp.pop %v4345
    %v4355 = vmul.f32 1.0, %v4354
    %v4356 = vrcp.pop %v4346
    %v4357 = vmul.f32 1.0, %v4356
    %v4358 = vrcp.pop %v4347
    %v4359 = vmul.f32 1.0, %v4358
    %v4360 = vrcp.pop %v4348
    %v4361 = vmul.f32 1.0, %v4360
    %v4362 = vrcp.pop %v4349
    %v4363 = vmul.f32 1.0, %v4362
    %v4364 = vrcp.pop %v4350
    %v4365 = vmul.f32 1.0, %v4364
    %v4366 = vrcp.pop %v4351
    %v4367 = vmul.f32 1.0, %v4366
    %v4368 = vtanh.pop %v4242
    %v4369 = vtanh.pop %v4246
    %v4370 = vtanh.pop %v4250
    %v4371 = vtanh.pop %v4254
    %v4372 = vtanh.pop %v4258
    %v4373 = vtanh.pop %v4262
    %v4374 = vtanh.pop %v4266
    %v4375 = vtanh.pop %v4270
    %v4376 = vxor.u32 %v4243, 2147483648
    %v4377 = vxor.u32 %v4247, 2147483648
    %v4378 = vxor.u32 %v4251, 2147483648
    %v4379 = vxor.u32 %v4255, 2147483648
    %v4380 = vxor.u32 %v4259, 2147483648
    %v4381 = vxor.u32 %v4263, 2147483648
    %v4382 = vxor.u32 %v4267, 2147483648
    %v4383 = vxor.u32 %v4271, 2147483648
    %v4384 = vmul.f32 %v4376, 1.442695
    %v4385 = vpow.pop %v4384
    %v4386 = vmul.f32 %v4377, 1.442695
    %v4387 = vpow.pop %v4386
    %v4388 = vmul.f32 %v4378, 1.442695
    %v4389 = vpow.pop %v4388
    %v4390 = vmul.f32 %v4379, 1.442695
    %v4391 = vpow.pop %v4390
    %v4392 = vmul.f32 %v4380, 1.442695
    %v4393 = vpow.pop %v4392
    %v4394 = vmul.f32 %v4381, 1.442695
    %v4395 = vpow.pop %v4394
    %v4396 = vmul.f32 %v4382, 1.442695
    %v4397 = vpow.pop %v4396
    %v4398 = vmul.f32 %v4383, 1.442695
    %v4399 = vpow.pop %v4398
    %v4400 = vadd.f32 %v4385, 1.0
    %v4401 = vadd.f32 %v4387, 1.0
    %v4402 = vadd.f32 %v4389, 1.0
    %v4403 = vadd.f32 %v4391, 1.0
    %v4404 = vadd.f32 %v4393, 1.0
    %v4405 = vadd.f32 %v4395, 1.0
    %v4406 = vadd.f32 %v4397, 1.0
    %v4407 = vadd.f32 %v4399, 1.0
    %v4408 = vrcp.pop %v4400
    %v4409 = vmul.f32 1.0, %v4408
    %v4410 = vrcp.pop %v4401
    %v4411 = vmul.f32 1.0, %v4410
    %v4412 = vrcp.pop %v4402
    %v4413 = vmul.f32 1.0, %v4412
    %v4414 = vrcp.pop %v4403
    %v4415 = vmul.f32 1.0, %v4414
    %v4416 = vrcp.pop %v4404
    %v4417 = vmul.f32 1.0, %v4416
    %v4418 = vrcp.pop %v4405
    %v4419 = vmul.f32 1.0, %v4418
    %v4420 = vrcp.pop %v4406
    %v4421 = vmul.f32 1.0, %v4420
    %v4422 = vrcp.pop %v4407
    %v4423 = vmul.f32 1.0, %v4422
    %v4432 = vrot.slane %v3955, 7
    %v4433 = vrot.slane %v3956, 7
    %v4434 = vrot.slane %v3957, 7
    %v4435 = vrot.slane %v3958, 7
    %v4436 = vrot.slane %v3959, 7
    %v4437 = vrot.slane %v3960, 7
    %v4438 = vrot.slane %v3961, 7
    %v4439 = vrot.slane %v3962, 7
    %v4448 = vmul.f32 %v4353, %v4432
    %v4449 = vmul.f32 %v4355, %v4433
    %v4450 = vmul.f32 %v4357, %v4434
    %v4451 = vmul.f32 %v4359, %v4435
    %v4452 = vmul.f32 %v4361, %v4436
    %v4453 = vmul.f32 %v4363, %v4437
    %v4454 = vmul.f32 %v4365, %v4438
    %v4455 = vmul.f32 %v4367, %v4439
    %v4456 = vmul.f32 %v4305, %v4368
    %v4457 = vmul.f32 %v4307, %v4369
    %v4458 = vmul.f32 %v4309, %v4370
    %v4459 = vmul.f32 %v4311, %v4371
    %v4460 = vmul.f32 %v4313, %v4372
    %v4461 = vmul.f32 %v4315, %v4373
    %v4462 = vmul.f32 %v4317, %v4374
    %v4463 = vmul.f32 %v4319, %v4375
    %v4464 = vadd.f32 %v4448, %v4456
    %v4465 = vadd.f32 %v4449, %v4457
    %v4466 = vadd.f32 %v4450, %v4458
    %v4467 = vadd.f32 %v4451, %v4459
    %v4468 = vadd.f32 %v4452, %v4460
    %v4469 = vadd.f32 %v4453, %v4461
    %v4470 = vadd.f32 %v4454, %v4462
    %v4471 = vadd.f32 %v4455, %v4463
    %v4472 = vtanh.pop %v4464
    %v4473 = vtanh.pop %v4465
    %v4474 = vtanh.pop %v4466
    %v4475 = vtanh.pop %v4467
    %v4476 = vtanh.pop %v4468
    %v4477 = vtanh.pop %v4469
    %v4478 = vtanh.pop %v4470
    %v4479 = vtanh.pop %v4471
    %v4480 = vmul.f32 %v4409, %v4472
    %v4481 = vmul.f32 %v4411, %v4473
    %v4482 = vmul.f32 %v4413, %v4474
    %v4483 = vmul.f32 %v4415, %v4475
    %v4484 = vmul.f32 %v4417, %v4476
    %v4485 = vmul.f32 %v4419, %v4477
    %v4486 = vmul.f32 %v4421, %v4478
    %v4487 = vmul.f32 %v4423, %v4479
    %v4496 = vrot.slane %v4481, 7
    %v4497 = vrot.slane %v4482, 6
    %v4498 = vsel %vm927, %v4497, %v4496
    %v4499 = vrot.slane %v4483, 5
    %v4500 = vsel %vm930, %v4499, %v4498
    %v4501 = vrot.slane %v4484, 4
    %v4502 = vsel %vm933, %v4501, %v4500
    %v4503 = vrot.slane %v4485, 3
    %v4504 = vsel %vm936, %v4503, %v4502
    %v4505 = vrot.slane %v4486, 2
    %v4506 = vsel %vm939, %v4505, %v4504
    %v4507 = vrot.slane %v4487, 1
    %v4508 = vsel %vm942, %v4507, %v4506
    %4511 = vst [vmem:[#allocation2 - $0x7] sm:$0x80] %v4480
    %4512 = vst [vmem:[#allocation2 + $0x1] sm:$0x7f] %v4508
    %v4521 = vrot.slane %v4465, 7
    %v4522 = vrot.slane %v4466, 6
    %v4523 = vsel %vm927, %v4522, %v4521
    %v4524 = vrot.slane %v4467, 5
    %v4525 = vsel %vm930, %v4524, %v4523
    %v4526 = vrot.slane %v4468, 4
    %v4527 = vsel %vm933, %v4526, %v4525
    %v4528 = vrot.slane %v4469, 3
    %v4529 = vsel %vm936, %v4528, %v4527
    %v4530 = vrot.slane %v4470, 2
    %v4531 = vsel %vm939, %v4530, %v4529
    %v4532 = vrot.slane %v4471, 1
    %v4533 = vsel %vm942, %v4532, %v4531
    %4536 = vst [vmem:[#allocation3 - $0x7] sm:$0x80] %v4464
    %4537 = vst [vmem:[#allocation3 + $0x1] sm:$0x7f] %v4533
    // Predicated region
    $region46: #{tpu_custom_call.1} parent=1 // pred_check
      %p4538 = pneg %p79
    $region47: #{tpu_custom_call.1} parent=1 // pred_check_branch
      %4540 = sbr.rel (%p4538) target = $region49
    $region48: #{tpu_custom_call.1} parent=1 // pred_region
      %v4541 = vld [vmem:[#allocation10] sm:$0xff]
      %v4542 = vld [vmem:[#allocation10 + $0x8] sm:$0xff]
      %v4543 = vld [vmem:[#allocation10 + $0x10] sm:$0xff]
      %v4544 = vld [vmem:[#allocation10 + $0x18] sm:$0xff]
      %v4545 = vld [vmem:[#allocation10 + $0x20] sm:$0xff]
      %v4546 = vld [vmem:[#allocation10 + $0x28] sm:$0xff]
      %v4547 = vld [vmem:[#allocation10 + $0x30] sm:$0xff]
      %v4548 = vld [vmem:[#allocation10 + $0x38] sm:$0xff]
      %v4549 = vld [vmem:[#allocation10 + $0x40] sm:$0xff]
      %v4550 = vld [vmem:[#allocation10 + $0x48] sm:$0xff]
      %v4551 = vld [vmem:[#allocation10 + $0x50] sm:$0xff]
      %v4552 = vld [vmem:[#allocation10 + $0x58] sm:$0xff]
      %v4553 = vld [vmem:[#allocation10 + $0x60] sm:$0xff]
      %v4554 = vld [vmem:[#allocation10 + $0x68] sm:$0xff]
      %v4555 = vld [vmem:[#allocation10 + $0x70] sm:$0xff]
      %v4556 = vld [vmem:[#allocation10 + $0x78] sm:$0xff]
      %v4557 = vld [vmem:[%s5] sm:$0x1]
      %v4559 = vlaneseq
      %v4560 = vshrl.u32 %v4559, 7
      %v4561 = vsub.s32 0, %v4560
      %v4562 = vrot.slane %v4557, %v4561
      %v4564 = vrot.slane %v4480, 7
      %v4565 = vrot.slane %v4481, 6
      %v4566 = vsel %vm927, %v4565, %v4564
      %v4567 = vrot.slane %v4482, 5
      %v4568 = vsel %vm930, %v4567, %v4566
      %v4569 = vrot.slane %v4483, 4
      %v4570 = vsel %vm933, %v4569, %v4568
      %v4571 = vrot.slane %v4484, 3
      %v4572 = vsel %vm936, %v4571, %v4570
      %v4573 = vrot.slane %v4485, 2
      %v4574 = vsel %vm939, %v4573, %v4572
      %v4575 = vrot.slane %v4486, 1
      %v4576 = vsel %vm942, %v4575, %v4574
      %v4577 = vsel %vm945, %v4487, %v4576
      %4579 = vmatprep.subr.mxu0 0.0
      %4580 = vmatpush1.msra.mxu0 %v4541
      %4581 = vmatprep.subr.mxu0 0.0
      %4582 = vmatpush1.msra.mxu0 %v4542
      %4583 = vmatprep.subr.mxu0 0.0
      %4584 = vmatpush1.msra.mxu0 %v4543
      %4585 = vmatprep.subr.mxu0 0.0
      %4586 = vmatpush1.msra.mxu0 %v4544
      %4587 = vmatprep.subr.mxu0 0.0
      %4588 = vmatpush1.msra.mxu0 %v4545
      %4589 = vmatprep.subr.mxu0 0.0
      %4590 = vmatpush1.msra.mxu0 %v4546
      %4591 = vmatprep.subr.mxu0 0.0
      %4592 = vmatpush1.msra.mxu0 %v4547
      %4593 = vmatprep.subr.mxu0 0.0
      %4594 = vmatpush1.msra.mxu0 %v4548
      %4595 = vmatprep.subr.mxu0 0.0
      %4596 = vmatpush1.msra.mxu0 %v4549
      %4597 = vmatprep.subr.mxu0 0.0
      %4598 = vmatpush1.msra.mxu0 %v4550
      %4599 = vmatprep.subr.mxu0 0.0
      %4600 = vmatpush1.msra.mxu0 %v4551
      %4601 = vmatprep.subr.mxu0 0.0
      %4602 = vmatpush1.msra.mxu0 %v4552
      %4603 = vmatprep.subr.mxu0 0.0
      %4604 = vmatpush1.msra.mxu0 %v4553
      %4605 = vmatprep.subr.mxu0 0.0
      %4606 = vmatpush1.msra.mxu0 %v4554
      %4607 = vmatprep.subr.mxu0 0.0
      %4608 = vmatpush1.msra.mxu0 %v4555
      %4609 = vmatprep.subr.mxu0 0.0
      %4610 = vmatpush1.msra.mxu0 %v4556
      %4611 = vmatprep.subr.mxu0 0.0
      %4612 = vmatpush1.msra.mxu0 0.0
      %4613 = vmatprep.subr.mxu0 0.0
      %4614 = vmatpush1.msra.mxu0 0.0
      %4615 = vmatprep.subr.mxu0 0.0
      %4616 = vmatpush1.msra.mxu0 0.0
      %4617 = vmatprep.subr.mxu0 0.0
      %4618 = vmatpush1.msra.mxu0 0.0
      %4619 = vmatprep.subr.mxu0 0.0
      %4620 = vmatpush1.msra.mxu0 0.0
      %4621 = vmatprep.subr.mxu0 0.0
      %4622 = vmatpush1.msra.mxu0 0.0
      %4623 = vmatprep.subr.mxu0 0.0
      %4624 = vmatpush1.msra.mxu0 0.0
      %4625 = vmatprep.subr.mxu0 0.0
      %4626 = vmatpush1.msra.mxu0 0.0
      %4627 = vmatprep.subr.mxu0 0.0
      %4628 = vmatpush1.msra.mxu0 0.0
      %4629 = vmatprep.subr.mxu0 0.0
      %4630 = vmatpush1.msra.mxu0 0.0
      %4631 = vmatprep.subr.mxu0 0.0
      %4632 = vmatpush1.msra.mxu0 0.0
      %4633 = vmatprep.subr.mxu0 0.0
      %4634 = vmatpush1.msra.mxu0 0.0
      %4635 = vmatprep.subr.mxu0 0.0
      %4636 = vmatpush1.msra.mxu0 0.0
      %4637 = vmatprep.subr.mxu0 0.0
      %4638 = vmatpush1.msra.mxu0 0.0
      %4639 = vmatprep.subr.mxu0 0.0
      %4640 = vmatpush1.msra.mxu0 0.0
      %4641 = vmatprep.subr.mxu0 0.0
      %4642 = vmatpush1.msra.mxu0 0.0
      %4643 = vmatprep.mubr.f32.mxu0 0.0
      %4644 = vmatmul.mubr.f32.gmra.mrb[0].mxu0 %v4577
      %v4645 = vpop.f32.mrb[0].mxu0
      %v4646 = vadd.f32 %v4562, %v4645
      %v4647 = vpop.f32.mrb[0].mxu0
      %4648 = vdwg.mxu0
      %4649 = vst [vmem:[#allocation12] sm:$0xff] %v4646
    $region49: #{tpu_custom_call.1} parent=1 // pred_fallthru
      _
    // Predicated region
    $region50: #{tpu_custom_call.1} parent=1 // pred_check
      _
    $region51: #{tpu_custom_call.1} parent=1 // pred_check_branch
      %4651 = sbr.rel (0) target = $region53
    $region52: #{tpu_custom_call.1} parent=1 // pred_region
      %s4653 = ssub.s32 128, 128
      %4654 = vsyncadd [#allocation6], %s4653
      %s4656 = sshll.u32 [#allocation12], 4
      %s4657 = int_to_ptr.vmem [resolvable:$true] %s4656
      %4659 = dma.vmem_to_hbm [thread:$0]  %s4657, 128, %s6, [#allocation6]
    $region53: #{tpu_custom_call.1} parent=1 // pred_fallthru
      _
    // Predicated region
    $region54: #{tpu_custom_call.1} parent=1 // pred_check
      _
    $region55: #{tpu_custom_call.1} parent=1 // pred_check_branch
      %4661 = sbr.rel (0) target = $region57
    $region56: #{tpu_custom_call.1} parent=1 // pred_region
      %4662 = dma.done [#allocation6], 128
    $region57: #{tpu_custom_call.1} parent=1 // pred_fallthru
      _
    %4663 = vsyncpa [#allocation5], 1
    %4664 = vsyncpa [#allocation8], 1
    %4665 = vsyncpa [#allocation11], 1
    %4666 = vsyncpa [#allocation6], 1

</llo_original>
